<compile_context>
chip_gen: v7x
topology: tpu7x:2x2x1
jax: 0.10.0
libtpu: 0.0.40
codegen_flags: <defaults>
</compile_context>

<pallas_src>
import functools
import math

import jax
import jax.numpy as jnp
from jax import lax
from jax.experimental import pallas as pl
from jax.experimental.pallas import tpu as pltpu

LANE = 128


def _round_up(x, m):
    return (x + m - 1) // m * m


def _choose_tile(mp):
    """Largest of {512, 256, 128} dividing mp (mp is a multiple of 128)."""
    for t in (512, 256, 128):
        if mp % t == 0:
            return t
    return 128


# ----------------------------------------------------------------------------
# Fused GCNConv kernel:  out = act(A_hat @ (X @ W) + b)
# Grid (i, k): i tiles output rows, k tiles the node-contraction (last,
# "arbitrary").  W and bias are fully VMEM-resident; xw is recomputed per
# i-block (cost ratio ~F/tm, negligible, and the op is HBM-bound anyway).
# relu_cols: None -> no activation; int c -> ReLU on columns [0, c) only
# (lets two layers with different activations share one A_hat pass).
# ----------------------------------------------------------------------------
def _gcn_kernel(a_ref, x_ref, w_ref, b_ref, o_ref, acc_ref, *, relu_cols):
    k = pl.program_id(1)

    @pl.when(k == 0)
    def _():
        acc_ref[...] = jnp.zeros_like(acc_ref)

    xw = jnp.dot(x_ref[...], w_ref[...],
                 preferred_element_type=jnp.float32).astype(jnp.bfloat16)
    acc_ref[...] += jnp.dot(a_ref[...], xw, preferred_element_type=jnp.float32)

    @pl.when(k == pl.num_programs(1) - 1)
    def _():
        acc = acc_ref[...] + b_ref[...]
        if relu_cols is not None:
            if relu_cols >= acc.shape[-1]:
                acc = jnp.maximum(acc, 0.0)
            else:
                col = lax.broadcasted_iota(jnp.int32, acc.shape, 1)
                acc = jnp.where(col < relu_cols, jnp.maximum(acc, 0.0), acc)
        o_ref[...] = acc.astype(o_ref.dtype)


def gcn_conv_fused(a_hat_p, x_p, w_p, b_p, *, relu_cols=None,
                   out_dtype=jnp.bfloat16, tm=512, tk=512):
    """Fused GCNConv on pre-padded operands.

    a_hat_p: (Mp, Mp) bf16, x_p: (Mp, F) bf16, w_p: (F, F) bf16, b_p: (1, F) f32.
    Returns (Mp, F) in out_dtype.
    """
    Mp = a_hat_p.shape[0]
    F = x_p.shape[1]
    Fo = w_p.shape[1]
    tm = min(tm, Mp)
    tk = min(tk, Mp)
    assert Mp % tm == 0 and Mp % tk == 0, (Mp, tm, tk)

    return pl.pallas_call(
        functools.partial(_gcn_kernel, relu_cols=relu_cols),
        out_shape=jax.ShapeDtypeStruct((Mp, Fo), out_dtype),
        grid_spec=pltpu.PrefetchScalarGridSpec(
            num_scalar_prefetch=0,
            grid=(Mp // tm, Mp // tk),
            in_specs=[
                pl.BlockSpec((tm, tk), lambda i, k: (i, k)),   # A_hat stream
                pl.BlockSpec((tk, F), lambda i, k: (k, 0)),    # X rows
                pl.BlockSpec((F, Fo), lambda i, k: (0, 0)),    # W resident
                pl.BlockSpec((1, Fo), lambda i, k: (0, 0)),    # bias resident
            ],
            out_specs=pl.BlockSpec((tm, Fo), lambda i, k: (i, 0)),
            scratch_shapes=[pltpu.VMEM((tm, Fo), jnp.float32)],
        ),
        compiler_params=pltpu.CompilerParams(
            dimension_semantics=("parallel", "arbitrary")),
    )(a_hat_p, x_p, w_p, b_p)


# ----------------------------------------------------------------------------
# Gram kernel: s = h @ h.T.  Feature dim K is small and used as one full-dim
# block, so there is no reduction axis; 2-D fully parallel grid, no bias DMA.
# TODO(synk): exploit symmetry (compute only j >= i tiles, mirror the store)
# and/or emit bf16 once downstream loss tolerance is validated.
# ----------------------------------------------------------------------------
def _gram_kernel(a_ref, b_ref, o_ref):
    o_ref[...] = lax.dot_general(
        a_ref[...], b_ref[...],
        dimension_numbers=(((1,), (1,)), ((), ())),
        preferred_element_type=jnp.float32).astype(o_ref.dtype)


def gram_matmul(h, *, tm=512, tn=512, out_dtype=jnp.float32):
    Mp, K = h.shape
    tm = min(tm, Mp)
    tn = min(tn, Mp)
    assert Mp % tm == 0 and Mp % tn == 0, (Mp, tm, tn)

    return pl.pallas_call(
        _gram_kernel,
        out_shape=jax.ShapeDtypeStruct((Mp, Mp), out_dtype),
        grid_spec=pltpu.PrefetchScalarGridSpec(
            num_scalar_prefetch=0,
            grid=(Mp // tm, Mp // tn),
            in_specs=[
                pl.BlockSpec((tm, K), lambda i, j: (i, 0)),
                pl.BlockSpec((tn, K), lambda i, j: (j, 0)),
            ],
            out_specs=pl.BlockSpec((tm, tn), lambda i, j: (i, j)),
        ),
        compiler_params=pltpu.CompilerParams(
            dimension_semantics=("parallel", "parallel")),
    )(h, h)


# ----------------------------------------------------------------------------
# DOMINANT forward composition.
# ----------------------------------------------------------------------------
def dominant_forward(x, a_hat, params):
    N, in_dim = x.shape
    hid = params["enc_w1"].shape[1]

    Mp = _round_up(N, LANE)
    tile = _choose_tile(Mp)
    F = _round_up(max(in_dim, hid + in_dim), LANE)

    # One-time cast + pad. Intermediates stay padded/resident; padded weight
    # rows/cols are zero so dead columns cannot leak into later contractions.
    a_hat_p = jnp.pad(a_hat.astype(jnp.bfloat16), ((0, Mp - N), (0, Mp - N)))
    x_p = jnp.pad(x.astype(jnp.bfloat16), ((0, Mp - N), (0, F - in_dim)))

    def pad_w(w):
        fi, fo = w.shape
        return jnp.pad(w.astype(jnp.bfloat16), ((0, F - fi), (0, F - fo)))

    def pad_b(b):
        return jnp.pad(b.astype(jnp.float32), (0, F - b.shape[0]))[None, :]

    conv = functools.partial(gcn_conv_fused, a_hat_p, tm=tile, tk=tile)

    # Shared encoder: in_dim -> hid (ReLU) -> hid (no act after last layer).
    h = conv(x_p, pad_w(params["enc_w1"]), pad_b(params["enc_b1"]), relu_cols=F)
    h = conv(h, pad_w(params["enc_w2"]), pad_b(params["enc_b2"]))

    # Shared A_hat pass: cols [0, hid) = attr-decoder layer 1 (ReLU),
    # cols [hid, hid+in_dim) = struct decoder output (no activation).
    w_comb = jnp.concatenate([params["attr_w1"], params["struct_w"]], axis=1)
    b_comb = jnp.concatenate([params["attr_b1"], params["struct_b"]])
    comb = conv(h, pad_w(w_comb), pad_b(b_comb), relu_cols=hid)

    # Attr-decoder layer 2: hid -> in_dim (no act). attr_w2 is zero beyond row
    # `hid`, so the struct columns living inside `comb` contribute nothing.
    x_pad = conv(comb, pad_w(params["attr_w2"]), pad_b(params["attr_b2"]),
                 out_dtype=jnp.float32)

    # Structure reconstruction s_ = h_ @ h_.T.
    h_ = lax.slice(comb, (0, hid), (Mp, hid + in_dim))     # (Mp, in_dim) bf16
    s_pad = gram_matmul(h_, tm=tile, tn=tile)

    return x_pad[:N, :in_dim], s_pad[:N, :N]


def build_norm_adj(edge_index, num_nodes):
    """Dense A_hat = D^-1/2 (A + I) D^-1/2, GCNConv-style normalization."""
    src, dst = edge_index
    a = jnp.zeros((num_nodes, num_nodes), jnp.float32)
    a = a.at[src, dst].set(1.0)
    a = a + jnp.eye(num_nodes, dtype=jnp.float32)
    a = jnp.minimum(a, 1.0)                       # dedupe / self-loop overlap
    deg = a.sum(axis=1)                           # >= 1, no div-by-zero
    d_inv_sqrt = jax.lax.rsqrt(deg)
    return a * d_inv_sqrt[:, None] * d_inv_sqrt[None, :]


# ----------------------------------------------------------------------------
# Demo
# ----------------------------------------------------------------------------
if __name__ == "__main__":
    N, in_dim, hid_dim = 200, 64, 32   # num_layers=4, dropout=0 (eval), act=ReLU

    key = jax.random.PRNGKey(0)
    kx, ks, kd, kp = jax.random.split(key, 4)

    x = jax.random.normal(kx, (N, in_dim), jnp.float32)

    # Random undirected edge set (both directions included).
    n_edges = 600
    src = jax.random.randint(ks, (n_edges,), 0, N)
    dst = jax.random.randint(kd, (n_edges,), 0, N)
    edge_index = jnp.stack([jnp.concatenate([src, dst]),
                            jnp.concatenate([dst, src])])
    a_hat = build_norm_adj(edge_index, N)

    def glorot(k, fan_in, fan_out):
        lim = math.sqrt(6.0 / (fan_in + fan_out))
        return jax.random.uniform(k, (fan_in, fan_out), jnp.float32, -lim, lim)

    wk = jax.random.split(kp, 5)
    params = dict(
        enc_w1=glorot(wk[0], in_dim, hid_dim),
        enc_b1=jnp.zeros((hid_dim,), jnp.float32),
        enc_w2=glorot(wk[1], hid_dim, hid_dim),
        enc_b2=jnp.zeros((hid_dim,), jnp.float32),
        attr_w1=glorot(wk[2], hid_dim, hid_dim),
        attr_b1=jnp.zeros((hid_dim,), jnp.float32),
        attr_w2=glorot(wk[3], hid_dim, in_dim),
        attr_b2=jnp.zeros((in_dim,), jnp.float32),
        struct_w=glorot(wk[4], hid_dim, in_dim),
        struct_b=jnp.zeros((in_dim,), jnp.float32),
    )

    x_, s_ = jax.jit(dominant_forward)(x, a_hat, params)
    jax.block_until_ready((x_, s_))

    assert x_.shape == (N, in_dim), x_.shape
    assert s_.shape == (N, N), s_.shape
    assert bool(jnp.isfinite(x_).all()) and bool(jnp.isfinite(s_).all())

    # Lightweight f32 reference check (bf16 streaming -> loose tolerance).
    def ref_forward(xx, ah, p):
        def c(z, w, b, act):
            out = ah @ (z @ w) + b
            return jnp.maximum(out, 0.0) if act else out
        h = c(xx, p["enc_w1"], p["enc_b1"], True)
        h = c(h, p["enc_w2"], p["enc_b2"], False)
        a1 = c(h, p["attr_w1"], p["attr_b1"], True)
        xr = c(a1, p["attr_w2"], p["attr_b2"], False)
        hr = c(h, p["struct_w"], p["struct_b"], False)
        return xr, hr @ hr.T

    xr, sr = ref_forward(x, a_hat, params)
    ex = float(jnp.max(jnp.abs(x_ - xr)) / (jnp.max(jnp.abs(xr)) + 1e-6))
    es = float(jnp.max(jnp.abs(s_ - sr)) / (jnp.max(jnp.abs(sr)) + 1e-6))
    assert ex < 0.08 and es < 0.08, (ex, es)

    print("KERNEL_OK")
</pallas_src>

<mosaic_0001>
module attributes {stable_mosaic.version = 11 : i64} {
  func.func @_gcn_kernel(%arg0: i32, %arg1: i32, %arg2: memref<256x256xbf16, #tpu.memory_space<vmem>>, %arg3: memref<256x128xbf16, #tpu.memory_space<vmem>>, %arg4: memref<128x128xbf16, #tpu.memory_space<vmem>>, %arg5: memref<1x128xf32, #tpu.memory_space<vmem>>, %arg6: memref<256x128xbf16, #tpu.memory_space<vmem>>, %arg7: memref<256x128xf32, #tpu.memory_space<vmem>>) attributes {dimension_semantics = [#tpu.dimension_semantics<parallel>, #tpu.dimension_semantics<arbitrary>], iteration_bounds = array<i64: 1, 1>, scalar_prefetch = 0 : i64, scratch_operands = 1 : i64, tpu.core_type = #tpu.core_type<tc>, window_params = [{transform_indices = @transform_0, window_bounds = array<i64: 256, 256>}, {transform_indices = @transform_1, window_bounds = array<i64: 256, 128>}, {pipeline_mode = #tpu.pipeline_mode<synchronous>, transform_indices = @transform_2, window_bounds = array<i64: 128, 128>}, {pipeline_mode = #tpu.pipeline_mode<synchronous>, transform_indices = @transform_3, window_bounds = array<i64: 1, 128>}, {transform_indices = @transform_4, window_bounds = array<i64: 256, 128>}]} {
    %c0_i32 = arith.constant 0 : i32
    %0 = arith.cmpi eq, %arg1, %c0_i32 : i32
    %1 = arith.extui %0 : i1 to i32
    %c0_i32_0 = arith.constant 0 : i32
    %2 = arith.cmpi ne, %1, %c0_i32_0 : i32
    scf.if %2 {
      %cst_13 = arith.constant 0.000000e+00 : f32
      %15 = vector.broadcast %cst_13 : f32 to vector<256x128xf32>
      %c0_14 = arith.constant 0 : index
      %c0_15 = arith.constant 0 : index
      %16 = vector.load %arg7[%c0_14, %c0_15] : memref<256x128xf32, #tpu.memory_space<vmem>>, vector<256x128xf32>
      tpu.vector_store %arg7[%c0_14, %c0_15], %15 {strides = array<i32>} : memref<256x128xf32, #tpu.memory_space<vmem>>, vector<256x128xf32>,
    } else {
    }
    %c0 = arith.constant 0 : index
    %c0_1 = arith.constant 0 : index
    %3 = vector.load %arg3[%c0, %c0_1] : memref<256x128xbf16, #tpu.memory_space<vmem>>, vector<256x128xbf16>
    %c0_2 = arith.constant 0 : index
    %c0_3 = arith.constant 0 : index
    %4 = vector.load %arg4[%c0_2, %c0_3] : memref<128x128xbf16, #tpu.memory_space<vmem>>, vector<128x128xbf16>
    %cst = arith.constant dense<0.000000e+00> : vector<256x128xf32>
    %5 = tpu.matmul %3, %4, %cst {dimension_numbers = #tpu.dot_dimension_numbers<[1], [0], [0], [1], [0, 0, 1, 1], [], []>} : vector<256x128xbf16>, vector<128x128xbf16>, vector<256x128xf32> -> vector<256x128xf32>
    %6 = arith.truncf %5 : vector<256x128xf32> to vector<256x128xbf16>
    %c0_4 = arith.constant 0 : index
    %c0_5 = arith.constant 0 : index
    %7 = vector.load %arg7[%c0_4, %c0_5] : memref<256x128xf32, #tpu.memory_space<vmem>>, vector<256x128xf32>
    %c0_6 = arith.constant 0 : index
    %c0_7 = arith.constant 0 : index
    %8 = vector.load %arg2[%c0_6, %c0_7] : memref<256x256xbf16, #tpu.memory_space<vmem>>, vector<256x256xbf16>
    %cst_8 = arith.constant dense<0.000000e+00> : vector<256x128xf32>
    %9 = tpu.matmul %8, %6, %cst_8 {dimension_numbers = #tpu.dot_dimension_numbers<[1], [0], [0], [1], [0, 0, 1, 1], [], []>} : vector<256x256xbf16>, vector<256x128xbf16>, vector<256x128xf32> -> vector<256x128xf32>
    %10 = arith.addf %7, %9 : vector<256x128xf32>
    %c0_9 = arith.constant 0 : index
    %c0_10 = arith.constant 0 : index
    %11 = vector.load %arg7[%c0_9, %c0_10] : memref<256x128xf32, #tpu.memory_space<vmem>>, vector<256x128xf32>
    tpu.vector_store %arg7[%c0_9, %c0_10], %10 {strides = array<i32>} : memref<256x128xf32, #tpu.memory_space<vmem>>, vector<256x128xf32>,
    %c0_i32_11 = arith.constant 0 : i32
    %12 = arith.cmpi eq, %arg1, %c0_i32_11 : i32
    %13 = arith.extui %12 : i1 to i32
    %c0_i32_12 = arith.constant 0 : i32
    %14 = arith.cmpi ne, %13, %c0_i32_12 : i32
    scf.if %14 {
      %c0_13 = arith.constant 0 : index
      %c0_14 = arith.constant 0 : index
      %15 = vector.load %arg7[%c0_13, %c0_14] : memref<256x128xf32, #tpu.memory_space<vmem>>, vector<256x128xf32>
      %c0_15 = arith.constant 0 : index
      %c0_16 = arith.constant 0 : index
      %16 = vector.load %arg5[%c0_15, %c0_16] : memref<1x128xf32, #tpu.memory_space<vmem>>, vector<1x128xf32>
      %17 = vector.broadcast %16 : vector<1x128xf32> to vector<256x128xf32>
      %18 = arith.addf %15, %17 : vector<256x128xf32>
      %cst_17 = arith.constant 0.000000e+00 : f32
      %19 = vector.broadcast %cst_17 : f32 to vector<256x128xf32>
      %20 = arith.maximumf %18, %19 : vector<256x128xf32>
      %21 = arith.truncf %20 : vector<256x128xf32> to vector<256x128xbf16>
      %c0_18 = arith.constant 0 : index
      %c0_19 = arith.constant 0 : index
      %22 = vector.load %arg6[%c0_18, %c0_19] : memref<256x128xbf16, #tpu.memory_space<vmem>>, vector<256x128xbf16>
      tpu.vector_store %arg6[%c0_18, %c0_19], %21 {strides = array<i32>} : memref<256x128xbf16, #tpu.memory_space<vmem>>, vector<256x128xbf16>,
    } else {
    }
    return
  }
  func.func @transform_0(%arg0: i32, %arg1: i32) -> (i32, i32) {
    %c0_i32 = arith.constant 0 : i32
    return %arg0, %arg1 : i32, i32
  }
  func.func @transform_1(%arg0: i32, %arg1: i32) -> (i32, i32) {
    %c0_i32 = arith.constant 0 : i32
    %c0_i32_0 = arith.constant 0 : i32
    return %arg1, %c0_i32 : i32, i32
  }
  func.func @transform_2(%arg0: i32, %arg1: i32) -> (i32, i32) {
    %c0_i32 = arith.constant 0 : i32
    %c0_i32_0 = arith.constant 0 : i32
    %c0_i32_1 = arith.constant 0 : i32
    return %c0_i32, %c0_i32_0 : i32, i32
  }
  func.func @transform_3(%arg0: i32, %arg1: i32) -> (i32, i32) {
    %c0_i32 = arith.constant 0 : i32
    %c0_i32_0 = arith.constant 0 : i32
    %c0_i32_1 = arith.constant 0 : i32
    return %c0_i32, %c0_i32_0 : i32, i32
  }
  func.func @transform_4(%arg0: i32, %arg1: i32) -> (i32, i32) {
    %c0_i32 = arith.constant 0 : i32
    %c0_i32_0 = arith.constant 0 : i32
    return %arg0, %c0_i32 : i32, i32
  }
}

module attributes {stable_mosaic.version = 11 : i64} {
  func.func @_gcn_kernel(%arg0: i32, %arg1: i32, %arg2: memref<256x256xbf16, #tpu.memory_space<vmem>>, %arg3: memref<256x128xbf16, #tpu.memory_space<vmem>>, %arg4: memref<128x128xbf16, #tpu.memory_space<vmem>>, %arg5: memref<1x128xf32, #tpu.memory_space<vmem>>, %arg6: memref<256x128xbf16, #tpu.memory_space<vmem>>, %arg7: memref<256x128xf32, #tpu.memory_space<vmem>>) attributes {dimension_semantics = [#tpu.dimension_semantics<parallel>, #tpu.dimension_semantics<arbitrary>], iteration_bounds = array<i64: 1, 1>, scalar_prefetch = 0 : i64, scratch_operands = 1 : i64, tpu.core_type = #tpu.core_type<tc>, window_params = [{transform_indices = @transform_0, window_bounds = array<i64: 256, 256>}, {transform_indices = @transform_1, window_bounds = array<i64: 256, 128>}, {pipeline_mode = #tpu.pipeline_mode<synchronous>, transform_indices = @transform_2, window_bounds = array<i64: 128, 128>}, {pipeline_mode = #tpu.pipeline_mode<synchronous>, transform_indices = @transform_3, window_bounds = array<i64: 1, 128>}, {transform_indices = @transform_4, window_bounds = array<i64: 256, 128>}]} {
    %c0_i32 = arith.constant 0 : i32
    %0 = arith.cmpi eq, %arg1, %c0_i32 : i32
    %1 = arith.extui %0 : i1 to i32
    %c0_i32_0 = arith.constant 0 : i32
    %2 = arith.cmpi ne, %1, %c0_i32_0 : i32
    scf.if %2 {
      %cst_13 = arith.constant 0.000000e+00 : f32
      %15 = vector.broadcast %cst_13 : f32 to vector<256x128xf32>
      %c0_14 = arith.constant 0 : index
      %c0_15 = arith.constant 0 : index
      %16 = vector.load %arg7[%c0_14, %c0_15] : memref<256x128xf32, #tpu.memory_space<vmem>>, vector<256x128xf32>
      tpu.vector_store %arg7[%c0_14, %c0_15], %15 {strides = array<i32>} : memref<256x128xf32, #tpu.memory_space<vmem>>, vector<256x128xf32>,
    } else {
    }
    %c0 = arith.constant 0 : index
    %c0_1 = arith.constant 0 : index
    %3 = vector.load %arg3[%c0, %c0_1] : memref<256x128xbf16, #tpu.memory_space<vmem>>, vector<256x128xbf16>
    %c0_2 = arith.constant 0 : index
    %c0_3 = arith.constant 0 : index
    %4 = vector.load %arg4[%c0_2, %c0_3] : memref<128x128xbf16, #tpu.memory_space<vmem>>, vector<128x128xbf16>
    %cst = arith.constant dense<0.000000e+00> : vector<256x128xf32>
    %5 = tpu.matmul %3, %4, %cst {dimension_numbers = #tpu.dot_dimension_numbers<[1], [0], [0], [1], [0, 0, 1, 1], [], []>} : vector<256x128xbf16>, vector<128x128xbf16>, vector<256x128xf32> -> vector<256x128xf32>
    %6 = arith.truncf %5 : vector<256x128xf32> to vector<256x128xbf16>
    %c0_4 = arith.constant 0 : index
    %c0_5 = arith.constant 0 : index
    %7 = vector.load %arg7[%c0_4, %c0_5] : memref<256x128xf32, #tpu.memory_space<vmem>>, vector<256x128xf32>
    %c0_6 = arith.constant 0 : index
    %c0_7 = arith.constant 0 : index
    %8 = vector.load %arg2[%c0_6, %c0_7] : memref<256x256xbf16, #tpu.memory_space<vmem>>, vector<256x256xbf16>
    %cst_8 = arith.constant dense<0.000000e+00> : vector<256x128xf32>
    %9 = tpu.matmul %8, %6, %cst_8 {dimension_numbers = #tpu.dot_dimension_numbers<[1], [0], [0], [1], [0, 0, 1, 1], [], []>} : vector<256x256xbf16>, vector<256x128xbf16>, vector<256x128xf32> -> vector<256x128xf32>
    %10 = arith.addf %7, %9 : vector<256x128xf32>
    %c0_9 = arith.constant 0 : index
    %c0_10 = arith.constant 0 : index
    %11 = vector.load %arg7[%c0_9, %c0_10] : memref<256x128xf32, #tpu.memory_space<vmem>>, vector<256x128xf32>
    tpu.vector_store %arg7[%c0_9, %c0_10], %10 {strides = array<i32>} : memref<256x128xf32, #tpu.memory_space<vmem>>, vector<256x128xf32>,
    %c0_i32_11 = arith.constant 0 : i32
    %12 = arith.cmpi eq, %arg1, %c0_i32_11 : i32
    %13 = arith.extui %12 : i1 to i32
    %c0_i32_12 = arith.constant 0 : i32
    %14 = arith.cmpi ne, %13, %c0_i32_12 : i32
    scf.if %14 {
      %c0_13 = arith.constant 0 : index
      %c0_14 = arith.constant 0 : index
      %15 = vector.load %arg7[%c0_13, %c0_14] : memref<256x128xf32, #tpu.memory_space<vmem>>, vector<256x128xf32>
      %c0_15 = arith.constant 0 : index
      %c0_16 = arith.constant 0 : index
      %16 = vector.load %arg5[%c0_15, %c0_16] : memref<1x128xf32, #tpu.memory_space<vmem>>, vector<1x128xf32>
      %17 = vector.broadcast %16 : vector<1x128xf32> to vector<256x128xf32>
      %18 = arith.addf %15, %17 : vector<256x128xf32>
      %19 = arith.truncf %18 : vector<256x128xf32> to vector<256x128xbf16>
      %c0_17 = arith.constant 0 : index
      %c0_18 = arith.constant 0 : index
      %20 = vector.load %arg6[%c0_17, %c0_18] : memref<256x128xbf16, #tpu.memory_space<vmem>>, vector<256x128xbf16>
      tpu.vector_store %arg6[%c0_17, %c0_18], %19 {strides = array<i32>} : memref<256x128xbf16, #tpu.memory_space<vmem>>, vector<256x128xbf16>,
    } else {
    }
    return
  }
  func.func @transform_0(%arg0: i32, %arg1: i32) -> (i32, i32) {
    %c0_i32 = arith.constant 0 : i32
    return %arg0, %arg1 : i32, i32
  }
  func.func @transform_1(%arg0: i32, %arg1: i32) -> (i32, i32) {
    %c0_i32 = arith.constant 0 : i32
    %c0_i32_0 = arith.constant 0 : i32
    return %arg1, %c0_i32 : i32, i32
  }
  func.func @transform_2(%arg0: i32, %arg1: i32) -> (i32, i32) {
    %c0_i32 = arith.constant 0 : i32
    %c0_i32_0 = arith.constant 0 : i32
    %c0_i32_1 = arith.constant 0 : i32
    return %c0_i32, %c0_i32_0 : i32, i32
  }
  func.func @transform_3(%arg0: i32, %arg1: i32) -> (i32, i32) {
    %c0_i32 = arith.constant 0 : i32
    %c0_i32_0 = arith.constant 0 : i32
    %c0_i32_1 = arith.constant 0 : i32
    return %c0_i32, %c0_i32_0 : i32, i32
  }
  func.func @transform_4(%arg0: i32, %arg1: i32) -> (i32, i32) {
    %c0_i32 = arith.constant 0 : i32
    %c0_i32_0 = arith.constant 0 : i32
    return %arg0, %c0_i32 : i32, i32
  }
}

module attributes {stable_mosaic.version = 11 : i64} {
  func.func @_gcn_kernel(%arg0: i32, %arg1: i32, %arg2: memref<256x256xbf16, #tpu.memory_space<vmem>>, %arg3: memref<256x128xbf16, #tpu.memory_space<vmem>>, %arg4: memref<128x128xbf16, #tpu.memory_space<vmem>>, %arg5: memref<1x128xf32, #tpu.memory_space<vmem>>, %arg6: memref<256x128xbf16, #tpu.memory_space<vmem>>, %arg7: memref<256x128xf32, #tpu.memory_space<vmem>>) attributes {dimension_semantics = [#tpu.dimension_semantics<parallel>, #tpu.dimension_semantics<arbitrary>], iteration_bounds = array<i64: 1, 1>, scalar_prefetch = 0 : i64, scratch_operands = 1 : i64, tpu.core_type = #tpu.core_type<tc>, window_params = [{transform_indices = @transform_0, window_bounds = array<i64: 256, 256>}, {transform_indices = @transform_1, window_bounds = array<i64: 256, 128>}, {pipeline_mode = #tpu.pipeline_mode<synchronous>, transform_indices = @transform_2, window_bounds = array<i64: 128, 128>}, {pipeline_mode = #tpu.pipeline_mode<synchronous>, transform_indices = @transform_3, window_bounds = array<i64: 1, 128>}, {transform_indices = @transform_4, window_bounds = array<i64: 256, 128>}]} {
    %c0_i32 = arith.constant 0 : i32
    %0 = arith.cmpi eq, %arg1, %c0_i32 : i32
    %1 = arith.extui %0 : i1 to i32
    %c0_i32_0 = arith.constant 0 : i32
    %2 = arith.cmpi ne, %1, %c0_i32_0 : i32
    scf.if %2 {
      %cst_13 = arith.constant 0.000000e+00 : f32
      %15 = vector.broadcast %cst_13 : f32 to vector<256x128xf32>
      %c0_14 = arith.constant 0 : index
      %c0_15 = arith.constant 0 : index
      %16 = vector.load %arg7[%c0_14, %c0_15] : memref<256x128xf32, #tpu.memory_space<vmem>>, vector<256x128xf32>
      tpu.vector_store %arg7[%c0_14, %c0_15], %15 {strides = array<i32>} : memref<256x128xf32, #tpu.memory_space<vmem>>, vector<256x128xf32>,
    } else {
    }
    %c0 = arith.constant 0 : index
    %c0_1 = arith.constant 0 : index
    %3 = vector.load %arg3[%c0, %c0_1] : memref<256x128xbf16, #tpu.memory_space<vmem>>, vector<256x128xbf16>
    %c0_2 = arith.constant 0 : index
    %c0_3 = arith.constant 0 : index
    %4 = vector.load %arg4[%c0_2, %c0_3] : memref<128x128xbf16, #tpu.memory_space<vmem>>, vector<128x128xbf16>
    %cst = arith.constant dense<0.000000e+00> : vector<256x128xf32>
    %5 = tpu.matmul %3, %4, %cst {dimension_numbers = #tpu.dot_dimension_numbers<[1], [0], [0], [1], [0, 0, 1, 1], [], []>} : vector<256x128xbf16>, vector<128x128xbf16>, vector<256x128xf32> -> vector<256x128xf32>
    %6 = arith.truncf %5 : vector<256x128xf32> to vector<256x128xbf16>
    %c0_4 = arith.constant 0 : index
    %c0_5 = arith.constant 0 : index
    %7 = vector.load %arg7[%c0_4, %c0_5] : memref<256x128xf32, #tpu.memory_space<vmem>>, vector<256x128xf32>
    %c0_6 = arith.constant 0 : index
    %c0_7 = arith.constant 0 : index
    %8 = vector.load %arg2[%c0_6, %c0_7] : memref<256x256xbf16, #tpu.memory_space<vmem>>, vector<256x256xbf16>
    %cst_8 = arith.constant dense<0.000000e+00> : vector<256x128xf32>
    %9 = tpu.matmul %8, %6, %cst_8 {dimension_numbers = #tpu.dot_dimension_numbers<[1], [0], [0], [1], [0, 0, 1, 1], [], []>} : vector<256x256xbf16>, vector<256x128xbf16>, vector<256x128xf32> -> vector<256x128xf32>
    %10 = arith.addf %7, %9 : vector<256x128xf32>
    %c0_9 = arith.constant 0 : index
    %c0_10 = arith.constant 0 : index
    %11 = vector.load %arg7[%c0_9, %c0_10] : memref<256x128xf32, #tpu.memory_space<vmem>>, vector<256x128xf32>
    tpu.vector_store %arg7[%c0_9, %c0_10], %10 {strides = array<i32>} : memref<256x128xf32, #tpu.memory_space<vmem>>, vector<256x128xf32>,
    %c0_i32_11 = arith.constant 0 : i32
    %12 = arith.cmpi eq, %arg1, %c0_i32_11 : i32
    %13 = arith.extui %12 : i1 to i32
    %c0_i32_12 = arith.constant 0 : i32
    %14 = arith.cmpi ne, %13, %c0_i32_12 : i32
    scf.if %14 {
      %c0_13 = arith.constant 0 : index
      %c0_14 = arith.constant 0 : index
      %15 = vector.load %arg7[%c0_13, %c0_14] : memref<256x128xf32, #tpu.memory_space<vmem>>, vector<256x128xf32>
      %c0_15 = arith.constant 0 : index
      %c0_16 = arith.constant 0 : index
      %16 = vector.load %arg5[%c0_15, %c0_16] : memref<1x128xf32, #tpu.memory_space<vmem>>, vector<1x128xf32>
      %17 = vector.broadcast %16 : vector<1x128xf32> to vector<256x128xf32>
      %18 = arith.addf %15, %17 : vector<256x128xf32>
      %19 = tpu.iota {dimensions = array<i32: 1>} : vector<256x128xi32>
      %c32_i32 = arith.constant 32 : i32
      %20 = vector.broadcast %c32_i32 : i32 to vector<256x128xi32>
      %21 = arith.cmpi slt, %19, %20 : vector<256x128xi32>
      %cst_17 = arith.constant 0.000000e+00 : f32
      %22 = vector.broadcast %cst_17 : f32 to vector<256x128xf32>
      %23 = arith.maximumf %18, %22 : vector<256x128xf32>
      %24 = arith.select %21, %23, %18 : vector<256x128xi1>, vector<256x128xf32>
      %25 = arith.truncf %24 : vector<256x128xf32> to vector<256x128xbf16>
      %c0_18 = arith.constant 0 : index
      %c0_19 = arith.constant 0 : index
      %26 = vector.load %arg6[%c0_18, %c0_19] : memref<256x128xbf16, #tpu.memory_space<vmem>>, vector<256x128xbf16>
      tpu.vector_store %arg6[%c0_18, %c0_19], %25 {strides = array<i32>} : memref<256x128xbf16, #tpu.memory_space<vmem>>, vector<256x128xbf16>,
    } else {
    }
    return
  }
  func.func @transform_0(%arg0: i32, %arg1: i32) -> (i32, i32) {
    %c0_i32 = arith.constant 0 : i32
    return %arg0, %arg1 : i32, i32
  }
  func.func @transform_1(%arg0: i32, %arg1: i32) -> (i32, i32) {
    %c0_i32 = arith.constant 0 : i32
    %c0_i32_0 = arith.constant 0 : i32
    return %arg1, %c0_i32 : i32, i32
  }
  func.func @transform_2(%arg0: i32, %arg1: i32) -> (i32, i32) {
    %c0_i32 = arith.constant 0 : i32
    %c0_i32_0 = arith.constant 0 : i32
    %c0_i32_1 = arith.constant 0 : i32
    return %c0_i32, %c0_i32_0 : i32, i32
  }
  func.func @transform_3(%arg0: i32, %arg1: i32) -> (i32, i32) {
    %c0_i32 = arith.constant 0 : i32
    %c0_i32_0 = arith.constant 0 : i32
    %c0_i32_1 = arith.constant 0 : i32
    return %c0_i32, %c0_i32_0 : i32, i32
  }
  func.func @transform_4(%arg0: i32, %arg1: i32) -> (i32, i32) {
    %c0_i32 = arith.constant 0 : i32
    %c0_i32_0 = arith.constant 0 : i32
    return %arg0, %c0_i32 : i32, i32
  }
}

module attributes {stable_mosaic.version = 11 : i64} {
  func.func @_gcn_kernel(%arg0: i32, %arg1: i32, %arg2: memref<256x256xbf16, #tpu.memory_space<vmem>>, %arg3: memref<256x128xbf16, #tpu.memory_space<vmem>>, %arg4: memref<128x128xbf16, #tpu.memory_space<vmem>>, %arg5: memref<1x128xf32, #tpu.memory_space<vmem>>, %arg6: memref<256x128xf32, #tpu.memory_space<vmem>>, %arg7: memref<256x128xf32, #tpu.memory_space<vmem>>) attributes {dimension_semantics = [#tpu.dimension_semantics<parallel>, #tpu.dimension_semantics<arbitrary>], iteration_bounds = array<i64: 1, 1>, scalar_prefetch = 0 : i64, scratch_operands = 1 : i64, tpu.core_type = #tpu.core_type<tc>, window_params = [{transform_indices = @transform_0, window_bounds = array<i64: 256, 256>}, {transform_indices = @transform_1, window_bounds = array<i64: 256, 128>}, {pipeline_mode = #tpu.pipeline_mode<synchronous>, transform_indices = @transform_2, window_bounds = array<i64: 128, 128>}, {pipeline_mode = #tpu.pipeline_mode<synchronous>, transform_indices = @transform_3, window_bounds = array<i64: 1, 128>}, {transform_indices = @transform_4, window_bounds = array<i64: 256, 128>}]} {
    %c0_i32 = arith.constant 0 : i32
    %0 = arith.cmpi eq, %arg1, %c0_i32 : i32
    %1 = arith.extui %0 : i1 to i32
    %c0_i32_0 = arith.constant 0 : i32
    %2 = arith.cmpi ne, %1, %c0_i32_0 : i32
    scf.if %2 {
      %cst_13 = arith.constant 0.000000e+00 : f32
      %15 = vector.broadcast %cst_13 : f32 to vector<256x128xf32>
      %c0_14 = arith.constant 0 : index
      %c0_15 = arith.constant 0 : index
      %16 = vector.load %arg7[%c0_14, %c0_15] : memref<256x128xf32, #tpu.memory_space<vmem>>, vector<256x128xf32>
      tpu.vector_store %arg7[%c0_14, %c0_15], %15 {strides = array<i32>} : memref<256x128xf32, #tpu.memory_space<vmem>>, vector<256x128xf32>,
    } else {
    }
    %c0 = arith.constant 0 : index
    %c0_1 = arith.constant 0 : index
    %3 = vector.load %arg3[%c0, %c0_1] : memref<256x128xbf16, #tpu.memory_space<vmem>>, vector<256x128xbf16>
    %c0_2 = arith.constant 0 : index
    %c0_3 = arith.constant 0 : index
    %4 = vector.load %arg4[%c0_2, %c0_3] : memref<128x128xbf16, #tpu.memory_space<vmem>>, vector<128x128xbf16>
    %cst = arith.constant dense<0.000000e+00> : vector<256x128xf32>
    %5 = tpu.matmul %3, %4, %cst {dimension_numbers = #tpu.dot_dimension_numbers<[1], [0], [0], [1], [0, 0, 1, 1], [], []>} : vector<256x128xbf16>, vector<128x128xbf16>, vector<256x128xf32> -> vector<256x128xf32>
    %6 = arith.truncf %5 : vector<256x128xf32> to vector<256x128xbf16>
    %c0_4 = arith.constant 0 : index
    %c0_5 = arith.constant 0 : index
    %7 = vector.load %arg7[%c0_4, %c0_5] : memref<256x128xf32, #tpu.memory_space<vmem>>, vector<256x128xf32>
    %c0_6 = arith.constant 0 : index
    %c0_7 = arith.constant 0 : index
    %8 = vector.load %arg2[%c0_6, %c0_7] : memref<256x256xbf16, #tpu.memory_space<vmem>>, vector<256x256xbf16>
    %cst_8 = arith.constant dense<0.000000e+00> : vector<256x128xf32>
    %9 = tpu.matmul %8, %6, %cst_8 {dimension_numbers = #tpu.dot_dimension_numbers<[1], [0], [0], [1], [0, 0, 1, 1], [], []>} : vector<256x256xbf16>, vector<256x128xbf16>, vector<256x128xf32> -> vector<256x128xf32>
    %10 = arith.addf %7, %9 : vector<256x128xf32>
    %c0_9 = arith.constant 0 : index
    %c0_10 = arith.constant 0 : index
    %11 = vector.load %arg7[%c0_9, %c0_10] : memref<256x128xf32, #tpu.memory_space<vmem>>, vector<256x128xf32>
    tpu.vector_store %arg7[%c0_9, %c0_10], %10 {strides = array<i32>} : memref<256x128xf32, #tpu.memory_space<vmem>>, vector<256x128xf32>,
    %c0_i32_11 = arith.constant 0 : i32
    %12 = arith.cmpi eq, %arg1, %c0_i32_11 : i32
    %13 = arith.extui %12 : i1 to i32
    %c0_i32_12 = arith.constant 0 : i32
    %14 = arith.cmpi ne, %13, %c0_i32_12 : i32
    scf.if %14 {
      %c0_13 = arith.constant 0 : index
      %c0_14 = arith.constant 0 : index
      %15 = vector.load %arg7[%c0_13, %c0_14] : memref<256x128xf32, #tpu.memory_space<vmem>>, vector<256x128xf32>
      %c0_15 = arith.constant 0 : index
      %c0_16 = arith.constant 0 : index
      %16 = vector.load %arg5[%c0_15, %c0_16] : memref<1x128xf32, #tpu.memory_space<vmem>>, vector<1x128xf32>
      %17 = vector.broadcast %16 : vector<1x128xf32> to vector<256x128xf32>
      %18 = arith.addf %15, %17 : vector<256x128xf32>
      %c0_17 = arith.constant 0 : index
      %c0_18 = arith.constant 0 : index
      %19 = vector.load %arg6[%c0_17, %c0_18] : memref<256x128xf32, #tpu.memory_space<vmem>>, vector<256x128xf32>
      tpu.vector_store %arg6[%c0_17, %c0_18], %18 {strides = array<i32>} : memref<256x128xf32, #tpu.memory_space<vmem>>, vector<256x128xf32>,
    } else {
    }
    return
  }
  func.func @transform_0(%arg0: i32, %arg1: i32) -> (i32, i32) {
    %c0_i32 = arith.constant 0 : i32
    return %arg0, %arg1 : i32, i32
  }
  func.func @transform_1(%arg0: i32, %arg1: i32) -> (i32, i32) {
    %c0_i32 = arith.constant 0 : i32
    %c0_i32_0 = arith.constant 0 : i32
    return %arg1, %c0_i32 : i32, i32
  }
  func.func @transform_2(%arg0: i32, %arg1: i32) -> (i32, i32) {
    %c0_i32 = arith.constant 0 : i32
    %c0_i32_0 = arith.constant 0 : i32
    %c0_i32_1 = arith.constant 0 : i32
    return %c0_i32, %c0_i32_0 : i32, i32
  }
  func.func @transform_3(%arg0: i32, %arg1: i32) -> (i32, i32) {
    %c0_i32 = arith.constant 0 : i32
    %c0_i32_0 = arith.constant 0 : i32
    %c0_i32_1 = arith.constant 0 : i32
    return %c0_i32, %c0_i32_0 : i32, i32
  }
  func.func @transform_4(%arg0: i32, %arg1: i32) -> (i32, i32) {
    %c0_i32 = arith.constant 0 : i32
    %c0_i32_0 = arith.constant 0 : i32
    return %arg0, %c0_i32 : i32, i32
  }
}

module attributes {stable_mosaic.version = 11 : i64} {
  func.func @_gram_kernel(%arg0: i32, %arg1: i32, %arg2: memref<256x64xbf16, #tpu.memory_space<vmem>>, %arg3: memref<256x64xbf16, #tpu.memory_space<vmem>>, %arg4: memref<256x256xf32, #tpu.memory_space<vmem>>) attributes {dimension_semantics = [#tpu.dimension_semantics<parallel>, #tpu.dimension_semantics<parallel>], iteration_bounds = array<i64: 1, 1>, scalar_prefetch = 0 : i64, scratch_operands = 0 : i64, tpu.core_type = #tpu.core_type<tc>, window_params = [{transform_indices = @transform_0, window_bounds = array<i64: 256, 64>}, {transform_indices = @transform_1, window_bounds = array<i64: 256, 64>}, {transform_indices = @transform_2, window_bounds = array<i64: 256, 256>}]} {
    %c0 = arith.constant 0 : index
    %c0_0 = arith.constant 0 : index
    %0 = vector.load %arg2[%c0, %c0_0] : memref<256x64xbf16, #tpu.memory_space<vmem>>, vector<256x64xbf16>
    %c0_1 = arith.constant 0 : index
    %c0_2 = arith.constant 0 : index
    %1 = vector.load %arg3[%c0_1, %c0_2] : memref<256x64xbf16, #tpu.memory_space<vmem>>, vector<256x64xbf16>
    %cst = arith.constant dense<0.000000e+00> : vector<256x256xf32>
    %2 = tpu.matmul %0, %1, %cst {dimension_numbers = #tpu.dot_dimension_numbers<[1], [1], [0], [0], [0, 0, 1, 0], [], []>} : vector<256x64xbf16>, vector<256x64xbf16>, vector<256x256xf32> -> vector<256x256xf32>
    %c0_3 = arith.constant 0 : index
    %c0_4 = arith.constant 0 : index
    %3 = vector.load %arg4[%c0_3, %c0_4] : memref<256x256xf32, #tpu.memory_space<vmem>>, vector<256x256xf32>
    tpu.vector_store %arg4[%c0_3, %c0_4], %2 {strides = array<i32>} : memref<256x256xf32, #tpu.memory_space<vmem>>, vector<256x256xf32>,
    return
  }
  func.func @transform_0(%arg0: i32, %arg1: i32) -> (i32, i32) {
    %c0_i32 = arith.constant 0 : i32
    %c0_i32_0 = arith.constant 0 : i32
    return %arg0, %c0_i32 : i32, i32
  }
  func.func @transform_1(%arg0: i32, %arg1: i32) -> (i32, i32) {
    %c0_i32 = arith.constant 0 : i32
    %c0_i32_0 = arith.constant 0 : i32
    return %arg1, %c0_i32 : i32, i32
  }
  func.func @transform_2(%arg0: i32, %arg1: i32) -> (i32, i32) {
    %c0_i32 = arith.constant 0 : i32
    return %arg0, %arg1 : i32, i32
  }
}

</mosaic_0001>

<llo_original>
// kernel: dominant_forward.8
$region0: #{dominant_forward.8}
  #allocation0 [shape = 'u32[]', space=smem, size = 0x4, offset = 0x4, fixed_abs, tag = 'smem constant byte address 0x4 - core index']
  #allocation1 [shape = 'u32[144,128]{1,0:T(1,128)}', space=vmem, size = 0x12000, scoped, tag = 'internal scratch']
  #allocation2 [shape = 'f32[256,128]{1,0:T(8,128)}', space=vmem, size = 0x20000, scoped, tag = 'scratch operand']
  %s0 = inlined_call_operand.vmem [shape: bf16[256,256], index: 0, kind: input, shape index: {}]
  %s1 = inlined_call_operand.vmem [shape: bf16[256,128], index: 1, kind: input, shape index: {}]
  %s2 = inlined_call_operand.vmem [shape: bf16[128,128], index: 2, kind: input, shape index: {}]
  %s3 = inlined_call_operand.vmem [shape: f32[1,128], index: 3, kind: input, shape index: {}]
  %s4 = inlined_call_operand.vmem [shape: f32[256,128], index: 4, kind: output, shape index: {}]
  %s5 = sld [smem:[#allocation0]]
  $region34: #{dominant_forward.8} parent=0
    _
  %s7 = ssub.s32 1, %s5
  %s8 = scalar_select 0, %s7, %s5
  // Predicated region
  $region2: #{dominant_forward.8} parent=0 // pred_check
    _
  $region3: #{dominant_forward.8} parent=0 // pred_check_branch
    %10 = sbr.rel (0) target = $region5
  $region4: #{dominant_forward.8} parent=0 // pred_region
    _
  $region5: #{dominant_forward.8} parent=0 // pred_fallthru
    _
  // Predicated region
  $region6: #{dominant_forward.8} parent=0 // pred_check
    _
  $region7: #{dominant_forward.8} parent=0 // pred_check_branch
    %12 = sbr.rel (0) target = $region9
  $region8: #{dominant_forward.8} parent=0 // pred_region
    _
  $region9: #{dominant_forward.8} parent=0 // pred_fallthru
    _
  // Predicated region
  $region10: #{dominant_forward.8} parent=0 // pred_check
    _
  $region11: #{dominant_forward.8} parent=0 // pred_check_branch
    %14 = sbr.rel (0) target = $region13
  $region12: #{dominant_forward.8} parent=0 // pred_region
    _
  $region13: #{dominant_forward.8} parent=0 // pred_fallthru
    _
  // Predicated region
  $region14: #{dominant_forward.8} parent=0 // pred_check
    _
  $region15: #{dominant_forward.8} parent=0 // pred_check_branch
    %16 = sbr.rel (0) target = $region17
  $region16: #{dominant_forward.8} parent=0 // pred_region
    _
  $region17: #{dominant_forward.8} parent=0 // pred_fallthru
    _
  %p18 = scmp.eq.s32.totalorder 0, 0
  // Predicated region
  $region18: #{dominant_forward.8} parent=0 // pred_check
    %p19 = pneg %p18
  $region19: #{dominant_forward.8} parent=0 // pred_check_branch
    %21 = sbr.rel (%p19) target = $region21
  $region20: #{dominant_forward.8} parent=0 // pred_region
    %22 = vst [vmem:[#allocation2] sm:$0xff] 0.0
    %23 = vst [vmem:[#allocation2 + $0x8] sm:$0xff] 0.0
    %24 = vst [vmem:[#allocation2 + $0x10] sm:$0xff] 0.0
    %25 = vst [vmem:[#allocation2 + $0x18] sm:$0xff] 0.0
    %26 = vst [vmem:[#allocation2 + $0x20] sm:$0xff] 0.0
    %27 = vst [vmem:[#allocation2 + $0x28] sm:$0xff] 0.0
    %28 = vst [vmem:[#allocation2 + $0x30] sm:$0xff] 0.0
    %29 = vst [vmem:[#allocation2 + $0x38] sm:$0xff] 0.0
    %30 = vst [vmem:[#allocation2 + $0x40] sm:$0xff] 0.0
    %31 = vst [vmem:[#allocation2 + $0x48] sm:$0xff] 0.0
    %32 = vst [vmem:[#allocation2 + $0x50] sm:$0xff] 0.0
    %33 = vst [vmem:[#allocation2 + $0x58] sm:$0xff] 0.0
    %34 = vst [vmem:[#allocation2 + $0x60] sm:$0xff] 0.0
    %35 = vst [vmem:[#allocation2 + $0x68] sm:$0xff] 0.0
    %36 = vst [vmem:[#allocation2 + $0x70] sm:$0xff] 0.0
    %37 = vst [vmem:[#allocation2 + $0x78] sm:$0xff] 0.0
    %38 = vst [vmem:[#allocation2 + $0x80] sm:$0xff] 0.0
    %39 = vst [vmem:[#allocation2 + $0x88] sm:$0xff] 0.0
    %40 = vst [vmem:[#allocation2 + $0x90] sm:$0xff] 0.0
    %41 = vst [vmem:[#allocation2 + $0x98] sm:$0xff] 0.0
    %42 = vst [vmem:[#allocation2 + $0xa0] sm:$0xff] 0.0
    %43 = vst [vmem:[#allocation2 + $0xa8] sm:$0xff] 0.0
    %44 = vst [vmem:[#allocation2 + $0xb0] sm:$0xff] 0.0
    %45 = vst [vmem:[#allocation2 + $0xb8] sm:$0xff] 0.0
    %46 = vst [vmem:[#allocation2 + $0xc0] sm:$0xff] 0.0
    %47 = vst [vmem:[#allocation2 + $0xc8] sm:$0xff] 0.0
    %48 = vst [vmem:[#allocation2 + $0xd0] sm:$0xff] 0.0
    %49 = vst [vmem:[#allocation2 + $0xd8] sm:$0xff] 0.0
    %50 = vst [vmem:[#allocation2 + $0xe0] sm:$0xff] 0.0
    %51 = vst [vmem:[#allocation2 + $0xe8] sm:$0xff] 0.0
    %52 = vst [vmem:[#allocation2 + $0xf0] sm:$0xff] 0.0
    %53 = vst [vmem:[#allocation2 + $0xf8] sm:$0xff] 0.0
  $region21: #{dominant_forward.8} parent=0 // pred_fallthru
    _
  %v54 = vld [vmem:[%s1] sm:$0xf]
  %v55 = vld [vmem:[%s1 + $0x4] sm:$0xf]
  %v56 = vld [vmem:[%s1 + $0x8] sm:$0xf]
  %v57 = vld [vmem:[%s1 + $0xc] sm:$0xf]
  %v58 = vld [vmem:[%s1 + $0x10] sm:$0xf]
  %v59 = vld [vmem:[%s1 + $0x14] sm:$0xf]
  %v60 = vld [vmem:[%s1 + $0x18] sm:$0xf]
  %v61 = vld [vmem:[%s1 + $0x1c] sm:$0xf]
  %v62 = vld [vmem:[%s1 + $0x20] sm:$0xf]
  %v63 = vld [vmem:[%s1 + $0x24] sm:$0xf]
  %v64 = vld [vmem:[%s1 + $0x28] sm:$0xf]
  %v65 = vld [vmem:[%s1 + $0x2c] sm:$0xf]
  %v66 = vld [vmem:[%s1 + $0x30] sm:$0xf]
  %v67 = vld [vmem:[%s1 + $0x34] sm:$0xf]
  %v68 = vld [vmem:[%s1 + $0x38] sm:$0xf]
  %v69 = vld [vmem:[%s1 + $0x3c] sm:$0xf]
  %v70 = vld [vmem:[%s1 + $0x40] sm:$0xf]
  %v71 = vld [vmem:[%s1 + $0x44] sm:$0xf]
  %v72 = vld [vmem:[%s1 + $0x48] sm:$0xf]
  %v73 = vld [vmem:[%s1 + $0x4c] sm:$0xf]
  %v74 = vld [vmem:[%s1 + $0x50] sm:$0xf]
  %v75 = vld [vmem:[%s1 + $0x54] sm:$0xf]
  %v76 = vld [vmem:[%s1 + $0x58] sm:$0xf]
  %v77 = vld [vmem:[%s1 + $0x5c] sm:$0xf]
  %v78 = vld [vmem:[%s1 + $0x60] sm:$0xf]
  %v79 = vld [vmem:[%s1 + $0x64] sm:$0xf]
  %v80 = vld [vmem:[%s1 + $0x68] sm:$0xf]
  %v81 = vld [vmem:[%s1 + $0x6c] sm:$0xf]
  %v82 = vld [vmem:[%s1 + $0x70] sm:$0xf]
  %v83 = vld [vmem:[%s1 + $0x74] sm:$0xf]
  %v84 = vld [vmem:[%s1 + $0x78] sm:$0xf]
  %v85 = vld [vmem:[%s1 + $0x7c] sm:$0xf]
  %v86 = vld [vmem:[%s2] sm:$0xf]
  %v87 = vld [vmem:[%s2 + $0x4] sm:$0xf]
  %v88 = vld [vmem:[%s2 + $0x8] sm:$0xf]
  %v89 = vld [vmem:[%s2 + $0xc] sm:$0xf]
  %v90 = vld [vmem:[%s2 + $0x10] sm:$0xf]
  %v91 = vld [vmem:[%s2 + $0x14] sm:$0xf]
  %v92 = vld [vmem:[%s2 + $0x18] sm:$0xf]
  %v93 = vld [vmem:[%s2 + $0x1c] sm:$0xf]
  %v94 = vld [vmem:[%s2 + $0x20] sm:$0xf]
  %v95 = vld [vmem:[%s2 + $0x24] sm:$0xf]
  %v96 = vld [vmem:[%s2 + $0x28] sm:$0xf]
  %v97 = vld [vmem:[%s2 + $0x2c] sm:$0xf]
  %v98 = vld [vmem:[%s2 + $0x30] sm:$0xf]
  %v99 = vld [vmem:[%s2 + $0x34] sm:$0xf]
  %v100 = vld [vmem:[%s2 + $0x38] sm:$0xf]
  %v101 = vld [vmem:[%s2 + $0x3c] sm:$0xf]
  %v134 = vunpack.c.l.b16 %v54
  %v135 = vunpack.c.l.b16 %v55
  %v136 = vunpack.c.l.b16 %v56
  %v137 = vunpack.c.l.b16 %v57
  %v138 = vunpack.c.l.b16 %v58
  %v139 = vunpack.c.l.b16 %v59
  %v140 = vunpack.c.l.b16 %v60
  %v141 = vunpack.c.l.b16 %v61
  %v142 = vunpack.c.l.b16 %v62
  %v143 = vunpack.c.l.b16 %v63
  %v144 = vunpack.c.l.b16 %v64
  %v145 = vunpack.c.l.b16 %v65
  %v146 = vunpack.c.l.b16 %v66
  %v147 = vunpack.c.l.b16 %v67
  %v148 = vunpack.c.l.b16 %v68
  %v149 = vunpack.c.l.b16 %v69
  %v150 = vunpack.c.l.b16 %v70
  %v151 = vunpack.c.l.b16 %v71
  %v152 = vunpack.c.l.b16 %v72
  %v153 = vunpack.c.l.b16 %v73
  %v154 = vunpack.c.l.b16 %v74
  %v155 = vunpack.c.l.b16 %v75
  %v156 = vunpack.c.l.b16 %v76
  %v157 = vunpack.c.l.b16 %v77
  %v158 = vunpack.c.l.b16 %v78
  %v159 = vunpack.c.l.b16 %v79
  %v160 = vunpack.c.l.b16 %v80
  %v161 = vunpack.c.l.b16 %v81
  %v162 = vunpack.c.l.b16 %v82
  %v163 = vunpack.c.l.b16 %v83
  %v164 = vunpack.c.l.b16 %v84
  %v165 = vunpack.c.l.b16 %v85
  %v166 = vpack.c.b16 %v135, %v134
  %v167 = vpack.c.b16 %v137, %v136
  %v168 = vpack.c.b16 %v139, %v138
  %v169 = vpack.c.b16 %v141, %v140
  %v170 = vpack.c.b16 %v143, %v142
  %v171 = vpack.c.b16 %v145, %v144
  %v172 = vpack.c.b16 %v147, %v146
  %v173 = vpack.c.b16 %v149, %v148
  %v174 = vpack.c.b16 %v151, %v150
  %v175 = vpack.c.b16 %v153, %v152
  %v176 = vpack.c.b16 %v155, %v154
  %v177 = vpack.c.b16 %v157, %v156
  %v178 = vpack.c.b16 %v159, %v158
  %v179 = vpack.c.b16 %v161, %v160
  %v180 = vpack.c.b16 %v163, %v162
  %v181 = vpack.c.b16 %v165, %v164
  %v214 = vunpack.c.l.b16 %v86
  %v215 = vunpack.c.l.b16 %v87
  %v216 = vunpack.c.l.b16 %v88
  %v217 = vunpack.c.l.b16 %v89
  %v218 = vunpack.c.l.b16 %v90
  %v219 = vunpack.c.l.b16 %v91
  %v220 = vunpack.c.l.b16 %v92
  %v221 = vunpack.c.l.b16 %v93
  %v222 = vunpack.c.l.b16 %v94
  %v223 = vunpack.c.l.b16 %v95
  %v224 = vunpack.c.l.b16 %v96
  %v225 = vunpack.c.l.b16 %v97
  %v226 = vunpack.c.l.b16 %v98
  %v227 = vunpack.c.l.b16 %v99
  %v228 = vunpack.c.l.b16 %v100
  %v229 = vunpack.c.l.b16 %v101
  %v230 = vpack.c.b16 %v215, %v214
  %v231 = vpack.c.b16 %v217, %v216
  %v232 = vpack.c.b16 %v219, %v218
  %v233 = vpack.c.b16 %v221, %v220
  %v234 = vpack.c.b16 %v223, %v222
  %v235 = vpack.c.b16 %v225, %v224
  %v236 = vpack.c.b16 %v227, %v226
  %v237 = vpack.c.b16 %v229, %v228
  %246 = vmatprep.subr.bf16.mxu0 0
  %247 = vmatpush1.bf16.msra.mxu0 %v230
  %248 = vmatprep.subr.bf16.mxu0 0
  %249 = vmatpush1.bf16.msra.mxu0 %v231
  %250 = vmatprep.subr.bf16.mxu0 0
  %251 = vmatpush1.bf16.msra.mxu0 %v232
  %252 = vmatprep.subr.bf16.mxu0 0
  %253 = vmatpush1.bf16.msra.mxu0 %v233
  %254 = vmatprep.subr.bf16.mxu0 0
  %255 = vmatpush1.bf16.msra.mxu0 %v234
  %256 = vmatprep.subr.bf16.mxu0 0
  %257 = vmatpush1.bf16.msra.mxu0 %v235
  %258 = vmatprep.subr.bf16.mxu0 0
  %259 = vmatpush1.bf16.msra.mxu0 %v236
  %260 = vmatprep.subr.bf16.mxu0 0
  %261 = vmatpush1.bf16.msra.mxu0 %v237
  %262 = vmatprep.subr.bf16.mxu0 0
  %263 = vmatpush1.bf16.msra.mxu0 0
  %264 = vmatprep.subr.bf16.mxu0 0
  %265 = vmatpush1.bf16.msra.mxu0 0
  %266 = vmatprep.subr.bf16.mxu0 0
  %267 = vmatpush1.bf16.msra.mxu0 0
  %268 = vmatprep.subr.bf16.mxu0 0
  %269 = vmatpush1.bf16.msra.mxu0 0
  %270 = vmatprep.subr.bf16.mxu0 0
  %271 = vmatpush1.bf16.msra.mxu0 0
  %272 = vmatprep.subr.bf16.mxu0 0
  %273 = vmatpush1.bf16.msra.mxu0 0
  %274 = vmatprep.subr.bf16.mxu0 0
  %275 = vmatpush1.bf16.msra.mxu0 0
  %276 = vmatprep.subr.bf16.mxu0 0
  %277 = vmatpush1.bf16.msra.mxu0 0
  %278 = vmatprep.mubr.bf16.mxu0 0
  %279 = vmatmul.mubr.bf16.gmra.mrb[0].mxu0 %v166
  %v280 = vpop.f32.mrb[0].mxu0
  %v281 = vadd.f32 0.0, %v280
  %v282 = vpop.f32.mrb[0].mxu0
  %v283 = vpop.f32.mrb[0].mxu0
  %v284 = vadd.f32 0.0, %v283
  %v285 = vpop.f32.mrb[0].mxu0
  %286 = vmatprep.mubr.bf16.mxu0 0
  %287 = vmatmul.mubr.bf16.gmra.mrb[0].mxu0 %v167
  %v288 = vpop.f32.mrb[0].mxu0
  %v289 = vadd.f32 0.0, %v288
  %v290 = vpop.f32.mrb[0].mxu0
  %v291 = vpop.f32.mrb[0].mxu0
  %v292 = vadd.f32 0.0, %v291
  %v293 = vpop.f32.mrb[0].mxu0
  %294 = vmatprep.mubr.bf16.mxu0 0
  %295 = vmatmul.mubr.bf16.gmra.mrb[0].mxu0 %v168
  %v296 = vpop.f32.mrb[0].mxu0
  %v297 = vadd.f32 0.0, %v296
  %v298 = vpop.f32.mrb[0].mxu0
  %v299 = vpop.f32.mrb[0].mxu0
  %v300 = vadd.f32 0.0, %v299
  %v301 = vpop.f32.mrb[0].mxu0
  %302 = vmatprep.mubr.bf16.mxu0 0
  %303 = vmatmul.mubr.bf16.gmra.mrb[0].mxu0 %v169
  %v304 = vpop.f32.mrb[0].mxu0
  %v305 = vadd.f32 0.0, %v304
  %v306 = vpop.f32.mrb[0].mxu0
  %v307 = vpop.f32.mrb[0].mxu0
  %v308 = vadd.f32 0.0, %v307
  %v309 = vpop.f32.mrb[0].mxu0
  %310 = vmatprep.mubr.bf16.mxu0 0
  %311 = vmatmul.mubr.bf16.gmra.mrb[0].mxu0 %v170
  %v312 = vpop.f32.mrb[0].mxu0
  %v313 = vadd.f32 0.0, %v312
  %v314 = vpop.f32.mrb[0].mxu0
  %v315 = vpop.f32.mrb[0].mxu0
  %v316 = vadd.f32 0.0, %v315
  %v317 = vpop.f32.mrb[0].mxu0
  %318 = vmatprep.mubr.bf16.mxu0 0
  %319 = vmatmul.mubr.bf16.gmra.mrb[0].mxu0 %v171
  %v320 = vpop.f32.mrb[0].mxu0
  %v321 = vadd.f32 0.0, %v320
  %v322 = vpop.f32.mrb[0].mxu0
  %v323 = vpop.f32.mrb[0].mxu0
  %v324 = vadd.f32 0.0, %v323
  %v325 = vpop.f32.mrb[0].mxu0
  %326 = vmatprep.mubr.bf16.mxu0 0
  %327 = vmatmul.mubr.bf16.gmra.mrb[0].mxu0 %v172
  %v328 = vpop.f32.mrb[0].mxu0
  %v329 = vadd.f32 0.0, %v328
  %v330 = vpop.f32.mrb[0].mxu0
  %v331 = vpop.f32.mrb[0].mxu0
  %v332 = vadd.f32 0.0, %v331
  %v333 = vpop.f32.mrb[0].mxu0
  %334 = vmatprep.mubr.bf16.mxu0 0
  %335 = vmatmul.mubr.bf16.gmra.mrb[0].mxu0 %v173
  %v336 = vpop.f32.mrb[0].mxu0
  %v337 = vadd.f32 0.0, %v336
  %v338 = vpop.f32.mrb[0].mxu0
  %v339 = vpop.f32.mrb[0].mxu0
  %v340 = vadd.f32 0.0, %v339
  %v341 = vpop.f32.mrb[0].mxu0
  %342 = vmatprep.mubr.bf16.mxu0 0
  %343 = vmatmul.mubr.bf16.gmra.mrb[0].mxu0 %v174
  %v344 = vpop.f32.mrb[0].mxu0
  %v345 = vadd.f32 0.0, %v344
  %v346 = vpop.f32.mrb[0].mxu0
  %v347 = vpop.f32.mrb[0].mxu0
  %v348 = vadd.f32 0.0, %v347
  %v349 = vpop.f32.mrb[0].mxu0
  %350 = vmatprep.mubr.bf16.mxu0 0
  %351 = vmatmul.mubr.bf16.gmra.mrb[0].mxu0 %v175
  %v352 = vpop.f32.mrb[0].mxu0
  %v353 = vadd.f32 0.0, %v352
  %v354 = vpop.f32.mrb[0].mxu0
  %v355 = vpop.f32.mrb[0].mxu0
  %v356 = vadd.f32 0.0, %v355
  %v357 = vpop.f32.mrb[0].mxu0
  %358 = vmatprep.mubr.bf16.mxu0 0
  %359 = vmatmul.mubr.bf16.gmra.mrb[0].mxu0 %v176
  %v360 = vpop.f32.mrb[0].mxu0
  %v361 = vadd.f32 0.0, %v360
  %v362 = vpop.f32.mrb[0].mxu0
  %v363 = vpop.f32.mrb[0].mxu0
  %v364 = vadd.f32 0.0, %v363
  %v365 = vpop.f32.mrb[0].mxu0
  %366 = vmatprep.mubr.bf16.mxu0 0
  %367 = vmatmul.mubr.bf16.gmra.mrb[0].mxu0 %v177
  %v368 = vpop.f32.mrb[0].mxu0
  %v369 = vadd.f32 0.0, %v368
  %v370 = vpop.f32.mrb[0].mxu0
  %v371 = vpop.f32.mrb[0].mxu0
  %v372 = vadd.f32 0.0, %v371
  %v373 = vpop.f32.mrb[0].mxu0
  %374 = vmatprep.mubr.bf16.mxu0 0
  %375 = vmatmul.mubr.bf16.gmra.mrb[0].mxu0 %v178
  %v376 = vpop.f32.mrb[0].mxu0
  %v377 = vadd.f32 0.0, %v376
  %v378 = vpop.f32.mrb[0].mxu0
  %v379 = vpop.f32.mrb[0].mxu0
  %v380 = vadd.f32 0.0, %v379
  %v381 = vpop.f32.mrb[0].mxu0
  %382 = vmatprep.mubr.bf16.mxu0 0
  %383 = vmatmul.mubr.bf16.gmra.mrb[0].mxu0 %v179
  %v384 = vpop.f32.mrb[0].mxu0
  %v385 = vadd.f32 0.0, %v384
  %v386 = vpop.f32.mrb[0].mxu0
  %v387 = vpop.f32.mrb[0].mxu0
  %v388 = vadd.f32 0.0, %v387
  %v389 = vpop.f32.mrb[0].mxu0
  %390 = vmatprep.mubr.bf16.mxu0 0
  %391 = vmatmul.mubr.bf16.gmra.mrb[0].mxu0 %v180
  %v392 = vpop.f32.mrb[0].mxu0
  %v393 = vadd.f32 0.0, %v392
  %v394 = vpop.f32.mrb[0].mxu0
  %v395 = vpop.f32.mrb[0].mxu0
  %v396 = vadd.f32 0.0, %v395
  %v397 = vpop.f32.mrb[0].mxu0
  %398 = vmatprep.mubr.bf16.mxu0 0
  %399 = vmatmul.mubr.bf16.gmra.mrb[0].mxu0 %v181
  %v400 = vpop.f32.mrb[0].mxu0
  %v401 = vadd.f32 0.0, %v400
  %v402 = vpop.f32.mrb[0].mxu0
  %v403 = vpop.f32.mrb[0].mxu0
  %v404 = vadd.f32 0.0, %v403
  %v405 = vpop.f32.mrb[0].mxu0
  %406 = vdwg.mxu0
  %v407 = vpack.c.bf16 %v284, %v281
  %v408 = vpack.c.bf16 %v292, %v289
  %v409 = vpack.c.bf16 %v300, %v297
  %v410 = vpack.c.bf16 %v308, %v305
  %v411 = vpack.c.bf16 %v316, %v313
  %v412 = vpack.c.bf16 %v324, %v321
  %v413 = vpack.c.bf16 %v332, %v329
  %v414 = vpack.c.bf16 %v340, %v337
  %v415 = vpack.c.bf16 %v348, %v345
  %v416 = vpack.c.bf16 %v356, %v353
  %v417 = vpack.c.bf16 %v364, %v361
  %v418 = vpack.c.bf16 %v372, %v369
  %v419 = vpack.c.bf16 %v380, %v377
  %v420 = vpack.c.bf16 %v388, %v385
  %v421 = vpack.c.bf16 %v396, %v393
  %v422 = vpack.c.bf16 %v404, %v401
  %v423 = vld [vmem:[#allocation2] sm:$0xff]
  %v424 = vld [vmem:[#allocation2 + $0x8] sm:$0xff]
  %v425 = vld [vmem:[#allocation2 + $0x10] sm:$0xff]
  %v426 = vld [vmem:[#allocation2 + $0x18] sm:$0xff]
  %v427 = vld [vmem:[#allocation2 + $0x20] sm:$0xff]
  %v428 = vld [vmem:[#allocation2 + $0x28] sm:$0xff]
  %v429 = vld [vmem:[#allocation2 + $0x30] sm:$0xff]
  %v430 = vld [vmem:[#allocation2 + $0x38] sm:$0xff]
  %v431 = vld [vmem:[#allocation2 + $0x40] sm:$0xff]
  %v432 = vld [vmem:[#allocation2 + $0x48] sm:$0xff]
  %v433 = vld [vmem:[#allocation2 + $0x50] sm:$0xff]
  %v434 = vld [vmem:[#allocation2 + $0x58] sm:$0xff]
  %v435 = vld [vmem:[#allocation2 + $0x60] sm:$0xff]
  %v436 = vld [vmem:[#allocation2 + $0x68] sm:$0xff]
  %v437 = vld [vmem:[#allocation2 + $0x70] sm:$0xff]
  %v438 = vld [vmem:[#allocation2 + $0x78] sm:$0xff]
  %v439 = vld [vmem:[#allocation2 + $0x80] sm:$0xff]
  %v440 = vld [vmem:[#allocation2 + $0x88] sm:$0xff]
  %v441 = vld [vmem:[#allocation2 + $0x90] sm:$0xff]
  %v442 = vld [vmem:[#allocation2 + $0x98] sm:$0xff]
  %v443 = vld [vmem:[#allocation2 + $0xa0] sm:$0xff]
  %v444 = vld [vmem:[#allocation2 + $0xa8] sm:$0xff]
  %v445 = vld [vmem:[#allocation2 + $0xb0] sm:$0xff]
  %v446 = vld [vmem:[#allocation2 + $0xb8] sm:$0xff]
  %v447 = vld [vmem:[#allocation2 + $0xc0] sm:$0xff]
  %v448 = vld [vmem:[#allocation2 + $0xc8] sm:$0xff]
  %v449 = vld [vmem:[#allocation2 + $0xd0] sm:$0xff]
  %v450 = vld [vmem:[#allocation2 + $0xd8] sm:$0xff]
  %v451 = vld [vmem:[#allocation2 + $0xe0] sm:$0xff]
  %v452 = vld [vmem:[#allocation2 + $0xe8] sm:$0xff]
  %v453 = vld [vmem:[#allocation2 + $0xf0] sm:$0xff]
  %v454 = vld [vmem:[#allocation2 + $0xf8] sm:$0xff]
  %v455 = vld [vmem:[%s0] sm:$0xff]
  %v456 = vld [vmem:[%s0 + $0x8] sm:$0xff]
  %v457 = vld [vmem:[%s0 + $0x10] sm:$0xff]
  %v458 = vld [vmem:[%s0 + $0x18] sm:$0xff]
  %v459 = vld [vmem:[%s0 + $0x20] sm:$0xff]
  %v460 = vld [vmem:[%s0 + $0x28] sm:$0xff]
  %v461 = vld [vmem:[%s0 + $0x30] sm:$0xff]
  %v462 = vld [vmem:[%s0 + $0x38] sm:$0xff]
  %v463 = vld [vmem:[%s0 + $0x40] sm:$0xff]
  %v464 = vld [vmem:[%s0 + $0x48] sm:$0xff]
  %v465 = vld [vmem:[%s0 + $0x50] sm:$0xff]
  %v466 = vld [vmem:[%s0 + $0x58] sm:$0xff]
  %v467 = vld [vmem:[%s0 + $0x60] sm:$0xff]
  %v468 = vld [vmem:[%s0 + $0x68] sm:$0xff]
  %v469 = vld [vmem:[%s0 + $0x70] sm:$0xff]
  %v470 = vld [vmem:[%s0 + $0x78] sm:$0xff]
  %v471 = vld [vmem:[%s0 + $0x80] sm:$0xff]
  %v472 = vld [vmem:[%s0 + $0x88] sm:$0xff]
  %v473 = vld [vmem:[%s0 + $0x90] sm:$0xff]
  %v474 = vld [vmem:[%s0 + $0x98] sm:$0xff]
  %v475 = vld [vmem:[%s0 + $0xa0] sm:$0xff]
  %v476 = vld [vmem:[%s0 + $0xa8] sm:$0xff]
  %v477 = vld [vmem:[%s0 + $0xb0] sm:$0xff]
  %v478 = vld [vmem:[%s0 + $0xb8] sm:$0xff]
  %v479 = vld [vmem:[%s0 + $0xc0] sm:$0xff]
  %v480 = vld [vmem:[%s0 + $0xc8] sm:$0xff]
  %v481 = vld [vmem:[%s0 + $0xd0] sm:$0xff]
  %v482 = vld [vmem:[%s0 + $0xd8] sm:$0xff]
  %v483 = vld [vmem:[%s0 + $0xe0] sm:$0xff]
  %v484 = vld [vmem:[%s0 + $0xe8] sm:$0xff]
  %v485 = vld [vmem:[%s0 + $0xf0] sm:$0xff]
  %v486 = vld [vmem:[%s0 + $0xf8] sm:$0xff]
  %v519 = vunpack.c.l.b16 %v455
  %v520 = vunpack.c.h.b16 %v455
  %v521 = vunpack.c.l.b16 %v456
  %v522 = vunpack.c.h.b16 %v456
  %v523 = vunpack.c.l.b16 %v457
  %v524 = vunpack.c.h.b16 %v457
  %v525 = vunpack.c.l.b16 %v458
  %v526 = vunpack.c.h.b16 %v458
  %v527 = vunpack.c.l.b16 %v459
  %v528 = vunpack.c.h.b16 %v459
  %v529 = vunpack.c.l.b16 %v460
  %v530 = vunpack.c.h.b16 %v460
  %v531 = vunpack.c.l.b16 %v461
  %v532 = vunpack.c.h.b16 %v461
  %v533 = vunpack.c.l.b16 %v462
  %v534 = vunpack.c.h.b16 %v462
  %v535 = vunpack.c.l.b16 %v463
  %v536 = vunpack.c.h.b16 %v463
  %v537 = vunpack.c.l.b16 %v464
  %v538 = vunpack.c.h.b16 %v464
  %v539 = vunpack.c.l.b16 %v465
  %v540 = vunpack.c.h.b16 %v465
  %v541 = vunpack.c.l.b16 %v466
  %v542 = vunpack.c.h.b16 %v466
  %v543 = vunpack.c.l.b16 %v467
  %v544 = vunpack.c.h.b16 %v467
  %v545 = vunpack.c.l.b16 %v468
  %v546 = vunpack.c.h.b16 %v468
  %v547 = vunpack.c.l.b16 %v469
  %v548 = vunpack.c.h.b16 %v469
  %v549 = vunpack.c.l.b16 %v470
  %v550 = vunpack.c.h.b16 %v470
  %v551 = vunpack.c.l.b16 %v471
  %v552 = vunpack.c.h.b16 %v471
  %v553 = vunpack.c.l.b16 %v472
  %v554 = vunpack.c.h.b16 %v472
  %v555 = vunpack.c.l.b16 %v473
  %v556 = vunpack.c.h.b16 %v473
  %v557 = vunpack.c.l.b16 %v474
  %v558 = vunpack.c.h.b16 %v474
  %v559 = vunpack.c.l.b16 %v475
  %v560 = vunpack.c.h.b16 %v475
  %v561 = vunpack.c.l.b16 %v476
  %v562 = vunpack.c.h.b16 %v476
  %v563 = vunpack.c.l.b16 %v477
  %v564 = vunpack.c.h.b16 %v477
  %v565 = vunpack.c.l.b16 %v478
  %v566 = vunpack.c.h.b16 %v478
  %v567 = vunpack.c.l.b16 %v479
  %v568 = vunpack.c.h.b16 %v479
  %v569 = vunpack.c.l.b16 %v480
  %v570 = vunpack.c.h.b16 %v480
  %v571 = vunpack.c.l.b16 %v481
  %v572 = vunpack.c.h.b16 %v481
  %v573 = vunpack.c.l.b16 %v482
  %v574 = vunpack.c.h.b16 %v482
  %v575 = vunpack.c.l.b16 %v483
  %v576 = vunpack.c.h.b16 %v483
  %v577 = vunpack.c.l.b16 %v484
  %v578 = vunpack.c.h.b16 %v484
  %v579 = vunpack.c.l.b16 %v485
  %v580 = vunpack.c.h.b16 %v485
  %v581 = vunpack.c.l.b16 %v486
  %v582 = vunpack.c.h.b16 %v486
  %v583 = vpack.c.b16 %v521, %v519
  %v584 = vpack.c.b16 %v522, %v520
  %v585 = vpack.c.b16 %v525, %v523
  %v586 = vpack.c.b16 %v526, %v524
  %v587 = vpack.c.b16 %v529, %v527
  %v588 = vpack.c.b16 %v530, %v528
  %v589 = vpack.c.b16 %v533, %v531
  %v590 = vpack.c.b16 %v534, %v532
  %v591 = vpack.c.b16 %v537, %v535
  %v592 = vpack.c.b16 %v538, %v536
  %v593 = vpack.c.b16 %v541, %v539
  %v594 = vpack.c.b16 %v542, %v540
  %v595 = vpack.c.b16 %v545, %v543
  %v596 = vpack.c.b16 %v546, %v544
  %v597 = vpack.c.b16 %v549, %v547
  %v598 = vpack.c.b16 %v550, %v548
  %v599 = vpack.c.b16 %v553, %v551
  %v600 = vpack.c.b16 %v554, %v552
  %v601 = vpack.c.b16 %v557, %v555
  %v602 = vpack.c.b16 %v558, %v556
  %v603 = vpack.c.b16 %v561, %v559
  %v604 = vpack.c.b16 %v562, %v560
  %v605 = vpack.c.b16 %v565, %v563
  %v606 = vpack.c.b16 %v566, %v564
  %v607 = vpack.c.b16 %v569, %v567
  %v608 = vpack.c.b16 %v570, %v568
  %v609 = vpack.c.b16 %v573, %v571
  %v610 = vpack.c.b16 %v574, %v572
  %v611 = vpack.c.b16 %v577, %v575
  %v612 = vpack.c.b16 %v578, %v576
  %v613 = vpack.c.b16 %v581, %v579
  %v614 = vpack.c.b16 %v582, %v580
  %647 = vmatprep.subr.bf16.mxu0 0
  %648 = vmatpush1.bf16.msra.mxu0 %v407
  %649 = vmatprep.subr.bf16.mxu0 0
  %650 = vmatpush1.bf16.msra.mxu0 %v408
  %651 = vmatprep.subr.bf16.mxu0 0
  %652 = vmatpush1.bf16.msra.mxu0 %v409
  %653 = vmatprep.subr.bf16.mxu0 0
  %654 = vmatpush1.bf16.msra.mxu0 %v410
  %655 = vmatprep.subr.bf16.mxu0 0
  %656 = vmatpush1.bf16.msra.mxu0 %v411
  %657 = vmatprep.subr.bf16.mxu0 0
  %658 = vmatpush1.bf16.msra.mxu0 %v412
  %659 = vmatprep.subr.bf16.mxu0 0
  %660 = vmatpush1.bf16.msra.mxu0 %v413
  %661 = vmatprep.subr.bf16.mxu0 0
  %662 = vmatpush1.bf16.msra.mxu0 %v414
  %663 = vmatprep.subr.bf16.mxu0 0
  %664 = vmatpush1.bf16.msra.mxu0 %v415
  %665 = vmatprep.subr.bf16.mxu0 0
  %666 = vmatpush1.bf16.msra.mxu0 %v416
  %667 = vmatprep.subr.bf16.mxu0 0
  %668 = vmatpush1.bf16.msra.mxu0 %v417
  %669 = vmatprep.subr.bf16.mxu0 0
  %670 = vmatpush1.bf16.msra.mxu0 %v418
  %671 = vmatprep.subr.bf16.mxu0 0
  %672 = vmatpush1.bf16.msra.mxu0 %v419
  %673 = vmatprep.subr.bf16.mxu0 0
  %674 = vmatpush1.bf16.msra.mxu0 %v420
  %675 = vmatprep.subr.bf16.mxu0 0
  %676 = vmatpush1.bf16.msra.mxu0 %v421
  %677 = vmatprep.subr.bf16.mxu0 0
  %678 = vmatpush1.bf16.msra.mxu0 %v422
  %679 = vmatprep.mubr.bf16.mxu0 %v584
  %680 = vmatmul.mubr.bf16.gmra.mrb[0].mxu0 %v583
  %v681 = vpop.f32.mrb[0].mxu0
  %v682 = vadd.f32 0.0, %v681
  %v683 = vpop.f32.mrb[0].mxu0
  %v684 = vpop.f32.mrb[0].mxu0
  %v685 = vadd.f32 0.0, %v684
  %v686 = vpop.f32.mrb[0].mxu0
  %687 = vmatprep.mubr.bf16.mxu0 %v586
  %688 = vmatmul.mubr.bf16.gmra.mrb[0].mxu0 %v585
  %v689 = vpop.f32.mrb[0].mxu0
  %v690 = vadd.f32 0.0, %v689
  %v691 = vpop.f32.mrb[0].mxu0
  %v692 = vpop.f32.mrb[0].mxu0
  %v693 = vadd.f32 0.0, %v692
  %v694 = vpop.f32.mrb[0].mxu0
  %695 = vmatprep.mubr.bf16.mxu0 %v588
  %696 = vmatmul.mubr.bf16.gmra.mrb[0].mxu0 %v587
  %v697 = vpop.f32.mrb[0].mxu0
  %v698 = vadd.f32 0.0, %v697
  %v699 = vpop.f32.mrb[0].mxu0
  %v700 = vpop.f32.mrb[0].mxu0
  %v701 = vadd.f32 0.0, %v700
  %v702 = vpop.f32.mrb[0].mxu0
  %703 = vmatprep.mubr.bf16.mxu0 %v590
  %704 = vmatmul.mubr.bf16.gmra.mrb[0].mxu0 %v589
  %v705 = vpop.f32.mrb[0].mxu0
  %v706 = vadd.f32 0.0, %v705
  %v707 = vpop.f32.mrb[0].mxu0
  %v708 = vpop.f32.mrb[0].mxu0
  %v709 = vadd.f32 0.0, %v708
  %v710 = vpop.f32.mrb[0].mxu0
  %711 = vmatprep.mubr.bf16.mxu0 %v592
  %712 = vmatmul.mubr.bf16.gmra.mrb[0].mxu0 %v591
  %v713 = vpop.f32.mrb[0].mxu0
  %v714 = vadd.f32 0.0, %v713
  %v715 = vpop.f32.mrb[0].mxu0
  %v716 = vpop.f32.mrb[0].mxu0
  %v717 = vadd.f32 0.0, %v716
  %v718 = vpop.f32.mrb[0].mxu0
  %719 = vmatprep.mubr.bf16.mxu0 %v594
  %720 = vmatmul.mubr.bf16.gmra.mrb[0].mxu0 %v593
  %v721 = vpop.f32.mrb[0].mxu0
  %v722 = vadd.f32 0.0, %v721
  %v723 = vpop.f32.mrb[0].mxu0
  %v724 = vpop.f32.mrb[0].mxu0
  %v725 = vadd.f32 0.0, %v724
  %v726 = vpop.f32.mrb[0].mxu0
  %727 = vmatprep.mubr.bf16.mxu0 %v596
  %728 = vmatmul.mubr.bf16.gmra.mrb[0].mxu0 %v595
  %v729 = vpop.f32.mrb[0].mxu0
  %v730 = vadd.f32 0.0, %v729
  %v731 = vpop.f32.mrb[0].mxu0
  %v732 = vpop.f32.mrb[0].mxu0
  %v733 = vadd.f32 0.0, %v732
  %v734 = vpop.f32.mrb[0].mxu0
  %735 = vmatprep.mubr.bf16.mxu0 %v598
  %736 = vmatmul.mubr.bf16.gmra.mrb[0].mxu0 %v597
  %v737 = vpop.f32.mrb[0].mxu0
  %v738 = vadd.f32 0.0, %v737
  %v739 = vpop.f32.mrb[0].mxu0
  %v740 = vpop.f32.mrb[0].mxu0
  %v741 = vadd.f32 0.0, %v740
  %v742 = vpop.f32.mrb[0].mxu0
  %743 = vmatprep.mubr.bf16.mxu0 %v600
  %744 = vmatmul.mubr.bf16.gmra.mrb[0].mxu0 %v599
  %v745 = vpop.f32.mrb[0].mxu0
  %v746 = vadd.f32 0.0, %v745
  %v747 = vpop.f32.mrb[0].mxu0
  %v748 = vpop.f32.mrb[0].mxu0
  %v749 = vadd.f32 0.0, %v748
  %v750 = vpop.f32.mrb[0].mxu0
  %751 = vmatprep.mubr.bf16.mxu0 %v602
  %752 = vmatmul.mubr.bf16.gmra.mrb[0].mxu0 %v601
  %v753 = vpop.f32.mrb[0].mxu0
  %v754 = vadd.f32 0.0, %v753
  %v755 = vpop.f32.mrb[0].mxu0
  %v756 = vpop.f32.mrb[0].mxu0
  %v757 = vadd.f32 0.0, %v756
  %v758 = vpop.f32.mrb[0].mxu0
  %759 = vmatprep.mubr.bf16.mxu0 %v604
  %760 = vmatmul.mubr.bf16.gmra.mrb[0].mxu0 %v603
  %v761 = vpop.f32.mrb[0].mxu0
  %v762 = vadd.f32 0.0, %v761
  %v763 = vpop.f32.mrb[0].mxu0
  %v764 = vpop.f32.mrb[0].mxu0
  %v765 = vadd.f32 0.0, %v764
  %v766 = vpop.f32.mrb[0].mxu0
  %767 = vmatprep.mubr.bf16.mxu0 %v606
  %768 = vmatmul.mubr.bf16.gmra.mrb[0].mxu0 %v605
  %v769 = vpop.f32.mrb[0].mxu0
  %v770 = vadd.f32 0.0, %v769
  %v771 = vpop.f32.mrb[0].mxu0
  %v772 = vpop.f32.mrb[0].mxu0
  %v773 = vadd.f32 0.0, %v772
  %v774 = vpop.f32.mrb[0].mxu0
  %775 = vmatprep.mubr.bf16.mxu0 %v608
  %776 = vmatmul.mubr.bf16.gmra.mrb[0].mxu0 %v607
  %v777 = vpop.f32.mrb[0].mxu0
  %v778 = vadd.f32 0.0, %v777
  %v779 = vpop.f32.mrb[0].mxu0
  %v780 = vpop.f32.mrb[0].mxu0
  %v781 = vadd.f32 0.0, %v780
  %v782 = vpop.f32.mrb[0].mxu0
  %783 = vmatprep.mubr.bf16.mxu0 %v610
  %784 = vmatmul.mubr.bf16.gmra.mrb[0].mxu0 %v609
  %v785 = vpop.f32.mrb[0].mxu0
  %v786 = vadd.f32 0.0, %v785
  %v787 = vpop.f32.mrb[0].mxu0
  %v788 = vpop.f32.mrb[0].mxu0
  %v789 = vadd.f32 0.0, %v788
  %v790 = vpop.f32.mrb[0].mxu0
  %791 = vmatprep.mubr.bf16.mxu0 %v612
  %792 = vmatmul.mubr.bf16.gmra.mrb[0].mxu0 %v611
  %v793 = vpop.f32.mrb[0].mxu0
  %v794 = vadd.f32 0.0, %v793
  %v795 = vpop.f32.mrb[0].mxu0
  %v796 = vpop.f32.mrb[0].mxu0
  %v797 = vadd.f32 0.0, %v796
  %v798 = vpop.f32.mrb[0].mxu0
  %799 = vmatprep.mubr.bf16.mxu0 %v614
  %800 = vmatmul.mubr.bf16.gmra.mrb[0].mxu0 %v613
  %v801 = vpop.f32.mrb[0].mxu0
  %v802 = vadd.f32 0.0, %v801
  %v803 = vpop.f32.mrb[0].mxu0
  %v804 = vpop.f32.mrb[0].mxu0
  %v805 = vadd.f32 0.0, %v804
  %v806 = vpop.f32.mrb[0].mxu0
  %807 = vdwg.mxu0
  %v808 = vadd.f32 %v423, %v682
  %v809 = vadd.f32 %v424, %v685
  %v810 = vadd.f32 %v425, %v690
  %v811 = vadd.f32 %v426, %v693
  %v812 = vadd.f32 %v427, %v698
  %v813 = vadd.f32 %v428, %v701
  %v814 = vadd.f32 %v429, %v706
  %v815 = vadd.f32 %v430, %v709
  %v816 = vadd.f32 %v431, %v714
  %v817 = vadd.f32 %v432, %v717
  %v818 = vadd.f32 %v433, %v722
  %v819 = vadd.f32 %v434, %v725
  %v820 = vadd.f32 %v435, %v730
  %v821 = vadd.f32 %v436, %v733
  %v822 = vadd.f32 %v437, %v738
  %v823 = vadd.f32 %v438, %v741
  %v824 = vadd.f32 %v439, %v746
  %v825 = vadd.f32 %v440, %v749
  %v826 = vadd.f32 %v441, %v754
  %v827 = vadd.f32 %v442, %v757
  %v828 = vadd.f32 %v443, %v762
  %v829 = vadd.f32 %v444, %v765
  %v830 = vadd.f32 %v445, %v770
  %v831 = vadd.f32 %v446, %v773
  %v832 = vadd.f32 %v447, %v778
  %v833 = vadd.f32 %v448, %v781
  %v834 = vadd.f32 %v449, %v786
  %v835 = vadd.f32 %v450, %v789
  %v836 = vadd.f32 %v451, %v794
  %v837 = vadd.f32 %v452, %v797
  %v838 = vadd.f32 %v453, %v802
  %v839 = vadd.f32 %v454, %v805
  %840 = vst [vmem:[#allocation2] sm:$0xff] %v808
  %841 = vst [vmem:[#allocation2 + $0x8] sm:$0xff] %v809
  %842 = vst [vmem:[#allocation2 + $0x10] sm:$0xff] %v810
  %843 = vst [vmem:[#allocation2 + $0x18] sm:$0xff] %v811
  %844 = vst [vmem:[#allocation2 + $0x20] sm:$0xff] %v812
  %845 = vst [vmem:[#allocation2 + $0x28] sm:$0xff] %v813
  %846 = vst [vmem:[#allocation2 + $0x30] sm:$0xff] %v814
  %847 = vst [vmem:[#allocation2 + $0x38] sm:$0xff] %v815
  %848 = vst [vmem:[#allocation2 + $0x40] sm:$0xff] %v816
  %849 = vst [vmem:[#allocation2 + $0x48] sm:$0xff] %v817
  %850 = vst [vmem:[#allocation2 + $0x50] sm:$0xff] %v818
  %851 = vst [vmem:[#allocation2 + $0x58] sm:$0xff] %v819
  %852 = vst [vmem:[#allocation2 + $0x60] sm:$0xff] %v820
  %853 = vst [vmem:[#allocation2 + $0x68] sm:$0xff] %v821
  %854 = vst [vmem:[#allocation2 + $0x70] sm:$0xff] %v822
  %855 = vst [vmem:[#allocation2 + $0x78] sm:$0xff] %v823
  %856 = vst [vmem:[#allocation2 + $0x80] sm:$0xff] %v824
  %857 = vst [vmem:[#allocation2 + $0x88] sm:$0xff] %v825
  %858 = vst [vmem:[#allocation2 + $0x90] sm:$0xff] %v826
  %859 = vst [vmem:[#allocation2 + $0x98] sm:$0xff] %v827
  %860 = vst [vmem:[#allocation2 + $0xa0] sm:$0xff] %v828
  %861 = vst [vmem:[#allocation2 + $0xa8] sm:$0xff] %v829
  %862 = vst [vmem:[#allocation2 + $0xb0] sm:$0xff] %v830
  %863 = vst [vmem:[#allocation2 + $0xb8] sm:$0xff] %v831
  %864 = vst [vmem:[#allocation2 + $0xc0] sm:$0xff] %v832
  %865 = vst [vmem:[#allocation2 + $0xc8] sm:$0xff] %v833
  %866 = vst [vmem:[#allocation2 + $0xd0] sm:$0xff] %v834
  %867 = vst [vmem:[#allocation2 + $0xd8] sm:$0xff] %v835
  %868 = vst [vmem:[#allocation2 + $0xe0] sm:$0xff] %v836
  %869 = vst [vmem:[#allocation2 + $0xe8] sm:$0xff] %v837
  %870 = vst [vmem:[#allocation2 + $0xf0] sm:$0xff] %v838
  %871 = vst [vmem:[#allocation2 + $0xf8] sm:$0xff] %v839
  // Predicated region
  $region22: #{dominant_forward.8} parent=0 // pred_check
    %p872 = pneg %p18
  $region23: #{dominant_forward.8} parent=0 // pred_check_branch
    %874 = sbr.rel (%p872) target = $region25
  $region24: #{dominant_forward.8} parent=0 // pred_region
    %v875 = vld [vmem:[#allocation2] sm:$0xff]
    %v876 = vld [vmem:[#allocation2 + $0x8] sm:$0xff]
    %v877 = vld [vmem:[#allocation2 + $0x10] sm:$0xff]
    %v878 = vld [vmem:[#allocation2 + $0x18] sm:$0xff]
    %v879 = vld [vmem:[#allocation2 + $0x20] sm:$0xff]
    %v880 = vld [vmem:[#allocation2 + $0x28] sm:$0xff]
    %v881 = vld [vmem:[#allocation2 + $0x30] sm:$0xff]
    %v882 = vld [vmem:[#allocation2 + $0x38] sm:$0xff]
    %v883 = vld [vmem:[#allocation2 + $0x40] sm:$0xff]
    %v884 = vld [vmem:[#allocation2 + $0x48] sm:$0xff]
    %v885 = vld [vmem:[#allocation2 + $0x50] sm:$0xff]
    %v886 = vld [vmem:[#allocation2 + $0x58] sm:$0xff]
    %v887 = vld [vmem:[#allocation2 + $0x60] sm:$0xff]
    %v888 = vld [vmem:[#allocation2 + $0x68] sm:$0xff]
    %v889 = vld [vmem:[#allocation2 + $0x70] sm:$0xff]
    %v890 = vld [vmem:[#allocation2 + $0x78] sm:$0xff]
    %v891 = vld [vmem:[#allocation2 + $0x80] sm:$0xff]
    %v892 = vld [vmem:[#allocation2 + $0x88] sm:$0xff]
    %v893 = vld [vmem:[#allocation2 + $0x90] sm:$0xff]
    %v894 = vld [vmem:[#allocation2 + $0x98] sm:$0xff]
    %v895 = vld [vmem:[#allocation2 + $0xa0] sm:$0xff]
    %v896 = vld [vmem:[#allocation2 + $0xa8] sm:$0xff]
    %v897 = vld [vmem:[#allocation2 + $0xb0] sm:$0xff]
    %v898 = vld [vmem:[#allocation2 + $0xb8] sm:$0xff]
    %v899 = vld [vmem:[#allocation2 + $0xc0] sm:$0xff]
    %v900 = vld [vmem:[#allocation2 + $0xc8] sm:$0xff]
    %v901 = vld [vmem:[#allocation2 + $0xd0] sm:$0xff]
    %v902 = vld [vmem:[#allocation2 + $0xd8] sm:$0xff]
    %v903 = vld [vmem:[#allocation2 + $0xe0] sm:$0xff]
    %v904 = vld [vmem:[#allocation2 + $0xe8] sm:$0xff]
    %v905 = vld [vmem:[#allocation2 + $0xf0] sm:$0xff]
    %v906 = vld [vmem:[#allocation2 + $0xf8] sm:$0xff]
    %v907 = vld [vmem:[%s3] sm:$0x1]
    %v909 = vlaneseq
    %v910 = vshrl.u32 %v909, 7
    %v911 = vsub.s32 0, %v910
    %v912 = vrot.slane %v907, %v911
    %v914 = vadd.f32 %v875, %v912
    %v915 = vadd.f32 %v876, %v912
    %v916 = vadd.f32 %v877, %v912
    %v917 = vadd.f32 %v878, %v912
    %v918 = vadd.f32 %v879, %v912
    %v919 = vadd.f32 %v880, %v912
    %v920 = vadd.f32 %v881, %v912
    %v921 = vadd.f32 %v882, %v912
    %v922 = vadd.f32 %v883, %v912
    %v923 = vadd.f32 %v884, %v912
    %v924 = vadd.f32 %v885, %v912
    %v925 = vadd.f32 %v886, %v912
    %v926 = vadd.f32 %v887, %v912
    %v927 = vadd.f32 %v888, %v912
    %v928 = vadd.f32 %v889, %v912
    %v929 = vadd.f32 %v890, %v912
    %v930 = vadd.f32 %v891, %v912
    %v931 = vadd.f32 %v892, %v912
    %v932 = vadd.f32 %v893, %v912
    %v933 = vadd.f32 %v894, %v912
    %v934 = vadd.f32 %v895, %v912
    %v935 = vadd.f32 %v896, %v912
    %v936 = vadd.f32 %v897, %v912
    %v937 = vadd.f32 %v898, %v912
    %v938 = vadd.f32 %v899, %v912
    %v939 = vadd.f32 %v900, %v912
    %v940 = vadd.f32 %v901, %v912
    %v941 = vadd.f32 %v902, %v912
    %v942 = vadd.f32 %v903, %v912
    %v943 = vadd.f32 %v904, %v912
    %v944 = vadd.f32 %v905, %v912
    %v945 = vadd.f32 %v906, %v912
    %946 = vst [vmem:[%s4] sm:$0xff] %v914
    %947 = vst [vmem:[%s4 + $0x8] sm:$0xff] %v915
    %948 = vst [vmem:[%s4 + $0x10] sm:$0xff] %v916
    %949 = vst [vmem:[%s4 + $0x18] sm:$0xff] %v917
    %950 = vst [vmem:[%s4 + $0x20] sm:$0xff] %v918
    %951 = vst [vmem:[%s4 + $0x28] sm:$0xff] %v919
    %952 = vst [vmem:[%s4 + $0x30] sm:$0xff] %v920
    %953 = vst [vmem:[%s4 + $0x38] sm:$0xff] %v921
    %954 = vst [vmem:[%s4 + $0x40] sm:$0xff] %v922
    %955 = vst [vmem:[%s4 + $0x48] sm:$0xff] %v923
    %956 = vst [vmem:[%s4 + $0x50] sm:$0xff] %v924
    %957 = vst [vmem:[%s4 + $0x58] sm:$0xff] %v925
    %958 = vst [vmem:[%s4 + $0x60] sm:$0xff] %v926
    %959 = vst [vmem:[%s4 + $0x68] sm:$0xff] %v927
    %960 = vst [vmem:[%s4 + $0x70] sm:$0xff] %v928
    %961 = vst [vmem:[%s4 + $0x78] sm:$0xff] %v929
    %962 = vst [vmem:[%s4 + $0x80] sm:$0xff] %v930
    %963 = vst [vmem:[%s4 + $0x88] sm:$0xff] %v931
    %964 = vst [vmem:[%s4 + $0x90] sm:$0xff] %v932
    %965 = vst [vmem:[%s4 + $0x98] sm:$0xff] %v933
    %966 = vst [vmem:[%s4 + $0xa0] sm:$0xff] %v934
    %967 = vst [vmem:[%s4 + $0xa8] sm:$0xff] %v935
    %968 = vst [vmem:[%s4 + $0xb0] sm:$0xff] %v936
    %969 = vst [vmem:[%s4 + $0xb8] sm:$0xff] %v937
    %970 = vst [vmem:[%s4 + $0xc0] sm:$0xff] %v938
    %971 = vst [vmem:[%s4 + $0xc8] sm:$0xff] %v939
    %972 = vst [vmem:[%s4 + $0xd0] sm:$0xff] %v940
    %973 = vst [vmem:[%s4 + $0xd8] sm:$0xff] %v941
    %974 = vst [vmem:[%s4 + $0xe0] sm:$0xff] %v942
    %975 = vst [vmem:[%s4 + $0xe8] sm:$0xff] %v943
    %976 = vst [vmem:[%s4 + $0xf0] sm:$0xff] %v944
    %977 = vst [vmem:[%s4 + $0xf8] sm:$0xff] %v945
  $region25: #{dominant_forward.8} parent=0 // pred_fallthru
    _
  // Predicated region
  $region26: #{dominant_forward.8} parent=0 // pred_check
    _
  $region27: #{dominant_forward.8} parent=0 // pred_check_branch
    %979 = sbr.rel (0) target = $region29
  $region28: #{dominant_forward.8} parent=0 // pred_region
    _
  $region29: #{dominant_forward.8} parent=0 // pred_fallthru
    _
  // Predicated region
  $region30: #{dominant_forward.8} parent=0 // pred_check
    _
  $region31: #{dominant_forward.8} parent=0 // pred_check_branch
    %981 = sbr.rel (0) target = $region33
  $region32: #{dominant_forward.8} parent=0 // pred_region
    _
  $region33: #{dominant_forward.8} parent=0 // pred_fallthru
    _

// kernel: dominant_forward.6
$region0: #{dominant_forward.6}
  #allocation0 [shape = 'u32[]', space=smem, size = 0x4, offset = 0x4, fixed_abs, tag = 'smem constant byte address 0x4 - core index']
  #allocation1 [shape = 'u32[144,128]{1,0:T(1,128)}', space=vmem, size = 0x12000, scoped, tag = 'internal scratch']
  #allocation2 [shape = 'f32[256,128]{1,0:T(8,128)}', space=vmem, size = 0x20000, scoped, tag = 'scratch operand']
  %s0 = inlined_call_operand.vmem [shape: bf16[256,256], index: 0, kind: input, shape index: {}]
  %s1 = inlined_call_operand.vmem [shape: bf16[256,128], index: 1, kind: input, shape index: {}]
  %s2 = inlined_call_operand.vmem [shape: bf16[128,128], index: 2, kind: input, shape index: {}]
  %s3 = inlined_call_operand.vmem [shape: f32[1,128], index: 3, kind: input, shape index: {}]
  %s4 = inlined_call_operand.vmem [shape: bf16[256,128], index: 4, kind: output, shape index: {}]
  %s5 = sld [smem:[#allocation0]]
  $region34: #{dominant_forward.6} parent=0
    _
  %s7 = ssub.s32 1, %s5
  %s8 = scalar_select 0, %s7, %s5
  // Predicated region
  $region2: #{dominant_forward.6} parent=0 // pred_check
    _
  $region3: #{dominant_forward.6} parent=0 // pred_check_branch
    %10 = sbr.rel (0) target = $region5
  $region4: #{dominant_forward.6} parent=0 // pred_region
    _
  $region5: #{dominant_forward.6} parent=0 // pred_fallthru
    _
  // Predicated region
  $region6: #{dominant_forward.6} parent=0 // pred_check
    _
  $region7: #{dominant_forward.6} parent=0 // pred_check_branch
    %12 = sbr.rel (0) target = $region9
  $region8: #{dominant_forward.6} parent=0 // pred_region
    _
  $region9: #{dominant_forward.6} parent=0 // pred_fallthru
    _
  // Predicated region
  $region10: #{dominant_forward.6} parent=0 // pred_check
    _
  $region11: #{dominant_forward.6} parent=0 // pred_check_branch
    %14 = sbr.rel (0) target = $region13
  $region12: #{dominant_forward.6} parent=0 // pred_region
    _
  $region13: #{dominant_forward.6} parent=0 // pred_fallthru
    _
  // Predicated region
  $region14: #{dominant_forward.6} parent=0 // pred_check
    _
  $region15: #{dominant_forward.6} parent=0 // pred_check_branch
    %16 = sbr.rel (0) target = $region17
  $region16: #{dominant_forward.6} parent=0 // pred_region
    _
  $region17: #{dominant_forward.6} parent=0 // pred_fallthru
    _
  %p18 = scmp.eq.s32.totalorder 0, 0
  // Predicated region
  $region18: #{dominant_forward.6} parent=0 // pred_check
    %p19 = pneg %p18
  $region19: #{dominant_forward.6} parent=0 // pred_check_branch
    %21 = sbr.rel (%p19) target = $region21
  $region20: #{dominant_forward.6} parent=0 // pred_region
    %22 = vst [vmem:[#allocation2] sm:$0xff] 0.0
    %23 = vst [vmem:[#allocation2 + $0x8] sm:$0xff] 0.0
    %24 = vst [vmem:[#allocation2 + $0x10] sm:$0xff] 0.0
    %25 = vst [vmem:[#allocation2 + $0x18] sm:$0xff] 0.0
    %26 = vst [vmem:[#allocation2 + $0x20] sm:$0xff] 0.0
    %27 = vst [vmem:[#allocation2 + $0x28] sm:$0xff] 0.0
    %28 = vst [vmem:[#allocation2 + $0x30] sm:$0xff] 0.0
    %29 = vst [vmem:[#allocation2 + $0x38] sm:$0xff] 0.0
    %30 = vst [vmem:[#allocation2 + $0x40] sm:$0xff] 0.0
    %31 = vst [vmem:[#allocation2 + $0x48] sm:$0xff] 0.0
    %32 = vst [vmem:[#allocation2 + $0x50] sm:$0xff] 0.0
    %33 = vst [vmem:[#allocation2 + $0x58] sm:$0xff] 0.0
    %34 = vst [vmem:[#allocation2 + $0x60] sm:$0xff] 0.0
    %35 = vst [vmem:[#allocation2 + $0x68] sm:$0xff] 0.0
    %36 = vst [vmem:[#allocation2 + $0x70] sm:$0xff] 0.0
    %37 = vst [vmem:[#allocation2 + $0x78] sm:$0xff] 0.0
    %38 = vst [vmem:[#allocation2 + $0x80] sm:$0xff] 0.0
    %39 = vst [vmem:[#allocation2 + $0x88] sm:$0xff] 0.0
    %40 = vst [vmem:[#allocation2 + $0x90] sm:$0xff] 0.0
    %41 = vst [vmem:[#allocation2 + $0x98] sm:$0xff] 0.0
    %42 = vst [vmem:[#allocation2 + $0xa0] sm:$0xff] 0.0
    %43 = vst [vmem:[#allocation2 + $0xa8] sm:$0xff] 0.0
    %44 = vst [vmem:[#allocation2 + $0xb0] sm:$0xff] 0.0
    %45 = vst [vmem:[#allocation2 + $0xb8] sm:$0xff] 0.0
    %46 = vst [vmem:[#allocation2 + $0xc0] sm:$0xff] 0.0
    %47 = vst [vmem:[#allocation2 + $0xc8] sm:$0xff] 0.0
    %48 = vst [vmem:[#allocation2 + $0xd0] sm:$0xff] 0.0
    %49 = vst [vmem:[#allocation2 + $0xd8] sm:$0xff] 0.0
    %50 = vst [vmem:[#allocation2 + $0xe0] sm:$0xff] 0.0
    %51 = vst [vmem:[#allocation2 + $0xe8] sm:$0xff] 0.0
    %52 = vst [vmem:[#allocation2 + $0xf0] sm:$0xff] 0.0
    %53 = vst [vmem:[#allocation2 + $0xf8] sm:$0xff] 0.0
  $region21: #{dominant_forward.6} parent=0 // pred_fallthru
    _
  %v54 = vld [vmem:[%s1] sm:$0xf]
  %v55 = vld [vmem:[%s1 + $0x4] sm:$0xf]
  %v56 = vld [vmem:[%s1 + $0x8] sm:$0xf]
  %v57 = vld [vmem:[%s1 + $0xc] sm:$0xf]
  %v58 = vld [vmem:[%s1 + $0x10] sm:$0xf]
  %v59 = vld [vmem:[%s1 + $0x14] sm:$0xf]
  %v60 = vld [vmem:[%s1 + $0x18] sm:$0xf]
  %v61 = vld [vmem:[%s1 + $0x1c] sm:$0xf]
  %v62 = vld [vmem:[%s1 + $0x20] sm:$0xf]
  %v63 = vld [vmem:[%s1 + $0x24] sm:$0xf]
  %v64 = vld [vmem:[%s1 + $0x28] sm:$0xf]
  %v65 = vld [vmem:[%s1 + $0x2c] sm:$0xf]
  %v66 = vld [vmem:[%s1 + $0x30] sm:$0xf]
  %v67 = vld [vmem:[%s1 + $0x34] sm:$0xf]
  %v68 = vld [vmem:[%s1 + $0x38] sm:$0xf]
  %v69 = vld [vmem:[%s1 + $0x3c] sm:$0xf]
  %v70 = vld [vmem:[%s1 + $0x40] sm:$0xf]
  %v71 = vld [vmem:[%s1 + $0x44] sm:$0xf]
  %v72 = vld [vmem:[%s1 + $0x48] sm:$0xf]
  %v73 = vld [vmem:[%s1 + $0x4c] sm:$0xf]
  %v74 = vld [vmem:[%s1 + $0x50] sm:$0xf]
  %v75 = vld [vmem:[%s1 + $0x54] sm:$0xf]
  %v76 = vld [vmem:[%s1 + $0x58] sm:$0xf]
  %v77 = vld [vmem:[%s1 + $0x5c] sm:$0xf]
  %v78 = vld [vmem:[%s1 + $0x60] sm:$0xf]
  %v79 = vld [vmem:[%s1 + $0x64] sm:$0xf]
  %v80 = vld [vmem:[%s1 + $0x68] sm:$0xf]
  %v81 = vld [vmem:[%s1 + $0x6c] sm:$0xf]
  %v82 = vld [vmem:[%s1 + $0x70] sm:$0xf]
  %v83 = vld [vmem:[%s1 + $0x74] sm:$0xf]
  %v84 = vld [vmem:[%s1 + $0x78] sm:$0xf]
  %v85 = vld [vmem:[%s1 + $0x7c] sm:$0xf]
  %v86 = vld [vmem:[%s2] sm:$0xf]
  %v87 = vld [vmem:[%s2 + $0x4] sm:$0xf]
  %v88 = vld [vmem:[%s2 + $0x8] sm:$0xf]
  %v89 = vld [vmem:[%s2 + $0xc] sm:$0xf]
  %v90 = vld [vmem:[%s2 + $0x10] sm:$0xf]
  %v91 = vld [vmem:[%s2 + $0x14] sm:$0xf]
  %v92 = vld [vmem:[%s2 + $0x18] sm:$0xf]
  %v93 = vld [vmem:[%s2 + $0x1c] sm:$0xf]
  %v94 = vld [vmem:[%s2 + $0x20] sm:$0xf]
  %v95 = vld [vmem:[%s2 + $0x24] sm:$0xf]
  %v96 = vld [vmem:[%s2 + $0x28] sm:$0xf]
  %v97 = vld [vmem:[%s2 + $0x2c] sm:$0xf]
  %v98 = vld [vmem:[%s2 + $0x30] sm:$0xf]
  %v99 = vld [vmem:[%s2 + $0x34] sm:$0xf]
  %v100 = vld [vmem:[%s2 + $0x38] sm:$0xf]
  %v101 = vld [vmem:[%s2 + $0x3c] sm:$0xf]
  %v134 = vunpack.c.l.b16 %v54
  %v135 = vunpack.c.l.b16 %v55
  %v136 = vunpack.c.l.b16 %v56
  %v137 = vunpack.c.l.b16 %v57
  %v138 = vunpack.c.l.b16 %v58
  %v139 = vunpack.c.l.b16 %v59
  %v140 = vunpack.c.l.b16 %v60
  %v141 = vunpack.c.l.b16 %v61
  %v142 = vunpack.c.l.b16 %v62
  %v143 = vunpack.c.l.b16 %v63
  %v144 = vunpack.c.l.b16 %v64
  %v145 = vunpack.c.l.b16 %v65
  %v146 = vunpack.c.l.b16 %v66
  %v147 = vunpack.c.l.b16 %v67
  %v148 = vunpack.c.l.b16 %v68
  %v149 = vunpack.c.l.b16 %v69
  %v150 = vunpack.c.l.b16 %v70
  %v151 = vunpack.c.l.b16 %v71
  %v152 = vunpack.c.l.b16 %v72
  %v153 = vunpack.c.l.b16 %v73
  %v154 = vunpack.c.l.b16 %v74
  %v155 = vunpack.c.l.b16 %v75
  %v156 = vunpack.c.l.b16 %v76
  %v157 = vunpack.c.l.b16 %v77
  %v158 = vunpack.c.l.b16 %v78
  %v159 = vunpack.c.l.b16 %v79
  %v160 = vunpack.c.l.b16 %v80
  %v161 = vunpack.c.l.b16 %v81
  %v162 = vunpack.c.l.b16 %v82
  %v163 = vunpack.c.l.b16 %v83
  %v164 = vunpack.c.l.b16 %v84
  %v165 = vunpack.c.l.b16 %v85
  %v166 = vpack.c.b16 %v135, %v134
  %v167 = vpack.c.b16 %v137, %v136
  %v168 = vpack.c.b16 %v139, %v138
  %v169 = vpack.c.b16 %v141, %v140
  %v170 = vpack.c.b16 %v143, %v142
  %v171 = vpack.c.b16 %v145, %v144
  %v172 = vpack.c.b16 %v147, %v146
  %v173 = vpack.c.b16 %v149, %v148
  %v174 = vpack.c.b16 %v151, %v150
  %v175 = vpack.c.b16 %v153, %v152
  %v176 = vpack.c.b16 %v155, %v154
  %v177 = vpack.c.b16 %v157, %v156
  %v178 = vpack.c.b16 %v159, %v158
  %v179 = vpack.c.b16 %v161, %v160
  %v180 = vpack.c.b16 %v163, %v162
  %v181 = vpack.c.b16 %v165, %v164
  %v214 = vunpack.c.l.b16 %v86
  %v215 = vunpack.c.l.b16 %v87
  %v216 = vunpack.c.l.b16 %v88
  %v217 = vunpack.c.l.b16 %v89
  %v218 = vunpack.c.l.b16 %v90
  %v219 = vunpack.c.l.b16 %v91
  %v220 = vunpack.c.l.b16 %v92
  %v221 = vunpack.c.l.b16 %v93
  %v222 = vunpack.c.l.b16 %v94
  %v223 = vunpack.c.l.b16 %v95
  %v224 = vunpack.c.l.b16 %v96
  %v225 = vunpack.c.l.b16 %v97
  %v226 = vunpack.c.l.b16 %v98
  %v227 = vunpack.c.l.b16 %v99
  %v228 = vunpack.c.l.b16 %v100
  %v229 = vunpack.c.l.b16 %v101
  %v230 = vpack.c.b16 %v215, %v214
  %v231 = vpack.c.b16 %v217, %v216
  %v232 = vpack.c.b16 %v219, %v218
  %v233 = vpack.c.b16 %v221, %v220
  %v234 = vpack.c.b16 %v223, %v222
  %v235 = vpack.c.b16 %v225, %v224
  %v236 = vpack.c.b16 %v227, %v226
  %v237 = vpack.c.b16 %v229, %v228
  %246 = vmatprep.subr.bf16.mxu0 0
  %247 = vmatpush1.bf16.msra.mxu0 %v230
  %248 = vmatprep.subr.bf16.mxu0 0
  %249 = vmatpush1.bf16.msra.mxu0 %v231
  %250 = vmatprep.subr.bf16.mxu0 0
  %251 = vmatpush1.bf16.msra.mxu0 %v232
  %252 = vmatprep.subr.bf16.mxu0 0
  %253 = vmatpush1.bf16.msra.mxu0 %v233
  %254 = vmatprep.subr.bf16.mxu0 0
  %255 = vmatpush1.bf16.msra.mxu0 %v234
  %256 = vmatprep.subr.bf16.mxu0 0
  %257 = vmatpush1.bf16.msra.mxu0 %v235
  %258 = vmatprep.subr.bf16.mxu0 0
  %259 = vmatpush1.bf16.msra.mxu0 %v236
  %260 = vmatprep.subr.bf16.mxu0 0
  %261 = vmatpush1.bf16.msra.mxu0 %v237
  %262 = vmatprep.subr.bf16.mxu0 0
  %263 = vmatpush1.bf16.msra.mxu0 0
  %264 = vmatprep.subr.bf16.mxu0 0
  %265 = vmatpush1.bf16.msra.mxu0 0
  %266 = vmatprep.subr.bf16.mxu0 0
  %267 = vmatpush1.bf16.msra.mxu0 0
  %268 = vmatprep.subr.bf16.mxu0 0
  %269 = vmatpush1.bf16.msra.mxu0 0
  %270 = vmatprep.subr.bf16.mxu0 0
  %271 = vmatpush1.bf16.msra.mxu0 0
  %272 = vmatprep.subr.bf16.mxu0 0
  %273 = vmatpush1.bf16.msra.mxu0 0
  %274 = vmatprep.subr.bf16.mxu0 0
  %275 = vmatpush1.bf16.msra.mxu0 0
  %276 = vmatprep.subr.bf16.mxu0 0
  %277 = vmatpush1.bf16.msra.mxu0 0
  %278 = vmatprep.mubr.bf16.mxu0 0
  %279 = vmatmul.mubr.bf16.gmra.mrb[0].mxu0 %v166
  %v280 = vpop.f32.mrb[0].mxu0
  %v281 = vadd.f32 0.0, %v280
  %v282 = vpop.f32.mrb[0].mxu0
  %v283 = vpop.f32.mrb[0].mxu0
  %v284 = vadd.f32 0.0, %v283
  %v285 = vpop.f32.mrb[0].mxu0
  %286 = vmatprep.mubr.bf16.mxu0 0
  %287 = vmatmul.mubr.bf16.gmra.mrb[0].mxu0 %v167
  %v288 = vpop.f32.mrb[0].mxu0
  %v289 = vadd.f32 0.0, %v288
  %v290 = vpop.f32.mrb[0].mxu0
  %v291 = vpop.f32.mrb[0].mxu0
  %v292 = vadd.f32 0.0, %v291
  %v293 = vpop.f32.mrb[0].mxu0
  %294 = vmatprep.mubr.bf16.mxu0 0
  %295 = vmatmul.mubr.bf16.gmra.mrb[0].mxu0 %v168
  %v296 = vpop.f32.mrb[0].mxu0
  %v297 = vadd.f32 0.0, %v296
  %v298 = vpop.f32.mrb[0].mxu0
  %v299 = vpop.f32.mrb[0].mxu0
  %v300 = vadd.f32 0.0, %v299
  %v301 = vpop.f32.mrb[0].mxu0
  %302 = vmatprep.mubr.bf16.mxu0 0
  %303 = vmatmul.mubr.bf16.gmra.mrb[0].mxu0 %v169
  %v304 = vpop.f32.mrb[0].mxu0
  %v305 = vadd.f32 0.0, %v304
  %v306 = vpop.f32.mrb[0].mxu0
  %v307 = vpop.f32.mrb[0].mxu0
  %v308 = vadd.f32 0.0, %v307
  %v309 = vpop.f32.mrb[0].mxu0
  %310 = vmatprep.mubr.bf16.mxu0 0
  %311 = vmatmul.mubr.bf16.gmra.mrb[0].mxu0 %v170
  %v312 = vpop.f32.mrb[0].mxu0
  %v313 = vadd.f32 0.0, %v312
  %v314 = vpop.f32.mrb[0].mxu0
  %v315 = vpop.f32.mrb[0].mxu0
  %v316 = vadd.f32 0.0, %v315
  %v317 = vpop.f32.mrb[0].mxu0
  %318 = vmatprep.mubr.bf16.mxu0 0
  %319 = vmatmul.mubr.bf16.gmra.mrb[0].mxu0 %v171
  %v320 = vpop.f32.mrb[0].mxu0
  %v321 = vadd.f32 0.0, %v320
  %v322 = vpop.f32.mrb[0].mxu0
  %v323 = vpop.f32.mrb[0].mxu0
  %v324 = vadd.f32 0.0, %v323
  %v325 = vpop.f32.mrb[0].mxu0
  %326 = vmatprep.mubr.bf16.mxu0 0
  %327 = vmatmul.mubr.bf16.gmra.mrb[0].mxu0 %v172
  %v328 = vpop.f32.mrb[0].mxu0
  %v329 = vadd.f32 0.0, %v328
  %v330 = vpop.f32.mrb[0].mxu0
  %v331 = vpop.f32.mrb[0].mxu0
  %v332 = vadd.f32 0.0, %v331
  %v333 = vpop.f32.mrb[0].mxu0
  %334 = vmatprep.mubr.bf16.mxu0 0
  %335 = vmatmul.mubr.bf16.gmra.mrb[0].mxu0 %v173
  %v336 = vpop.f32.mrb[0].mxu0
  %v337 = vadd.f32 0.0, %v336
  %v338 = vpop.f32.mrb[0].mxu0
  %v339 = vpop.f32.mrb[0].mxu0
  %v340 = vadd.f32 0.0, %v339
  %v341 = vpop.f32.mrb[0].mxu0
  %342 = vmatprep.mubr.bf16.mxu0 0
  %343 = vmatmul.mubr.bf16.gmra.mrb[0].mxu0 %v174
  %v344 = vpop.f32.mrb[0].mxu0
  %v345 = vadd.f32 0.0, %v344
  %v346 = vpop.f32.mrb[0].mxu0
  %v347 = vpop.f32.mrb[0].mxu0
  %v348 = vadd.f32 0.0, %v347
  %v349 = vpop.f32.mrb[0].mxu0
  %350 = vmatprep.mubr.bf16.mxu0 0
  %351 = vmatmul.mubr.bf16.gmra.mrb[0].mxu0 %v175
  %v352 = vpop.f32.mrb[0].mxu0
  %v353 = vadd.f32 0.0, %v352
  %v354 = vpop.f32.mrb[0].mxu0
  %v355 = vpop.f32.mrb[0].mxu0
  %v356 = vadd.f32 0.0, %v355
  %v357 = vpop.f32.mrb[0].mxu0
  %358 = vmatprep.mubr.bf16.mxu0 0
  %359 = vmatmul.mubr.bf16.gmra.mrb[0].mxu0 %v176
  %v360 = vpop.f32.mrb[0].mxu0
  %v361 = vadd.f32 0.0, %v360
  %v362 = vpop.f32.mrb[0].mxu0
  %v363 = vpop.f32.mrb[0].mxu0
  %v364 = vadd.f32 0.0, %v363
  %v365 = vpop.f32.mrb[0].mxu0
  %366 = vmatprep.mubr.bf16.mxu0 0
  %367 = vmatmul.mubr.bf16.gmra.mrb[0].mxu0 %v177
  %v368 = vpop.f32.mrb[0].mxu0
  %v369 = vadd.f32 0.0, %v368
  %v370 = vpop.f32.mrb[0].mxu0
  %v371 = vpop.f32.mrb[0].mxu0
  %v372 = vadd.f32 0.0, %v371
  %v373 = vpop.f32.mrb[0].mxu0
  %374 = vmatprep.mubr.bf16.mxu0 0
  %375 = vmatmul.mubr.bf16.gmra.mrb[0].mxu0 %v178
  %v376 = vpop.f32.mrb[0].mxu0
  %v377 = vadd.f32 0.0, %v376
  %v378 = vpop.f32.mrb[0].mxu0
  %v379 = vpop.f32.mrb[0].mxu0
  %v380 = vadd.f32 0.0, %v379
  %v381 = vpop.f32.mrb[0].mxu0
  %382 = vmatprep.mubr.bf16.mxu0 0
  %383 = vmatmul.mubr.bf16.gmra.mrb[0].mxu0 %v179
  %v384 = vpop.f32.mrb[0].mxu0
  %v385 = vadd.f32 0.0, %v384
  %v386 = vpop.f32.mrb[0].mxu0
  %v387 = vpop.f32.mrb[0].mxu0
  %v388 = vadd.f32 0.0, %v387
  %v389 = vpop.f32.mrb[0].mxu0
  %390 = vmatprep.mubr.bf16.mxu0 0
  %391 = vmatmul.mubr.bf16.gmra.mrb[0].mxu0 %v180
  %v392 = vpop.f32.mrb[0].mxu0
  %v393 = vadd.f32 0.0, %v392
  %v394 = vpop.f32.mrb[0].mxu0
  %v395 = vpop.f32.mrb[0].mxu0
  %v396 = vadd.f32 0.0, %v395
  %v397 = vpop.f32.mrb[0].mxu0
  %398 = vmatprep.mubr.bf16.mxu0 0
  %399 = vmatmul.mubr.bf16.gmra.mrb[0].mxu0 %v181
  %v400 = vpop.f32.mrb[0].mxu0
  %v401 = vadd.f32 0.0, %v400
  %v402 = vpop.f32.mrb[0].mxu0
  %v403 = vpop.f32.mrb[0].mxu0
  %v404 = vadd.f32 0.0, %v403
  %v405 = vpop.f32.mrb[0].mxu0
  %406 = vdwg.mxu0
  %v407 = vpack.c.bf16 %v284, %v281
  %v408 = vpack.c.bf16 %v292, %v289
  %v409 = vpack.c.bf16 %v300, %v297
  %v410 = vpack.c.bf16 %v308, %v305
  %v411 = vpack.c.bf16 %v316, %v313
  %v412 = vpack.c.bf16 %v324, %v321
  %v413 = vpack.c.bf16 %v332, %v329
  %v414 = vpack.c.bf16 %v340, %v337
  %v415 = vpack.c.bf16 %v348, %v345
  %v416 = vpack.c.bf16 %v356, %v353
  %v417 = vpack.c.bf16 %v364, %v361
  %v418 = vpack.c.bf16 %v372, %v369
  %v419 = vpack.c.bf16 %v380, %v377
  %v420 = vpack.c.bf16 %v388, %v385
  %v421 = vpack.c.bf16 %v396, %v393
  %v422 = vpack.c.bf16 %v404, %v401
  %v423 = vld [vmem:[#allocation2] sm:$0xff]
  %v424 = vld [vmem:[#allocation2 + $0x8] sm:$0xff]
  %v425 = vld [vmem:[#allocation2 + $0x10] sm:$0xff]
  %v426 = vld [vmem:[#allocation2 + $0x18] sm:$0xff]
  %v427 = vld [vmem:[#allocation2 + $0x20] sm:$0xff]
  %v428 = vld [vmem:[#allocation2 + $0x28] sm:$0xff]
  %v429 = vld [vmem:[#allocation2 + $0x30] sm:$0xff]
  %v430 = vld [vmem:[#allocation2 + $0x38] sm:$0xff]
  %v431 = vld [vmem:[#allocation2 + $0x40] sm:$0xff]
  %v432 = vld [vmem:[#allocation2 + $0x48] sm:$0xff]
  %v433 = vld [vmem:[#allocation2 + $0x50] sm:$0xff]
  %v434 = vld [vmem:[#allocation2 + $0x58] sm:$0xff]
  %v435 = vld [vmem:[#allocation2 + $0x60] sm:$0xff]
  %v436 = vld [vmem:[#allocation2 + $0x68] sm:$0xff]
  %v437 = vld [vmem:[#allocation2 + $0x70] sm:$0xff]
  %v438 = vld [vmem:[#allocation2 + $0x78] sm:$0xff]
  %v439 = vld [vmem:[#allocation2 + $0x80] sm:$0xff]
  %v440 = vld [vmem:[#allocation2 + $0x88] sm:$0xff]
  %v441 = vld [vmem:[#allocation2 + $0x90] sm:$0xff]
  %v442 = vld [vmem:[#allocation2 + $0x98] sm:$0xff]
  %v443 = vld [vmem:[#allocation2 + $0xa0] sm:$0xff]
  %v444 = vld [vmem:[#allocation2 + $0xa8] sm:$0xff]
  %v445 = vld [vmem:[#allocation2 + $0xb0] sm:$0xff]
  %v446 = vld [vmem:[#allocation2 + $0xb8] sm:$0xff]
  %v447 = vld [vmem:[#allocation2 + $0xc0] sm:$0xff]
  %v448 = vld [vmem:[#allocation2 + $0xc8] sm:$0xff]
  %v449 = vld [vmem:[#allocation2 + $0xd0] sm:$0xff]
  %v450 = vld [vmem:[#allocation2 + $0xd8] sm:$0xff]
  %v451 = vld [vmem:[#allocation2 + $0xe0] sm:$0xff]
  %v452 = vld [vmem:[#allocation2 + $0xe8] sm:$0xff]
  %v453 = vld [vmem:[#allocation2 + $0xf0] sm:$0xff]
  %v454 = vld [vmem:[#allocation2 + $0xf8] sm:$0xff]
  %v455 = vld [vmem:[%s0] sm:$0xff]
  %v456 = vld [vmem:[%s0 + $0x8] sm:$0xff]
  %v457 = vld [vmem:[%s0 + $0x10] sm:$0xff]
  %v458 = vld [vmem:[%s0 + $0x18] sm:$0xff]
  %v459 = vld [vmem:[%s0 + $0x20] sm:$0xff]
  %v460 = vld [vmem:[%s0 + $0x28] sm:$0xff]
  %v461 = vld [vmem:[%s0 + $0x30] sm:$0xff]
  %v462 = vld [vmem:[%s0 + $0x38] sm:$0xff]
  %v463 = vld [vmem:[%s0 + $0x40] sm:$0xff]
  %v464 = vld [vmem:[%s0 + $0x48] sm:$0xff]
  %v465 = vld [vmem:[%s0 + $0x50] sm:$0xff]
  %v466 = vld [vmem:[%s0 + $0x58] sm:$0xff]
  %v467 = vld [vmem:[%s0 + $0x60] sm:$0xff]
  %v468 = vld [vmem:[%s0 + $0x68] sm:$0xff]
  %v469 = vld [vmem:[%s0 + $0x70] sm:$0xff]
  %v470 = vld [vmem:[%s0 + $0x78] sm:$0xff]
  %v471 = vld [vmem:[%s0 + $0x80] sm:$0xff]
  %v472 = vld [vmem:[%s0 + $0x88] sm:$0xff]
  %v473 = vld [vmem:[%s0 + $0x90] sm:$0xff]
  %v474 = vld [vmem:[%s0 + $0x98] sm:$0xff]
  %v475 = vld [vmem:[%s0 + $0xa0] sm:$0xff]
  %v476 = vld [vmem:[%s0 + $0xa8] sm:$0xff]
  %v477 = vld [vmem:[%s0 + $0xb0] sm:$0xff]
  %v478 = vld [vmem:[%s0 + $0xb8] sm:$0xff]
  %v479 = vld [vmem:[%s0 + $0xc0] sm:$0xff]
  %v480 = vld [vmem:[%s0 + $0xc8] sm:$0xff]
  %v481 = vld [vmem:[%s0 + $0xd0] sm:$0xff]
  %v482 = vld [vmem:[%s0 + $0xd8] sm:$0xff]
  %v483 = vld [vmem:[%s0 + $0xe0] sm:$0xff]
  %v484 = vld [vmem:[%s0 + $0xe8] sm:$0xff]
  %v485 = vld [vmem:[%s0 + $0xf0] sm:$0xff]
  %v486 = vld [vmem:[%s0 + $0xf8] sm:$0xff]
  %v519 = vunpack.c.l.b16 %v455
  %v520 = vunpack.c.h.b16 %v455
  %v521 = vunpack.c.l.b16 %v456
  %v522 = vunpack.c.h.b16 %v456
  %v523 = vunpack.c.l.b16 %v457
  %v524 = vunpack.c.h.b16 %v457
  %v525 = vunpack.c.l.b16 %v458
  %v526 = vunpack.c.h.b16 %v458
  %v527 = vunpack.c.l.b16 %v459
  %v528 = vunpack.c.h.b16 %v459
  %v529 = vunpack.c.l.b16 %v460
  %v530 = vunpack.c.h.b16 %v460
  %v531 = vunpack.c.l.b16 %v461
  %v532 = vunpack.c.h.b16 %v461
  %v533 = vunpack.c.l.b16 %v462
  %v534 = vunpack.c.h.b16 %v462
  %v535 = vunpack.c.l.b16 %v463
  %v536 = vunpack.c.h.b16 %v463
  %v537 = vunpack.c.l.b16 %v464
  %v538 = vunpack.c.h.b16 %v464
  %v539 = vunpack.c.l.b16 %v465
  %v540 = vunpack.c.h.b16 %v465
  %v541 = vunpack.c.l.b16 %v466
  %v542 = vunpack.c.h.b16 %v466
  %v543 = vunpack.c.l.b16 %v467
  %v544 = vunpack.c.h.b16 %v467
  %v545 = vunpack.c.l.b16 %v468
  %v546 = vunpack.c.h.b16 %v468
  %v547 = vunpack.c.l.b16 %v469
  %v548 = vunpack.c.h.b16 %v469
  %v549 = vunpack.c.l.b16 %v470
  %v550 = vunpack.c.h.b16 %v470
  %v551 = vunpack.c.l.b16 %v471
  %v552 = vunpack.c.h.b16 %v471
  %v553 = vunpack.c.l.b16 %v472
  %v554 = vunpack.c.h.b16 %v472
  %v555 = vunpack.c.l.b16 %v473
  %v556 = vunpack.c.h.b16 %v473
  %v557 = vunpack.c.l.b16 %v474
  %v558 = vunpack.c.h.b16 %v474
  %v559 = vunpack.c.l.b16 %v475
  %v560 = vunpack.c.h.b16 %v475
  %v561 = vunpack.c.l.b16 %v476
  %v562 = vunpack.c.h.b16 %v476
  %v563 = vunpack.c.l.b16 %v477
  %v564 = vunpack.c.h.b16 %v477
  %v565 = vunpack.c.l.b16 %v478
  %v566 = vunpack.c.h.b16 %v478
  %v567 = vunpack.c.l.b16 %v479
  %v568 = vunpack.c.h.b16 %v479
  %v569 = vunpack.c.l.b16 %v480
  %v570 = vunpack.c.h.b16 %v480
  %v571 = vunpack.c.l.b16 %v481
  %v572 = vunpack.c.h.b16 %v481
  %v573 = vunpack.c.l.b16 %v482
  %v574 = vunpack.c.h.b16 %v482
  %v575 = vunpack.c.l.b16 %v483
  %v576 = vunpack.c.h.b16 %v483
  %v577 = vunpack.c.l.b16 %v484
  %v578 = vunpack.c.h.b16 %v484
  %v579 = vunpack.c.l.b16 %v485
  %v580 = vunpack.c.h.b16 %v485
  %v581 = vunpack.c.l.b16 %v486
  %v582 = vunpack.c.h.b16 %v486
  %v583 = vpack.c.b16 %v521, %v519
  %v584 = vpack.c.b16 %v522, %v520
  %v585 = vpack.c.b16 %v525, %v523
  %v586 = vpack.c.b16 %v526, %v524
  %v587 = vpack.c.b16 %v529, %v527
  %v588 = vpack.c.b16 %v530, %v528
  %v589 = vpack.c.b16 %v533, %v531
  %v590 = vpack.c.b16 %v534, %v532
  %v591 = vpack.c.b16 %v537, %v535
  %v592 = vpack.c.b16 %v538, %v536
  %v593 = vpack.c.b16 %v541, %v539
  %v594 = vpack.c.b16 %v542, %v540
  %v595 = vpack.c.b16 %v545, %v543
  %v596 = vpack.c.b16 %v546, %v544
  %v597 = vpack.c.b16 %v549, %v547
  %v598 = vpack.c.b16 %v550, %v548
  %v599 = vpack.c.b16 %v553, %v551
  %v600 = vpack.c.b16 %v554, %v552
  %v601 = vpack.c.b16 %v557, %v555
  %v602 = vpack.c.b16 %v558, %v556
  %v603 = vpack.c.b16 %v561, %v559
  %v604 = vpack.c.b16 %v562, %v560
  %v605 = vpack.c.b16 %v565, %v563
  %v606 = vpack.c.b16 %v566, %v564
  %v607 = vpack.c.b16 %v569, %v567
  %v608 = vpack.c.b16 %v570, %v568
  %v609 = vpack.c.b16 %v573, %v571
  %v610 = vpack.c.b16 %v574, %v572
  %v611 = vpack.c.b16 %v577, %v575
  %v612 = vpack.c.b16 %v578, %v576
  %v613 = vpack.c.b16 %v581, %v579
  %v614 = vpack.c.b16 %v582, %v580
  %647 = vmatprep.subr.bf16.mxu0 0
  %648 = vmatpush1.bf16.msra.mxu0 %v407
  %649 = vmatprep.subr.bf16.mxu0 0
  %650 = vmatpush1.bf16.msra.mxu0 %v408
  %651 = vmatprep.subr.bf16.mxu0 0
  %652 = vmatpush1.bf16.msra.mxu0 %v409
  %653 = vmatprep.subr.bf16.mxu0 0
  %654 = vmatpush1.bf16.msra.mxu0 %v410
  %655 = vmatprep.subr.bf16.mxu0 0
  %656 = vmatpush1.bf16.msra.mxu0 %v411
  %657 = vmatprep.subr.bf16.mxu0 0
  %658 = vmatpush1.bf16.msra.mxu0 %v412
  %659 = vmatprep.subr.bf16.mxu0 0
  %660 = vmatpush1.bf16.msra.mxu0 %v413
  %661 = vmatprep.subr.bf16.mxu0 0
  %662 = vmatpush1.bf16.msra.mxu0 %v414
  %663 = vmatprep.subr.bf16.mxu0 0
  %664 = vmatpush1.bf16.msra.mxu0 %v415
  %665 = vmatprep.subr.bf16.mxu0 0
  %666 = vmatpush1.bf16.msra.mxu0 %v416
  %667 = vmatprep.subr.bf16.mxu0 0
  %668 = vmatpush1.bf16.msra.mxu0 %v417
  %669 = vmatprep.subr.bf16.mxu0 0
  %670 = vmatpush1.bf16.msra.mxu0 %v418
  %671 = vmatprep.subr.bf16.mxu0 0
  %672 = vmatpush1.bf16.msra.mxu0 %v419
  %673 = vmatprep.subr.bf16.mxu0 0
  %674 = vmatpush1.bf16.msra.mxu0 %v420
  %675 = vmatprep.subr.bf16.mxu0 0
  %676 = vmatpush1.bf16.msra.mxu0 %v421
  %677 = vmatprep.subr.bf16.mxu0 0
  %678 = vmatpush1.bf16.msra.mxu0 %v422
  %679 = vmatprep.mubr.bf16.mxu0 %v584
  %680 = vmatmul.mubr.bf16.gmra.mrb[0].mxu0 %v583
  %v681 = vpop.f32.mrb[0].mxu0
  %v682 = vadd.f32 0.0, %v681
  %v683 = vpop.f32.mrb[0].mxu0
  %v684 = vpop.f32.mrb[0].mxu0
  %v685 = vadd.f32 0.0, %v684
  %v686 = vpop.f32.mrb[0].mxu0
  %687 = vmatprep.mubr.bf16.mxu0 %v586
  %688 = vmatmul.mubr.bf16.gmra.mrb[0].mxu0 %v585
  %v689 = vpop.f32.mrb[0].mxu0
  %v690 = vadd.f32 0.0, %v689
  %v691 = vpop.f32.mrb[0].mxu0
  %v692 = vpop.f32.mrb[0].mxu0
  %v693 = vadd.f32 0.0, %v692
  %v694 = vpop.f32.mrb[0].mxu0
  %695 = vmatprep.mubr.bf16.mxu0 %v588
  %696 = vmatmul.mubr.bf16.gmra.mrb[0].mxu0 %v587
  %v697 = vpop.f32.mrb[0].mxu0
  %v698 = vadd.f32 0.0, %v697
  %v699 = vpop.f32.mrb[0].mxu0
  %v700 = vpop.f32.mrb[0].mxu0
  %v701 = vadd.f32 0.0, %v700
  %v702 = vpop.f32.mrb[0].mxu0
  %703 = vmatprep.mubr.bf16.mxu0 %v590
  %704 = vmatmul.mubr.bf16.gmra.mrb[0].mxu0 %v589
  %v705 = vpop.f32.mrb[0].mxu0
  %v706 = vadd.f32 0.0, %v705
  %v707 = vpop.f32.mrb[0].mxu0
  %v708 = vpop.f32.mrb[0].mxu0
  %v709 = vadd.f32 0.0, %v708
  %v710 = vpop.f32.mrb[0].mxu0
  %711 = vmatprep.mubr.bf16.mxu0 %v592
  %712 = vmatmul.mubr.bf16.gmra.mrb[0].mxu0 %v591
  %v713 = vpop.f32.mrb[0].mxu0
  %v714 = vadd.f32 0.0, %v713
  %v715 = vpop.f32.mrb[0].mxu0
  %v716 = vpop.f32.mrb[0].mxu0
  %v717 = vadd.f32 0.0, %v716
  %v718 = vpop.f32.mrb[0].mxu0
  %719 = vmatprep.mubr.bf16.mxu0 %v594
  %720 = vmatmul.mubr.bf16.gmra.mrb[0].mxu0 %v593
  %v721 = vpop.f32.mrb[0].mxu0
  %v722 = vadd.f32 0.0, %v721
  %v723 = vpop.f32.mrb[0].mxu0
  %v724 = vpop.f32.mrb[0].mxu0
  %v725 = vadd.f32 0.0, %v724
  %v726 = vpop.f32.mrb[0].mxu0
  %727 = vmatprep.mubr.bf16.mxu0 %v596
  %728 = vmatmul.mubr.bf16.gmra.mrb[0].mxu0 %v595
  %v729 = vpop.f32.mrb[0].mxu0
  %v730 = vadd.f32 0.0, %v729
  %v731 = vpop.f32.mrb[0].mxu0
  %v732 = vpop.f32.mrb[0].mxu0
  %v733 = vadd.f32 0.0, %v732
  %v734 = vpop.f32.mrb[0].mxu0
  %735 = vmatprep.mubr.bf16.mxu0 %v598
  %736 = vmatmul.mubr.bf16.gmra.mrb[0].mxu0 %v597
  %v737 = vpop.f32.mrb[0].mxu0
  %v738 = vadd.f32 0.0, %v737
  %v739 = vpop.f32.mrb[0].mxu0
  %v740 = vpop.f32.mrb[0].mxu0
  %v741 = vadd.f32 0.0, %v740
  %v742 = vpop.f32.mrb[0].mxu0
  %743 = vmatprep.mubr.bf16.mxu0 %v600
  %744 = vmatmul.mubr.bf16.gmra.mrb[0].mxu0 %v599
  %v745 = vpop.f32.mrb[0].mxu0
  %v746 = vadd.f32 0.0, %v745
  %v747 = vpop.f32.mrb[0].mxu0
  %v748 = vpop.f32.mrb[0].mxu0
  %v749 = vadd.f32 0.0, %v748
  %v750 = vpop.f32.mrb[0].mxu0
  %751 = vmatprep.mubr.bf16.mxu0 %v602
  %752 = vmatmul.mubr.bf16.gmra.mrb[0].mxu0 %v601
  %v753 = vpop.f32.mrb[0].mxu0
  %v754 = vadd.f32 0.0, %v753
  %v755 = vpop.f32.mrb[0].mxu0
  %v756 = vpop.f32.mrb[0].mxu0
  %v757 = vadd.f32 0.0, %v756
  %v758 = vpop.f32.mrb[0].mxu0
  %759 = vmatprep.mubr.bf16.mxu0 %v604
  %760 = vmatmul.mubr.bf16.gmra.mrb[0].mxu0 %v603
  %v761 = vpop.f32.mrb[0].mxu0
  %v762 = vadd.f32 0.0, %v761
  %v763 = vpop.f32.mrb[0].mxu0
  %v764 = vpop.f32.mrb[0].mxu0
  %v765 = vadd.f32 0.0, %v764
  %v766 = vpop.f32.mrb[0].mxu0
  %767 = vmatprep.mubr.bf16.mxu0 %v606
  %768 = vmatmul.mubr.bf16.gmra.mrb[0].mxu0 %v605
  %v769 = vpop.f32.mrb[0].mxu0
  %v770 = vadd.f32 0.0, %v769
  %v771 = vpop.f32.mrb[0].mxu0
  %v772 = vpop.f32.mrb[0].mxu0
  %v773 = vadd.f32 0.0, %v772
  %v774 = vpop.f32.mrb[0].mxu0
  %775 = vmatprep.mubr.bf16.mxu0 %v608
  %776 = vmatmul.mubr.bf16.gmra.mrb[0].mxu0 %v607
  %v777 = vpop.f32.mrb[0].mxu0
  %v778 = vadd.f32 0.0, %v777
  %v779 = vpop.f32.mrb[0].mxu0
  %v780 = vpop.f32.mrb[0].mxu0
  %v781 = vadd.f32 0.0, %v780
  %v782 = vpop.f32.mrb[0].mxu0
  %783 = vmatprep.mubr.bf16.mxu0 %v610
  %784 = vmatmul.mubr.bf16.gmra.mrb[0].mxu0 %v609
  %v785 = vpop.f32.mrb[0].mxu0
  %v786 = vadd.f32 0.0, %v785
  %v787 = vpop.f32.mrb[0].mxu0
  %v788 = vpop.f32.mrb[0].mxu0
  %v789 = vadd.f32 0.0, %v788
  %v790 = vpop.f32.mrb[0].mxu0
  %791 = vmatprep.mubr.bf16.mxu0 %v612
  %792 = vmatmul.mubr.bf16.gmra.mrb[0].mxu0 %v611
  %v793 = vpop.f32.mrb[0].mxu0
  %v794 = vadd.f32 0.0, %v793
  %v795 = vpop.f32.mrb[0].mxu0
  %v796 = vpop.f32.mrb[0].mxu0
  %v797 = vadd.f32 0.0, %v796
  %v798 = vpop.f32.mrb[0].mxu0
  %799 = vmatprep.mubr.bf16.mxu0 %v614
  %800 = vmatmul.mubr.bf16.gmra.mrb[0].mxu0 %v613
  %v801 = vpop.f32.mrb[0].mxu0
  %v802 = vadd.f32 0.0, %v801
  %v803 = vpop.f32.mrb[0].mxu0
  %v804 = vpop.f32.mrb[0].mxu0
  %v805 = vadd.f32 0.0, %v804
  %v806 = vpop.f32.mrb[0].mxu0
  %807 = vdwg.mxu0
  %v808 = vadd.f32 %v423, %v682
  %v809 = vadd.f32 %v424, %v685
  %v810 = vadd.f32 %v425, %v690
  %v811 = vadd.f32 %v426, %v693
  %v812 = vadd.f32 %v427, %v698
  %v813 = vadd.f32 %v428, %v701
  %v814 = vadd.f32 %v429, %v706
  %v815 = vadd.f32 %v430, %v709
  %v816 = vadd.f32 %v431, %v714
  %v817 = vadd.f32 %v432, %v717
  %v818 = vadd.f32 %v433, %v722
  %v819 = vadd.f32 %v434, %v725
  %v820 = vadd.f32 %v435, %v730
  %v821 = vadd.f32 %v436, %v733
  %v822 = vadd.f32 %v437, %v738
  %v823 = vadd.f32 %v438, %v741
  %v824 = vadd.f32 %v439, %v746
  %v825 = vadd.f32 %v440, %v749
  %v826 = vadd.f32 %v441, %v754
  %v827 = vadd.f32 %v442, %v757
  %v828 = vadd.f32 %v443, %v762
  %v829 = vadd.f32 %v444, %v765
  %v830 = vadd.f32 %v445, %v770
  %v831 = vadd.f32 %v446, %v773
  %v832 = vadd.f32 %v447, %v778
  %v833 = vadd.f32 %v448, %v781
  %v834 = vadd.f32 %v449, %v786
  %v835 = vadd.f32 %v450, %v789
  %v836 = vadd.f32 %v451, %v794
  %v837 = vadd.f32 %v452, %v797
  %v838 = vadd.f32 %v453, %v802
  %v839 = vadd.f32 %v454, %v805
  %840 = vst [vmem:[#allocation2] sm:$0xff] %v808
  %841 = vst [vmem:[#allocation2 + $0x8] sm:$0xff] %v809
  %842 = vst [vmem:[#allocation2 + $0x10] sm:$0xff] %v810
  %843 = vst [vmem:[#allocation2 + $0x18] sm:$0xff] %v811
  %844 = vst [vmem:[#allocation2 + $0x20] sm:$0xff] %v812
  %845 = vst [vmem:[#allocation2 + $0x28] sm:$0xff] %v813
  %846 = vst [vmem:[#allocation2 + $0x30] sm:$0xff] %v814
  %847 = vst [vmem:[#allocation2 + $0x38] sm:$0xff] %v815
  %848 = vst [vmem:[#allocation2 + $0x40] sm:$0xff] %v816
  %849 = vst [vmem:[#allocation2 + $0x48] sm:$0xff] %v817
  %850 = vst [vmem:[#allocation2 + $0x50] sm:$0xff] %v818
  %851 = vst [vmem:[#allocation2 + $0x58] sm:$0xff] %v819
  %852 = vst [vmem:[#allocation2 + $0x60] sm:$0xff] %v820
  %853 = vst [vmem:[#allocation2 + $0x68] sm:$0xff] %v821
  %854 = vst [vmem:[#allocation2 + $0x70] sm:$0xff] %v822
  %855 = vst [vmem:[#allocation2 + $0x78] sm:$0xff] %v823
  %856 = vst [vmem:[#allocation2 + $0x80] sm:$0xff] %v824
  %857 = vst [vmem:[#allocation2 + $0x88] sm:$0xff] %v825
  %858 = vst [vmem:[#allocation2 + $0x90] sm:$0xff] %v826
  %859 = vst [vmem:[#allocation2 + $0x98] sm:$0xff] %v827
  %860 = vst [vmem:[#allocation2 + $0xa0] sm:$0xff] %v828
  %861 = vst [vmem:[#allocation2 + $0xa8] sm:$0xff] %v829
  %862 = vst [vmem:[#allocation2 + $0xb0] sm:$0xff] %v830
  %863 = vst [vmem:[#allocation2 + $0xb8] sm:$0xff] %v831
  %864 = vst [vmem:[#allocation2 + $0xc0] sm:$0xff] %v832
  %865 = vst [vmem:[#allocation2 + $0xc8] sm:$0xff] %v833
  %866 = vst [vmem:[#allocation2 + $0xd0] sm:$0xff] %v834
  %867 = vst [vmem:[#allocation2 + $0xd8] sm:$0xff] %v835
  %868 = vst [vmem:[#allocation2 + $0xe0] sm:$0xff] %v836
  %869 = vst [vmem:[#allocation2 + $0xe8] sm:$0xff] %v837
  %870 = vst [vmem:[#allocation2 + $0xf0] sm:$0xff] %v838
  %871 = vst [vmem:[#allocation2 + $0xf8] sm:$0xff] %v839
  // Predicated region
  $region22: #{dominant_forward.6} parent=0 // pred_check
    %p872 = pneg %p18
  $region23: #{dominant_forward.6} parent=0 // pred_check_branch
    %874 = sbr.rel (%p872) target = $region25
  $region24: #{dominant_forward.6} parent=0 // pred_region
    %v875 = vld [vmem:[#allocation2] sm:$0xff]
    %v876 = vld [vmem:[#allocation2 + $0x8] sm:$0xff]
    %v877 = vld [vmem:[#allocation2 + $0x10] sm:$0xff]
    %v878 = vld [vmem:[#allocation2 + $0x18] sm:$0xff]
    %v879 = vld [vmem:[#allocation2 + $0x20] sm:$0xff]
    %v880 = vld [vmem:[#allocation2 + $0x28] sm:$0xff]
    %v881 = vld [vmem:[#allocation2 + $0x30] sm:$0xff]
    %v882 = vld [vmem:[#allocation2 + $0x38] sm:$0xff]
    %v883 = vld [vmem:[#allocation2 + $0x40] sm:$0xff]
    %v884 = vld [vmem:[#allocation2 + $0x48] sm:$0xff]
    %v885 = vld [vmem:[#allocation2 + $0x50] sm:$0xff]
    %v886 = vld [vmem:[#allocation2 + $0x58] sm:$0xff]
    %v887 = vld [vmem:[#allocation2 + $0x60] sm:$0xff]
    %v888 = vld [vmem:[#allocation2 + $0x68] sm:$0xff]
    %v889 = vld [vmem:[#allocation2 + $0x70] sm:$0xff]
    %v890 = vld [vmem:[#allocation2 + $0x78] sm:$0xff]
    %v891 = vld [vmem:[#allocation2 + $0x80] sm:$0xff]
    %v892 = vld [vmem:[#allocation2 + $0x88] sm:$0xff]
    %v893 = vld [vmem:[#allocation2 + $0x90] sm:$0xff]
    %v894 = vld [vmem:[#allocation2 + $0x98] sm:$0xff]
    %v895 = vld [vmem:[#allocation2 + $0xa0] sm:$0xff]
    %v896 = vld [vmem:[#allocation2 + $0xa8] sm:$0xff]
    %v897 = vld [vmem:[#allocation2 + $0xb0] sm:$0xff]
    %v898 = vld [vmem:[#allocation2 + $0xb8] sm:$0xff]
    %v899 = vld [vmem:[#allocation2 + $0xc0] sm:$0xff]
    %v900 = vld [vmem:[#allocation2 + $0xc8] sm:$0xff]
    %v901 = vld [vmem:[#allocation2 + $0xd0] sm:$0xff]
    %v902 = vld [vmem:[#allocation2 + $0xd8] sm:$0xff]
    %v903 = vld [vmem:[#allocation2 + $0xe0] sm:$0xff]
    %v904 = vld [vmem:[#allocation2 + $0xe8] sm:$0xff]
    %v905 = vld [vmem:[#allocation2 + $0xf0] sm:$0xff]
    %v906 = vld [vmem:[#allocation2 + $0xf8] sm:$0xff]
    %v907 = vld [vmem:[%s3] sm:$0x1]
    %v909 = vlaneseq
    %v910 = vshrl.u32 %v909, 7
    %v911 = vsub.s32 0, %v910
    %v912 = vrot.slane %v907, %v911
    %v914 = vadd.f32 %v875, %v912
    %v915 = vadd.f32 %v876, %v912
    %v916 = vadd.f32 %v877, %v912
    %v917 = vadd.f32 %v878, %v912
    %v918 = vadd.f32 %v879, %v912
    %v919 = vadd.f32 %v880, %v912
    %v920 = vadd.f32 %v881, %v912
    %v921 = vadd.f32 %v882, %v912
    %v922 = vadd.f32 %v883, %v912
    %v923 = vadd.f32 %v884, %v912
    %v924 = vadd.f32 %v885, %v912
    %v925 = vadd.f32 %v886, %v912
    %v926 = vadd.f32 %v887, %v912
    %v927 = vadd.f32 %v888, %v912
    %v928 = vadd.f32 %v889, %v912
    %v929 = vadd.f32 %v890, %v912
    %v930 = vadd.f32 %v891, %v912
    %v931 = vadd.f32 %v892, %v912
    %v932 = vadd.f32 %v893, %v912
    %v933 = vadd.f32 %v894, %v912
    %v934 = vadd.f32 %v895, %v912
    %v935 = vadd.f32 %v896, %v912
    %v936 = vadd.f32 %v897, %v912
    %v937 = vadd.f32 %v898, %v912
    %v938 = vadd.f32 %v899, %v912
    %v939 = vadd.f32 %v900, %v912
    %v940 = vadd.f32 %v901, %v912
    %v941 = vadd.f32 %v902, %v912
    %v942 = vadd.f32 %v903, %v912
    %v943 = vadd.f32 %v904, %v912
    %v944 = vadd.f32 %v905, %v912
    %v945 = vadd.f32 %v906, %v912
    %v946 = vpack.c.bf16 %v915, %v914
    %v947 = vpack.c.bf16 %v917, %v916
    %v948 = vpack.c.bf16 %v919, %v918
    %v949 = vpack.c.bf16 %v921, %v920
    %v950 = vpack.c.bf16 %v923, %v922
    %v951 = vpack.c.bf16 %v925, %v924
    %v952 = vpack.c.bf16 %v927, %v926
    %v953 = vpack.c.bf16 %v929, %v928
    %v954 = vpack.c.bf16 %v931, %v930
    %v955 = vpack.c.bf16 %v933, %v932
    %v956 = vpack.c.bf16 %v935, %v934
    %v957 = vpack.c.bf16 %v937, %v936
    %v958 = vpack.c.bf16 %v939, %v938
    %v959 = vpack.c.bf16 %v941, %v940
    %v960 = vpack.c.bf16 %v943, %v942
    %v961 = vpack.c.bf16 %v945, %v944
    %v978 = vunpack.c.l.b16 %v946
    %v979 = vunpack.c.h.b16 %v946
    %v980 = vunpack.c.l.b16 %v947
    %v981 = vunpack.c.h.b16 %v947
    %v982 = vunpack.c.l.b16 %v948
    %v983 = vunpack.c.h.b16 %v948
    %v984 = vunpack.c.l.b16 %v949
    %v985 = vunpack.c.h.b16 %v949
    %v986 = vunpack.c.l.b16 %v950
    %v987 = vunpack.c.h.b16 %v950
    %v988 = vunpack.c.l.b16 %v951
    %v989 = vunpack.c.h.b16 %v951
    %v990 = vunpack.c.l.b16 %v952
    %v991 = vunpack.c.h.b16 %v952
    %v992 = vunpack.c.l.b16 %v953
    %v993 = vunpack.c.h.b16 %v953
    %v994 = vunpack.c.l.b16 %v954
    %v995 = vunpack.c.h.b16 %v954
    %v996 = vunpack.c.l.b16 %v955
    %v997 = vunpack.c.h.b16 %v955
    %v998 = vunpack.c.l.b16 %v956
    %v999 = vunpack.c.h.b16 %v956
    %v1000 = vunpack.c.l.b16 %v957
    %v1001 = vunpack.c.h.b16 %v957
    %v1002 = vunpack.c.l.b16 %v958
    %v1003 = vunpack.c.h.b16 %v958
    %v1004 = vunpack.c.l.b16 %v959
    %v1005 = vunpack.c.h.b16 %v959
    %v1006 = vunpack.c.l.b16 %v960
    %v1007 = vunpack.c.h.b16 %v960
    %v1008 = vunpack.c.l.b16 %v961
    %v1009 = vunpack.c.h.b16 %v961
    %v1010 = vpack.c.b16 %v978, %v978
    %v1011 = vpack.c.b16 %v979, %v979
    %v1012 = vpack.c.b16 %v980, %v980
    %v1013 = vpack.c.b16 %v981, %v981
    %v1014 = vpack.c.b16 %v982, %v982
    %v1015 = vpack.c.b16 %v983, %v983
    %v1016 = vpack.c.b16 %v984, %v984
    %v1017 = vpack.c.b16 %v985, %v985
    %v1018 = vpack.c.b16 %v986, %v986
    %v1019 = vpack.c.b16 %v987, %v987
    %v1020 = vpack.c.b16 %v988, %v988
    %v1021 = vpack.c.b16 %v989, %v989
    %v1022 = vpack.c.b16 %v990, %v990
    %v1023 = vpack.c.b16 %v991, %v991
    %v1024 = vpack.c.b16 %v992, %v992
    %v1025 = vpack.c.b16 %v993, %v993
    %v1026 = vpack.c.b16 %v994, %v994
    %v1027 = vpack.c.b16 %v995, %v995
    %v1028 = vpack.c.b16 %v996, %v996
    %v1029 = vpack.c.b16 %v997, %v997
    %v1030 = vpack.c.b16 %v998, %v998
    %v1031 = vpack.c.b16 %v999, %v999
    %v1032 = vpack.c.b16 %v1000, %v1000
    %v1033 = vpack.c.b16 %v1001, %v1001
    %v1034 = vpack.c.b16 %v1002, %v1002
    %v1035 = vpack.c.b16 %v1003, %v1003
    %v1036 = vpack.c.b16 %v1004, %v1004
    %v1037 = vpack.c.b16 %v1005, %v1005
    %v1038 = vpack.c.b16 %v1006, %v1006
    %v1039 = vpack.c.b16 %v1007, %v1007
    %v1040 = vpack.c.b16 %v1008, %v1008
    %v1041 = vpack.c.b16 %v1009, %v1009
    %1074 = vst [vmem:[%s4] sm:$0xf] %v1010
    %1075 = vst [vmem:[%s4 + $0x4] sm:$0xf] %v1011
    %1076 = vst [vmem:[%s4 + $0x8] sm:$0xf] %v1012
    %1077 = vst [vmem:[%s4 + $0xc] sm:$0xf] %v1013
    %1078 = vst [vmem:[%s4 + $0x10] sm:$0xf] %v1014
    %1079 = vst [vmem:[%s4 + $0x14] sm:$0xf] %v1015
    %1080 = vst [vmem:[%s4 + $0x18] sm:$0xf] %v1016
    %1081 = vst [vmem:[%s4 + $0x1c] sm:$0xf] %v1017
    %1082 = vst [vmem:[%s4 + $0x20] sm:$0xf] %v1018
    %1083 = vst [vmem:[%s4 + $0x24] sm:$0xf] %v1019
    %1084 = vst [vmem:[%s4 + $0x28] sm:$0xf] %v1020
    %1085 = vst [vmem:[%s4 + $0x2c] sm:$0xf] %v1021
    %1086 = vst [vmem:[%s4 + $0x30] sm:$0xf] %v1022
    %1087 = vst [vmem:[%s4 + $0x34] sm:$0xf] %v1023
    %1088 = vst [vmem:[%s4 + $0x38] sm:$0xf] %v1024
    %1089 = vst [vmem:[%s4 + $0x3c] sm:$0xf] %v1025
    %1090 = vst [vmem:[%s4 + $0x40] sm:$0xf] %v1026
    %1091 = vst [vmem:[%s4 + $0x44] sm:$0xf] %v1027
    %1092 = vst [vmem:[%s4 + $0x48] sm:$0xf] %v1028
    %1093 = vst [vmem:[%s4 + $0x4c] sm:$0xf] %v1029
    %1094 = vst [vmem:[%s4 + $0x50] sm:$0xf] %v1030
    %1095 = vst [vmem:[%s4 + $0x54] sm:$0xf] %v1031
    %1096 = vst [vmem:[%s4 + $0x58] sm:$0xf] %v1032
    %1097 = vst [vmem:[%s4 + $0x5c] sm:$0xf] %v1033
    %1098 = vst [vmem:[%s4 + $0x60] sm:$0xf] %v1034
    %1099 = vst [vmem:[%s4 + $0x64] sm:$0xf] %v1035
    %1100 = vst [vmem:[%s4 + $0x68] sm:$0xf] %v1036
    %1101 = vst [vmem:[%s4 + $0x6c] sm:$0xf] %v1037
    %1102 = vst [vmem:[%s4 + $0x70] sm:$0xf] %v1038
    %1103 = vst [vmem:[%s4 + $0x74] sm:$0xf] %v1039
    %1104 = vst [vmem:[%s4 + $0x78] sm:$0xf] %v1040
    %1105 = vst [vmem:[%s4 + $0x7c] sm:$0xf] %v1041
  $region25: #{dominant_forward.6} parent=0 // pred_fallthru
    _
  // Predicated region
  $region26: #{dominant_forward.6} parent=0 // pred_check
    _
  $region27: #{dominant_forward.6} parent=0 // pred_check_branch
    %1107 = sbr.rel (0) target = $region29
  $region28: #{dominant_forward.6} parent=0 // pred_region
    _
  $region29: #{dominant_forward.6} parent=0 // pred_fallthru
    _
  // Predicated region
  $region30: #{dominant_forward.6} parent=0 // pred_check
    _
  $region31: #{dominant_forward.6} parent=0 // pred_check_branch
    %1109 = sbr.rel (0) target = $region33
  $region32: #{dominant_forward.6} parent=0 // pred_region
    _
  $region33: #{dominant_forward.6} parent=0 // pred_fallthru
    _

// kernel: dominant_forward.5
$region0: #{dominant_forward.5}
  #allocation0 [shape = 'u32[]', space=smem, size = 0x4, offset = 0x4, fixed_abs, tag = 'smem constant byte address 0x4 - core index']
  #allocation1 [shape = 'u32[144,128]{1,0:T(1,128)}', space=vmem, size = 0x12000, scoped, tag = 'internal scratch']
  #allocation2 [shape = 'f32[256,128]{1,0:T(8,128)}', space=vmem, size = 0x20000, scoped, tag = 'scratch operand']
  %s0 = inlined_call_operand.vmem [shape: bf16[256,256], index: 0, kind: input, shape index: {}]
  %s1 = inlined_call_operand.vmem [shape: bf16[256,128], index: 1, kind: input, shape index: {}]
  %s2 = inlined_call_operand.vmem [shape: bf16[128,128], index: 2, kind: input, shape index: {}]
  %s3 = inlined_call_operand.vmem [shape: f32[1,128], index: 3, kind: input, shape index: {}]
  %s4 = inlined_call_operand.vmem [shape: bf16[256,128], index: 4, kind: output, shape index: {}]
  %s5 = sld [smem:[#allocation0]]
  $region34: #{dominant_forward.5} parent=0
    _
  %s7 = ssub.s32 1, %s5
  %s8 = scalar_select 0, %s7, %s5
  // Predicated region
  $region2: #{dominant_forward.5} parent=0 // pred_check
    _
  $region3: #{dominant_forward.5} parent=0 // pred_check_branch
    %10 = sbr.rel (0) target = $region5
  $region4: #{dominant_forward.5} parent=0 // pred_region
    _
  $region5: #{dominant_forward.5} parent=0 // pred_fallthru
    _
  // Predicated region
  $region6: #{dominant_forward.5} parent=0 // pred_check
    _
  $region7: #{dominant_forward.5} parent=0 // pred_check_branch
    %12 = sbr.rel (0) target = $region9
  $region8: #{dominant_forward.5} parent=0 // pred_region
    _
  $region9: #{dominant_forward.5} parent=0 // pred_fallthru
    _
  // Predicated region
  $region10: #{dominant_forward.5} parent=0 // pred_check
    _
  $region11: #{dominant_forward.5} parent=0 // pred_check_branch
    %14 = sbr.rel (0) target = $region13
  $region12: #{dominant_forward.5} parent=0 // pred_region
    _
  $region13: #{dominant_forward.5} parent=0 // pred_fallthru
    _
  // Predicated region
  $region14: #{dominant_forward.5} parent=0 // pred_check
    _
  $region15: #{dominant_forward.5} parent=0 // pred_check_branch
    %16 = sbr.rel (0) target = $region17
  $region16: #{dominant_forward.5} parent=0 // pred_region
    _
  $region17: #{dominant_forward.5} parent=0 // pred_fallthru
    _
  %p18 = scmp.eq.s32.totalorder 0, 0
  // Predicated region
  $region18: #{dominant_forward.5} parent=0 // pred_check
    %p19 = pneg %p18
  $region19: #{dominant_forward.5} parent=0 // pred_check_branch
    %21 = sbr.rel (%p19) target = $region21
  $region20: #{dominant_forward.5} parent=0 // pred_region
    %22 = vst [vmem:[#allocation2] sm:$0xff] 0.0
    %23 = vst [vmem:[#allocation2 + $0x8] sm:$0xff] 0.0
    %24 = vst [vmem:[#allocation2 + $0x10] sm:$0xff] 0.0
    %25 = vst [vmem:[#allocation2 + $0x18] sm:$0xff] 0.0
    %26 = vst [vmem:[#allocation2 + $0x20] sm:$0xff] 0.0
    %27 = vst [vmem:[#allocation2 + $0x28] sm:$0xff] 0.0
    %28 = vst [vmem:[#allocation2 + $0x30] sm:$0xff] 0.0
    %29 = vst [vmem:[#allocation2 + $0x38] sm:$0xff] 0.0
    %30 = vst [vmem:[#allocation2 + $0x40] sm:$0xff] 0.0
    %31 = vst [vmem:[#allocation2 + $0x48] sm:$0xff] 0.0
    %32 = vst [vmem:[#allocation2 + $0x50] sm:$0xff] 0.0
    %33 = vst [vmem:[#allocation2 + $0x58] sm:$0xff] 0.0
    %34 = vst [vmem:[#allocation2 + $0x60] sm:$0xff] 0.0
    %35 = vst [vmem:[#allocation2 + $0x68] sm:$0xff] 0.0
    %36 = vst [vmem:[#allocation2 + $0x70] sm:$0xff] 0.0
    %37 = vst [vmem:[#allocation2 + $0x78] sm:$0xff] 0.0
    %38 = vst [vmem:[#allocation2 + $0x80] sm:$0xff] 0.0
    %39 = vst [vmem:[#allocation2 + $0x88] sm:$0xff] 0.0
    %40 = vst [vmem:[#allocation2 + $0x90] sm:$0xff] 0.0
    %41 = vst [vmem:[#allocation2 + $0x98] sm:$0xff] 0.0
    %42 = vst [vmem:[#allocation2 + $0xa0] sm:$0xff] 0.0
    %43 = vst [vmem:[#allocation2 + $0xa8] sm:$0xff] 0.0
    %44 = vst [vmem:[#allocation2 + $0xb0] sm:$0xff] 0.0
    %45 = vst [vmem:[#allocation2 + $0xb8] sm:$0xff] 0.0
    %46 = vst [vmem:[#allocation2 + $0xc0] sm:$0xff] 0.0
    %47 = vst [vmem:[#allocation2 + $0xc8] sm:$0xff] 0.0
    %48 = vst [vmem:[#allocation2 + $0xd0] sm:$0xff] 0.0
    %49 = vst [vmem:[#allocation2 + $0xd8] sm:$0xff] 0.0
    %50 = vst [vmem:[#allocation2 + $0xe0] sm:$0xff] 0.0
    %51 = vst [vmem:[#allocation2 + $0xe8] sm:$0xff] 0.0
    %52 = vst [vmem:[#allocation2 + $0xf0] sm:$0xff] 0.0
    %53 = vst [vmem:[#allocation2 + $0xf8] sm:$0xff] 0.0
  $region21: #{dominant_forward.5} parent=0 // pred_fallthru
    _
  %v54 = vld [vmem:[%s1] sm:$0xf]
  %v55 = vld [vmem:[%s1 + $0x4] sm:$0xf]
  %v56 = vld [vmem:[%s1 + $0x8] sm:$0xf]
  %v57 = vld [vmem:[%s1 + $0xc] sm:$0xf]
  %v58 = vld [vmem:[%s1 + $0x10] sm:$0xf]
  %v59 = vld [vmem:[%s1 + $0x14] sm:$0xf]
  %v60 = vld [vmem:[%s1 + $0x18] sm:$0xf]
  %v61 = vld [vmem:[%s1 + $0x1c] sm:$0xf]
  %v62 = vld [vmem:[%s1 + $0x20] sm:$0xf]
  %v63 = vld [vmem:[%s1 + $0x24] sm:$0xf]
  %v64 = vld [vmem:[%s1 + $0x28] sm:$0xf]
  %v65 = vld [vmem:[%s1 + $0x2c] sm:$0xf]
  %v66 = vld [vmem:[%s1 + $0x30] sm:$0xf]
  %v67 = vld [vmem:[%s1 + $0x34] sm:$0xf]
  %v68 = vld [vmem:[%s1 + $0x38] sm:$0xf]
  %v69 = vld [vmem:[%s1 + $0x3c] sm:$0xf]
  %v70 = vld [vmem:[%s1 + $0x40] sm:$0xf]
  %v71 = vld [vmem:[%s1 + $0x44] sm:$0xf]
  %v72 = vld [vmem:[%s1 + $0x48] sm:$0xf]
  %v73 = vld [vmem:[%s1 + $0x4c] sm:$0xf]
  %v74 = vld [vmem:[%s1 + $0x50] sm:$0xf]
  %v75 = vld [vmem:[%s1 + $0x54] sm:$0xf]
  %v76 = vld [vmem:[%s1 + $0x58] sm:$0xf]
  %v77 = vld [vmem:[%s1 + $0x5c] sm:$0xf]
  %v78 = vld [vmem:[%s1 + $0x60] sm:$0xf]
  %v79 = vld [vmem:[%s1 + $0x64] sm:$0xf]
  %v80 = vld [vmem:[%s1 + $0x68] sm:$0xf]
  %v81 = vld [vmem:[%s1 + $0x6c] sm:$0xf]
  %v82 = vld [vmem:[%s1 + $0x70] sm:$0xf]
  %v83 = vld [vmem:[%s1 + $0x74] sm:$0xf]
  %v84 = vld [vmem:[%s1 + $0x78] sm:$0xf]
  %v85 = vld [vmem:[%s1 + $0x7c] sm:$0xf]
  %v86 = vld [vmem:[%s2] sm:$0xf]
  %v87 = vld [vmem:[%s2 + $0x4] sm:$0xf]
  %v88 = vld [vmem:[%s2 + $0x8] sm:$0xf]
  %v89 = vld [vmem:[%s2 + $0xc] sm:$0xf]
  %v90 = vld [vmem:[%s2 + $0x10] sm:$0xf]
  %v91 = vld [vmem:[%s2 + $0x14] sm:$0xf]
  %v92 = vld [vmem:[%s2 + $0x18] sm:$0xf]
  %v93 = vld [vmem:[%s2 + $0x1c] sm:$0xf]
  %v94 = vld [vmem:[%s2 + $0x20] sm:$0xf]
  %v95 = vld [vmem:[%s2 + $0x24] sm:$0xf]
  %v96 = vld [vmem:[%s2 + $0x28] sm:$0xf]
  %v97 = vld [vmem:[%s2 + $0x2c] sm:$0xf]
  %v98 = vld [vmem:[%s2 + $0x30] sm:$0xf]
  %v99 = vld [vmem:[%s2 + $0x34] sm:$0xf]
  %v100 = vld [vmem:[%s2 + $0x38] sm:$0xf]
  %v101 = vld [vmem:[%s2 + $0x3c] sm:$0xf]
  %v134 = vunpack.c.l.b16 %v54
  %v135 = vunpack.c.l.b16 %v55
  %v136 = vunpack.c.l.b16 %v56
  %v137 = vunpack.c.l.b16 %v57
  %v138 = vunpack.c.l.b16 %v58
  %v139 = vunpack.c.l.b16 %v59
  %v140 = vunpack.c.l.b16 %v60
  %v141 = vunpack.c.l.b16 %v61
  %v142 = vunpack.c.l.b16 %v62
  %v143 = vunpack.c.l.b16 %v63
  %v144 = vunpack.c.l.b16 %v64
  %v145 = vunpack.c.l.b16 %v65
  %v146 = vunpack.c.l.b16 %v66
  %v147 = vunpack.c.l.b16 %v67
  %v148 = vunpack.c.l.b16 %v68
  %v149 = vunpack.c.l.b16 %v69
  %v150 = vunpack.c.l.b16 %v70
  %v151 = vunpack.c.l.b16 %v71
  %v152 = vunpack.c.l.b16 %v72
  %v153 = vunpack.c.l.b16 %v73
  %v154 = vunpack.c.l.b16 %v74
  %v155 = vunpack.c.l.b16 %v75
  %v156 = vunpack.c.l.b16 %v76
  %v157 = vunpack.c.l.b16 %v77
  %v158 = vunpack.c.l.b16 %v78
  %v159 = vunpack.c.l.b16 %v79
  %v160 = vunpack.c.l.b16 %v80
  %v161 = vunpack.c.l.b16 %v81
  %v162 = vunpack.c.l.b16 %v82
  %v163 = vunpack.c.l.b16 %v83
  %v164 = vunpack.c.l.b16 %v84
  %v165 = vunpack.c.l.b16 %v85
  %v166 = vpack.c.b16 %v135, %v134
  %v167 = vpack.c.b16 %v137, %v136
  %v168 = vpack.c.b16 %v139, %v138
  %v169 = vpack.c.b16 %v141, %v140
  %v170 = vpack.c.b16 %v143, %v142
  %v171 = vpack.c.b16 %v145, %v144
  %v172 = vpack.c.b16 %v147, %v146
  %v173 = vpack.c.b16 %v149, %v148
  %v174 = vpack.c.b16 %v151, %v150
  %v175 = vpack.c.b16 %v153, %v152
  %v176 = vpack.c.b16 %v155, %v154
  %v177 = vpack.c.b16 %v157, %v156
  %v178 = vpack.c.b16 %v159, %v158
  %v179 = vpack.c.b16 %v161, %v160
  %v180 = vpack.c.b16 %v163, %v162
  %v181 = vpack.c.b16 %v165, %v164
  %v214 = vunpack.c.l.b16 %v86
  %v215 = vunpack.c.l.b16 %v87
  %v216 = vunpack.c.l.b16 %v88
  %v217 = vunpack.c.l.b16 %v89
  %v218 = vunpack.c.l.b16 %v90
  %v219 = vunpack.c.l.b16 %v91
  %v220 = vunpack.c.l.b16 %v92
  %v221 = vunpack.c.l.b16 %v93
  %v222 = vunpack.c.l.b16 %v94
  %v223 = vunpack.c.l.b16 %v95
  %v224 = vunpack.c.l.b16 %v96
  %v225 = vunpack.c.l.b16 %v97
  %v226 = vunpack.c.l.b16 %v98
  %v227 = vunpack.c.l.b16 %v99
  %v228 = vunpack.c.l.b16 %v100
  %v229 = vunpack.c.l.b16 %v101
  %v230 = vpack.c.b16 %v215, %v214
  %v231 = vpack.c.b16 %v217, %v216
  %v232 = vpack.c.b16 %v219, %v218
  %v233 = vpack.c.b16 %v221, %v220
  %v234 = vpack.c.b16 %v223, %v222
  %v235 = vpack.c.b16 %v225, %v224
  %v236 = vpack.c.b16 %v227, %v226
  %v237 = vpack.c.b16 %v229, %v228
  %246 = vmatprep.subr.bf16.mxu0 0
  %247 = vmatpush1.bf16.msra.mxu0 %v230
  %248 = vmatprep.subr.bf16.mxu0 0
  %249 = vmatpush1.bf16.msra.mxu0 %v231
  %250 = vmatprep.subr.bf16.mxu0 0
  %251 = vmatpush1.bf16.msra.mxu0 %v232
  %252 = vmatprep.subr.bf16.mxu0 0
  %253 = vmatpush1.bf16.msra.mxu0 %v233
  %254 = vmatprep.subr.bf16.mxu0 0
  %255 = vmatpush1.bf16.msra.mxu0 %v234
  %256 = vmatprep.subr.bf16.mxu0 0
  %257 = vmatpush1.bf16.msra.mxu0 %v235
  %258 = vmatprep.subr.bf16.mxu0 0
  %259 = vmatpush1.bf16.msra.mxu0 %v236
  %260 = vmatprep.subr.bf16.mxu0 0
  %261 = vmatpush1.bf16.msra.mxu0 %v237
  %262 = vmatprep.subr.bf16.mxu0 0
  %263 = vmatpush1.bf16.msra.mxu0 0
  %264 = vmatprep.subr.bf16.mxu0 0
  %265 = vmatpush1.bf16.msra.mxu0 0
  %266 = vmatprep.subr.bf16.mxu0 0
  %267 = vmatpush1.bf16.msra.mxu0 0
  %268 = vmatprep.subr.bf16.mxu0 0
  %269 = vmatpush1.bf16.msra.mxu0 0
  %270 = vmatprep.subr.bf16.mxu0 0
  %271 = vmatpush1.bf16.msra.mxu0 0
  %272 = vmatprep.subr.bf16.mxu0 0
  %273 = vmatpush1.bf16.msra.mxu0 0
  %274 = vmatprep.subr.bf16.mxu0 0
  %275 = vmatpush1.bf16.msra.mxu0 0
  %276 = vmatprep.subr.bf16.mxu0 0
  %277 = vmatpush1.bf16.msra.mxu0 0
  %278 = vmatprep.mubr.bf16.mxu0 0
  %279 = vmatmul.mubr.bf16.gmra.mrb[0].mxu0 %v166
  %v280 = vpop.f32.mrb[0].mxu0
  %v281 = vadd.f32 0.0, %v280
  %v282 = vpop.f32.mrb[0].mxu0
  %v283 = vpop.f32.mrb[0].mxu0
  %v284 = vadd.f32 0.0, %v283
  %v285 = vpop.f32.mrb[0].mxu0
  %286 = vmatprep.mubr.bf16.mxu0 0
  %287 = vmatmul.mubr.bf16.gmra.mrb[0].mxu0 %v167
  %v288 = vpop.f32.mrb[0].mxu0
  %v289 = vadd.f32 0.0, %v288
  %v290 = vpop.f32.mrb[0].mxu0
  %v291 = vpop.f32.mrb[0].mxu0
  %v292 = vadd.f32 0.0, %v291
  %v293 = vpop.f32.mrb[0].mxu0
  %294 = vmatprep.mubr.bf16.mxu0 0
  %295 = vmatmul.mubr.bf16.gmra.mrb[0].mxu0 %v168
  %v296 = vpop.f32.mrb[0].mxu0
  %v297 = vadd.f32 0.0, %v296
  %v298 = vpop.f32.mrb[0].mxu0
  %v299 = vpop.f32.mrb[0].mxu0
  %v300 = vadd.f32 0.0, %v299
  %v301 = vpop.f32.mrb[0].mxu0
  %302 = vmatprep.mubr.bf16.mxu0 0
  %303 = vmatmul.mubr.bf16.gmra.mrb[0].mxu0 %v169
  %v304 = vpop.f32.mrb[0].mxu0
  %v305 = vadd.f32 0.0, %v304
  %v306 = vpop.f32.mrb[0].mxu0
  %v307 = vpop.f32.mrb[0].mxu0
  %v308 = vadd.f32 0.0, %v307
  %v309 = vpop.f32.mrb[0].mxu0
  %310 = vmatprep.mubr.bf16.mxu0 0
  %311 = vmatmul.mubr.bf16.gmra.mrb[0].mxu0 %v170
  %v312 = vpop.f32.mrb[0].mxu0
  %v313 = vadd.f32 0.0, %v312
  %v314 = vpop.f32.mrb[0].mxu0
  %v315 = vpop.f32.mrb[0].mxu0
  %v316 = vadd.f32 0.0, %v315
  %v317 = vpop.f32.mrb[0].mxu0
  %318 = vmatprep.mubr.bf16.mxu0 0
  %319 = vmatmul.mubr.bf16.gmra.mrb[0].mxu0 %v171
  %v320 = vpop.f32.mrb[0].mxu0
  %v321 = vadd.f32 0.0, %v320
  %v322 = vpop.f32.mrb[0].mxu0
  %v323 = vpop.f32.mrb[0].mxu0
  %v324 = vadd.f32 0.0, %v323
  %v325 = vpop.f32.mrb[0].mxu0
  %326 = vmatprep.mubr.bf16.mxu0 0
  %327 = vmatmul.mubr.bf16.gmra.mrb[0].mxu0 %v172
  %v328 = vpop.f32.mrb[0].mxu0
  %v329 = vadd.f32 0.0, %v328
  %v330 = vpop.f32.mrb[0].mxu0
  %v331 = vpop.f32.mrb[0].mxu0
  %v332 = vadd.f32 0.0, %v331
  %v333 = vpop.f32.mrb[0].mxu0
  %334 = vmatprep.mubr.bf16.mxu0 0
  %335 = vmatmul.mubr.bf16.gmra.mrb[0].mxu0 %v173
  %v336 = vpop.f32.mrb[0].mxu0
  %v337 = vadd.f32 0.0, %v336
  %v338 = vpop.f32.mrb[0].mxu0
  %v339 = vpop.f32.mrb[0].mxu0
  %v340 = vadd.f32 0.0, %v339
  %v341 = vpop.f32.mrb[0].mxu0
  %342 = vmatprep.mubr.bf16.mxu0 0
  %343 = vmatmul.mubr.bf16.gmra.mrb[0].mxu0 %v174
  %v344 = vpop.f32.mrb[0].mxu0
  %v345 = vadd.f32 0.0, %v344
  %v346 = vpop.f32.mrb[0].mxu0
  %v347 = vpop.f32.mrb[0].mxu0
  %v348 = vadd.f32 0.0, %v347
  %v349 = vpop.f32.mrb[0].mxu0
  %350 = vmatprep.mubr.bf16.mxu0 0
  %351 = vmatmul.mubr.bf16.gmra.mrb[0].mxu0 %v175
  %v352 = vpop.f32.mrb[0].mxu0
  %v353 = vadd.f32 0.0, %v352
  %v354 = vpop.f32.mrb[0].mxu0
  %v355 = vpop.f32.mrb[0].mxu0
  %v356 = vadd.f32 0.0, %v355
  %v357 = vpop.f32.mrb[0].mxu0
  %358 = vmatprep.mubr.bf16.mxu0 0
  %359 = vmatmul.mubr.bf16.gmra.mrb[0].mxu0 %v176
  %v360 = vpop.f32.mrb[0].mxu0
  %v361 = vadd.f32 0.0, %v360
  %v362 = vpop.f32.mrb[0].mxu0
  %v363 = vpop.f32.mrb[0].mxu0
  %v364 = vadd.f32 0.0, %v363
  %v365 = vpop.f32.mrb[0].mxu0
  %366 = vmatprep.mubr.bf16.mxu0 0
  %367 = vmatmul.mubr.bf16.gmra.mrb[0].mxu0 %v177
  %v368 = vpop.f32.mrb[0].mxu0
  %v369 = vadd.f32 0.0, %v368
  %v370 = vpop.f32.mrb[0].mxu0
  %v371 = vpop.f32.mrb[0].mxu0
  %v372 = vadd.f32 0.0, %v371
  %v373 = vpop.f32.mrb[0].mxu0
  %374 = vmatprep.mubr.bf16.mxu0 0
  %375 = vmatmul.mubr.bf16.gmra.mrb[0].mxu0 %v178
  %v376 = vpop.f32.mrb[0].mxu0
  %v377 = vadd.f32 0.0, %v376
  %v378 = vpop.f32.mrb[0].mxu0
  %v379 = vpop.f32.mrb[0].mxu0
  %v380 = vadd.f32 0.0, %v379
  %v381 = vpop.f32.mrb[0].mxu0
  %382 = vmatprep.mubr.bf16.mxu0 0
  %383 = vmatmul.mubr.bf16.gmra.mrb[0].mxu0 %v179
  %v384 = vpop.f32.mrb[0].mxu0
  %v385 = vadd.f32 0.0, %v384
  %v386 = vpop.f32.mrb[0].mxu0
  %v387 = vpop.f32.mrb[0].mxu0
  %v388 = vadd.f32 0.0, %v387
  %v389 = vpop.f32.mrb[0].mxu0
  %390 = vmatprep.mubr.bf16.mxu0 0
  %391 = vmatmul.mubr.bf16.gmra.mrb[0].mxu0 %v180
  %v392 = vpop.f32.mrb[0].mxu0
  %v393 = vadd.f32 0.0, %v392
  %v394 = vpop.f32.mrb[0].mxu0
  %v395 = vpop.f32.mrb[0].mxu0
  %v396 = vadd.f32 0.0, %v395
  %v397 = vpop.f32.mrb[0].mxu0
  %398 = vmatprep.mubr.bf16.mxu0 0
  %399 = vmatmul.mubr.bf16.gmra.mrb[0].mxu0 %v181
  %v400 = vpop.f32.mrb[0].mxu0
  %v401 = vadd.f32 0.0, %v400
  %v402 = vpop.f32.mrb[0].mxu0
  %v403 = vpop.f32.mrb[0].mxu0
  %v404 = vadd.f32 0.0, %v403
  %v405 = vpop.f32.mrb[0].mxu0
  %406 = vdwg.mxu0
  %v407 = vpack.c.bf16 %v284, %v281
  %v408 = vpack.c.bf16 %v292, %v289
  %v409 = vpack.c.bf16 %v300, %v297
  %v410 = vpack.c.bf16 %v308, %v305
  %v411 = vpack.c.bf16 %v316, %v313
  %v412 = vpack.c.bf16 %v324, %v321
  %v413 = vpack.c.bf16 %v332, %v329
  %v414 = vpack.c.bf16 %v340, %v337
  %v415 = vpack.c.bf16 %v348, %v345
  %v416 = vpack.c.bf16 %v356, %v353
  %v417 = vpack.c.bf16 %v364, %v361
  %v418 = vpack.c.bf16 %v372, %v369
  %v419 = vpack.c.bf16 %v380, %v377
  %v420 = vpack.c.bf16 %v388, %v385
  %v421 = vpack.c.bf16 %v396, %v393
  %v422 = vpack.c.bf16 %v404, %v401
  %v423 = vld [vmem:[#allocation2] sm:$0xff]
  %v424 = vld [vmem:[#allocation2 + $0x8] sm:$0xff]
  %v425 = vld [vmem:[#allocation2 + $0x10] sm:$0xff]
  %v426 = vld [vmem:[#allocation2 + $0x18] sm:$0xff]
  %v427 = vld [vmem:[#allocation2 + $0x20] sm:$0xff]
  %v428 = vld [vmem:[#allocation2 + $0x28] sm:$0xff]
  %v429 = vld [vmem:[#allocation2 + $0x30] sm:$0xff]
  %v430 = vld [vmem:[#allocation2 + $0x38] sm:$0xff]
  %v431 = vld [vmem:[#allocation2 + $0x40] sm:$0xff]
  %v432 = vld [vmem:[#allocation2 + $0x48] sm:$0xff]
  %v433 = vld [vmem:[#allocation2 + $0x50] sm:$0xff]
  %v434 = vld [vmem:[#allocation2 + $0x58] sm:$0xff]
  %v435 = vld [vmem:[#allocation2 + $0x60] sm:$0xff]
  %v436 = vld [vmem:[#allocation2 + $0x68] sm:$0xff]
  %v437 = vld [vmem:[#allocation2 + $0x70] sm:$0xff]
  %v438 = vld [vmem:[#allocation2 + $0x78] sm:$0xff]
  %v439 = vld [vmem:[#allocation2 + $0x80] sm:$0xff]
  %v440 = vld [vmem:[#allocation2 + $0x88] sm:$0xff]
  %v441 = vld [vmem:[#allocation2 + $0x90] sm:$0xff]
  %v442 = vld [vmem:[#allocation2 + $0x98] sm:$0xff]
  %v443 = vld [vmem:[#allocation2 + $0xa0] sm:$0xff]
  %v444 = vld [vmem:[#allocation2 + $0xa8] sm:$0xff]
  %v445 = vld [vmem:[#allocation2 + $0xb0] sm:$0xff]
  %v446 = vld [vmem:[#allocation2 + $0xb8] sm:$0xff]
  %v447 = vld [vmem:[#allocation2 + $0xc0] sm:$0xff]
  %v448 = vld [vmem:[#allocation2 + $0xc8] sm:$0xff]
  %v449 = vld [vmem:[#allocation2 + $0xd0] sm:$0xff]
  %v450 = vld [vmem:[#allocation2 + $0xd8] sm:$0xff]
  %v451 = vld [vmem:[#allocation2 + $0xe0] sm:$0xff]
  %v452 = vld [vmem:[#allocation2 + $0xe8] sm:$0xff]
  %v453 = vld [vmem:[#allocation2 + $0xf0] sm:$0xff]
  %v454 = vld [vmem:[#allocation2 + $0xf8] sm:$0xff]
  %v455 = vld [vmem:[%s0] sm:$0xff]
  %v456 = vld [vmem:[%s0 + $0x8] sm:$0xff]
  %v457 = vld [vmem:[%s0 + $0x10] sm:$0xff]
  %v458 = vld [vmem:[%s0 + $0x18] sm:$0xff]
  %v459 = vld [vmem:[%s0 + $0x20] sm:$0xff]
  %v460 = vld [vmem:[%s0 + $0x28] sm:$0xff]
  %v461 = vld [vmem:[%s0 + $0x30] sm:$0xff]
  %v462 = vld [vmem:[%s0 + $0x38] sm:$0xff]
  %v463 = vld [vmem:[%s0 + $0x40] sm:$0xff]
  %v464 = vld [vmem:[%s0 + $0x48] sm:$0xff]
  %v465 = vld [vmem:[%s0 + $0x50] sm:$0xff]
  %v466 = vld [vmem:[%s0 + $0x58] sm:$0xff]
  %v467 = vld [vmem:[%s0 + $0x60] sm:$0xff]
  %v468 = vld [vmem:[%s0 + $0x68] sm:$0xff]
  %v469 = vld [vmem:[%s0 + $0x70] sm:$0xff]
  %v470 = vld [vmem:[%s0 + $0x78] sm:$0xff]
  %v471 = vld [vmem:[%s0 + $0x80] sm:$0xff]
  %v472 = vld [vmem:[%s0 + $0x88] sm:$0xff]
  %v473 = vld [vmem:[%s0 + $0x90] sm:$0xff]
  %v474 = vld [vmem:[%s0 + $0x98] sm:$0xff]
  %v475 = vld [vmem:[%s0 + $0xa0] sm:$0xff]
  %v476 = vld [vmem:[%s0 + $0xa8] sm:$0xff]
  %v477 = vld [vmem:[%s0 + $0xb0] sm:$0xff]
  %v478 = vld [vmem:[%s0 + $0xb8] sm:$0xff]
  %v479 = vld [vmem:[%s0 + $0xc0] sm:$0xff]
  %v480 = vld [vmem:[%s0 + $0xc8] sm:$0xff]
  %v481 = vld [vmem:[%s0 + $0xd0] sm:$0xff]
  %v482 = vld [vmem:[%s0 + $0xd8] sm:$0xff]
  %v483 = vld [vmem:[%s0 + $0xe0] sm:$0xff]
  %v484 = vld [vmem:[%s0 + $0xe8] sm:$0xff]
  %v485 = vld [vmem:[%s0 + $0xf0] sm:$0xff]
  %v486 = vld [vmem:[%s0 + $0xf8] sm:$0xff]
  %v519 = vunpack.c.l.b16 %v455
  %v520 = vunpack.c.h.b16 %v455
  %v521 = vunpack.c.l.b16 %v456
  %v522 = vunpack.c.h.b16 %v456
  %v523 = vunpack.c.l.b16 %v457
  %v524 = vunpack.c.h.b16 %v457
  %v525 = vunpack.c.l.b16 %v458
  %v526 = vunpack.c.h.b16 %v458
  %v527 = vunpack.c.l.b16 %v459
  %v528 = vunpack.c.h.b16 %v459
  %v529 = vunpack.c.l.b16 %v460
  %v530 = vunpack.c.h.b16 %v460
  %v531 = vunpack.c.l.b16 %v461
  %v532 = vunpack.c.h.b16 %v461
  %v533 = vunpack.c.l.b16 %v462
  %v534 = vunpack.c.h.b16 %v462
  %v535 = vunpack.c.l.b16 %v463
  %v536 = vunpack.c.h.b16 %v463
  %v537 = vunpack.c.l.b16 %v464
  %v538 = vunpack.c.h.b16 %v464
  %v539 = vunpack.c.l.b16 %v465
  %v540 = vunpack.c.h.b16 %v465
  %v541 = vunpack.c.l.b16 %v466
  %v542 = vunpack.c.h.b16 %v466
  %v543 = vunpack.c.l.b16 %v467
  %v544 = vunpack.c.h.b16 %v467
  %v545 = vunpack.c.l.b16 %v468
  %v546 = vunpack.c.h.b16 %v468
  %v547 = vunpack.c.l.b16 %v469
  %v548 = vunpack.c.h.b16 %v469
  %v549 = vunpack.c.l.b16 %v470
  %v550 = vunpack.c.h.b16 %v470
  %v551 = vunpack.c.l.b16 %v471
  %v552 = vunpack.c.h.b16 %v471
  %v553 = vunpack.c.l.b16 %v472
  %v554 = vunpack.c.h.b16 %v472
  %v555 = vunpack.c.l.b16 %v473
  %v556 = vunpack.c.h.b16 %v473
  %v557 = vunpack.c.l.b16 %v474
  %v558 = vunpack.c.h.b16 %v474
  %v559 = vunpack.c.l.b16 %v475
  %v560 = vunpack.c.h.b16 %v475
  %v561 = vunpack.c.l.b16 %v476
  %v562 = vunpack.c.h.b16 %v476
  %v563 = vunpack.c.l.b16 %v477
  %v564 = vunpack.c.h.b16 %v477
  %v565 = vunpack.c.l.b16 %v478
  %v566 = vunpack.c.h.b16 %v478
  %v567 = vunpack.c.l.b16 %v479
  %v568 = vunpack.c.h.b16 %v479
  %v569 = vunpack.c.l.b16 %v480
  %v570 = vunpack.c.h.b16 %v480
  %v571 = vunpack.c.l.b16 %v481
  %v572 = vunpack.c.h.b16 %v481
  %v573 = vunpack.c.l.b16 %v482
  %v574 = vunpack.c.h.b16 %v482
  %v575 = vunpack.c.l.b16 %v483
  %v576 = vunpack.c.h.b16 %v483
  %v577 = vunpack.c.l.b16 %v484
  %v578 = vunpack.c.h.b16 %v484
  %v579 = vunpack.c.l.b16 %v485
  %v580 = vunpack.c.h.b16 %v485
  %v581 = vunpack.c.l.b16 %v486
  %v582 = vunpack.c.h.b16 %v486
  %v583 = vpack.c.b16 %v521, %v519
  %v584 = vpack.c.b16 %v522, %v520
  %v585 = vpack.c.b16 %v525, %v523
  %v586 = vpack.c.b16 %v526, %v524
  %v587 = vpack.c.b16 %v529, %v527
  %v588 = vpack.c.b16 %v530, %v528
  %v589 = vpack.c.b16 %v533, %v531
  %v590 = vpack.c.b16 %v534, %v532
  %v591 = vpack.c.b16 %v537, %v535
  %v592 = vpack.c.b16 %v538, %v536
  %v593 = vpack.c.b16 %v541, %v539
  %v594 = vpack.c.b16 %v542, %v540
  %v595 = vpack.c.b16 %v545, %v543
  %v596 = vpack.c.b16 %v546, %v544
  %v597 = vpack.c.b16 %v549, %v547
  %v598 = vpack.c.b16 %v550, %v548
  %v599 = vpack.c.b16 %v553, %v551
  %v600 = vpack.c.b16 %v554, %v552
  %v601 = vpack.c.b16 %v557, %v555
  %v602 = vpack.c.b16 %v558, %v556
  %v603 = vpack.c.b16 %v561, %v559
  %v604 = vpack.c.b16 %v562, %v560
  %v605 = vpack.c.b16 %v565, %v563
  %v606 = vpack.c.b16 %v566, %v564
  %v607 = vpack.c.b16 %v569, %v567
  %v608 = vpack.c.b16 %v570, %v568
  %v609 = vpack.c.b16 %v573, %v571
  %v610 = vpack.c.b16 %v574, %v572
  %v611 = vpack.c.b16 %v577, %v575
  %v612 = vpack.c.b16 %v578, %v576
  %v613 = vpack.c.b16 %v581, %v579
  %v614 = vpack.c.b16 %v582, %v580
  %647 = vmatprep.subr.bf16.mxu0 0
  %648 = vmatpush1.bf16.msra.mxu0 %v407
  %649 = vmatprep.subr.bf16.mxu0 0
  %650 = vmatpush1.bf16.msra.mxu0 %v408
  %651 = vmatprep.subr.bf16.mxu0 0
  %652 = vmatpush1.bf16.msra.mxu0 %v409
  %653 = vmatprep.subr.bf16.mxu0 0
  %654 = vmatpush1.bf16.msra.mxu0 %v410
  %655 = vmatprep.subr.bf16.mxu0 0
  %656 = vmatpush1.bf16.msra.mxu0 %v411
  %657 = vmatprep.subr.bf16.mxu0 0
  %658 = vmatpush1.bf16.msra.mxu0 %v412
  %659 = vmatprep.subr.bf16.mxu0 0
  %660 = vmatpush1.bf16.msra.mxu0 %v413
  %661 = vmatprep.subr.bf16.mxu0 0
  %662 = vmatpush1.bf16.msra.mxu0 %v414
  %663 = vmatprep.subr.bf16.mxu0 0
  %664 = vmatpush1.bf16.msra.mxu0 %v415
  %665 = vmatprep.subr.bf16.mxu0 0
  %666 = vmatpush1.bf16.msra.mxu0 %v416
  %667 = vmatprep.subr.bf16.mxu0 0
  %668 = vmatpush1.bf16.msra.mxu0 %v417
  %669 = vmatprep.subr.bf16.mxu0 0
  %670 = vmatpush1.bf16.msra.mxu0 %v418
  %671 = vmatprep.subr.bf16.mxu0 0
  %672 = vmatpush1.bf16.msra.mxu0 %v419
  %673 = vmatprep.subr.bf16.mxu0 0
  %674 = vmatpush1.bf16.msra.mxu0 %v420
  %675 = vmatprep.subr.bf16.mxu0 0
  %676 = vmatpush1.bf16.msra.mxu0 %v421
  %677 = vmatprep.subr.bf16.mxu0 0
  %678 = vmatpush1.bf16.msra.mxu0 %v422
  %679 = vmatprep.mubr.bf16.mxu0 %v584
  %680 = vmatmul.mubr.bf16.gmra.mrb[0].mxu0 %v583
  %v681 = vpop.f32.mrb[0].mxu0
  %v682 = vadd.f32 0.0, %v681
  %v683 = vpop.f32.mrb[0].mxu0
  %v684 = vpop.f32.mrb[0].mxu0
  %v685 = vadd.f32 0.0, %v684
  %v686 = vpop.f32.mrb[0].mxu0
  %687 = vmatprep.mubr.bf16.mxu0 %v586
  %688 = vmatmul.mubr.bf16.gmra.mrb[0].mxu0 %v585
  %v689 = vpop.f32.mrb[0].mxu0
  %v690 = vadd.f32 0.0, %v689
  %v691 = vpop.f32.mrb[0].mxu0
  %v692 = vpop.f32.mrb[0].mxu0
  %v693 = vadd.f32 0.0, %v692
  %v694 = vpop.f32.mrb[0].mxu0
  %695 = vmatprep.mubr.bf16.mxu0 %v588
  %696 = vmatmul.mubr.bf16.gmra.mrb[0].mxu0 %v587
  %v697 = vpop.f32.mrb[0].mxu0
  %v698 = vadd.f32 0.0, %v697
  %v699 = vpop.f32.mrb[0].mxu0
  %v700 = vpop.f32.mrb[0].mxu0
  %v701 = vadd.f32 0.0, %v700
  %v702 = vpop.f32.mrb[0].mxu0
  %703 = vmatprep.mubr.bf16.mxu0 %v590
  %704 = vmatmul.mubr.bf16.gmra.mrb[0].mxu0 %v589
  %v705 = vpop.f32.mrb[0].mxu0
  %v706 = vadd.f32 0.0, %v705
  %v707 = vpop.f32.mrb[0].mxu0
  %v708 = vpop.f32.mrb[0].mxu0
  %v709 = vadd.f32 0.0, %v708
  %v710 = vpop.f32.mrb[0].mxu0
  %711 = vmatprep.mubr.bf16.mxu0 %v592
  %712 = vmatmul.mubr.bf16.gmra.mrb[0].mxu0 %v591
  %v713 = vpop.f32.mrb[0].mxu0
  %v714 = vadd.f32 0.0, %v713
  %v715 = vpop.f32.mrb[0].mxu0
  %v716 = vpop.f32.mrb[0].mxu0
  %v717 = vadd.f32 0.0, %v716
  %v718 = vpop.f32.mrb[0].mxu0
  %719 = vmatprep.mubr.bf16.mxu0 %v594
  %720 = vmatmul.mubr.bf16.gmra.mrb[0].mxu0 %v593
  %v721 = vpop.f32.mrb[0].mxu0
  %v722 = vadd.f32 0.0, %v721
  %v723 = vpop.f32.mrb[0].mxu0
  %v724 = vpop.f32.mrb[0].mxu0
  %v725 = vadd.f32 0.0, %v724
  %v726 = vpop.f32.mrb[0].mxu0
  %727 = vmatprep.mubr.bf16.mxu0 %v596
  %728 = vmatmul.mubr.bf16.gmra.mrb[0].mxu0 %v595
  %v729 = vpop.f32.mrb[0].mxu0
  %v730 = vadd.f32 0.0, %v729
  %v731 = vpop.f32.mrb[0].mxu0
  %v732 = vpop.f32.mrb[0].mxu0
  %v733 = vadd.f32 0.0, %v732
  %v734 = vpop.f32.mrb[0].mxu0
  %735 = vmatprep.mubr.bf16.mxu0 %v598
  %736 = vmatmul.mubr.bf16.gmra.mrb[0].mxu0 %v597
  %v737 = vpop.f32.mrb[0].mxu0
  %v738 = vadd.f32 0.0, %v737
  %v739 = vpop.f32.mrb[0].mxu0
  %v740 = vpop.f32.mrb[0].mxu0
  %v741 = vadd.f32 0.0, %v740
  %v742 = vpop.f32.mrb[0].mxu0
  %743 = vmatprep.mubr.bf16.mxu0 %v600
  %744 = vmatmul.mubr.bf16.gmra.mrb[0].mxu0 %v599
  %v745 = vpop.f32.mrb[0].mxu0
  %v746 = vadd.f32 0.0, %v745
  %v747 = vpop.f32.mrb[0].mxu0
  %v748 = vpop.f32.mrb[0].mxu0
  %v749 = vadd.f32 0.0, %v748
  %v750 = vpop.f32.mrb[0].mxu0
  %751 = vmatprep.mubr.bf16.mxu0 %v602
  %752 = vmatmul.mubr.bf16.gmra.mrb[0].mxu0 %v601
  %v753 = vpop.f32.mrb[0].mxu0
  %v754 = vadd.f32 0.0, %v753
  %v755 = vpop.f32.mrb[0].mxu0
  %v756 = vpop.f32.mrb[0].mxu0
  %v757 = vadd.f32 0.0, %v756
  %v758 = vpop.f32.mrb[0].mxu0
  %759 = vmatprep.mubr.bf16.mxu0 %v604
  %760 = vmatmul.mubr.bf16.gmra.mrb[0].mxu0 %v603
  %v761 = vpop.f32.mrb[0].mxu0
  %v762 = vadd.f32 0.0, %v761
  %v763 = vpop.f32.mrb[0].mxu0
  %v764 = vpop.f32.mrb[0].mxu0
  %v765 = vadd.f32 0.0, %v764
  %v766 = vpop.f32.mrb[0].mxu0
  %767 = vmatprep.mubr.bf16.mxu0 %v606
  %768 = vmatmul.mubr.bf16.gmra.mrb[0].mxu0 %v605
  %v769 = vpop.f32.mrb[0].mxu0
  %v770 = vadd.f32 0.0, %v769
  %v771 = vpop.f32.mrb[0].mxu0
  %v772 = vpop.f32.mrb[0].mxu0
  %v773 = vadd.f32 0.0, %v772
  %v774 = vpop.f32.mrb[0].mxu0
  %775 = vmatprep.mubr.bf16.mxu0 %v608
  %776 = vmatmul.mubr.bf16.gmra.mrb[0].mxu0 %v607
  %v777 = vpop.f32.mrb[0].mxu0
  %v778 = vadd.f32 0.0, %v777
  %v779 = vpop.f32.mrb[0].mxu0
  %v780 = vpop.f32.mrb[0].mxu0
  %v781 = vadd.f32 0.0, %v780
  %v782 = vpop.f32.mrb[0].mxu0
  %783 = vmatprep.mubr.bf16.mxu0 %v610
  %784 = vmatmul.mubr.bf16.gmra.mrb[0].mxu0 %v609
  %v785 = vpop.f32.mrb[0].mxu0
  %v786 = vadd.f32 0.0, %v785
  %v787 = vpop.f32.mrb[0].mxu0
  %v788 = vpop.f32.mrb[0].mxu0
  %v789 = vadd.f32 0.0, %v788
  %v790 = vpop.f32.mrb[0].mxu0
  %791 = vmatprep.mubr.bf16.mxu0 %v612
  %792 = vmatmul.mubr.bf16.gmra.mrb[0].mxu0 %v611
  %v793 = vpop.f32.mrb[0].mxu0
  %v794 = vadd.f32 0.0, %v793
  %v795 = vpop.f32.mrb[0].mxu0
  %v796 = vpop.f32.mrb[0].mxu0
  %v797 = vadd.f32 0.0, %v796
  %v798 = vpop.f32.mrb[0].mxu0
  %799 = vmatprep.mubr.bf16.mxu0 %v614
  %800 = vmatmul.mubr.bf16.gmra.mrb[0].mxu0 %v613
  %v801 = vpop.f32.mrb[0].mxu0
  %v802 = vadd.f32 0.0, %v801
  %v803 = vpop.f32.mrb[0].mxu0
  %v804 = vpop.f32.mrb[0].mxu0
  %v805 = vadd.f32 0.0, %v804
  %v806 = vpop.f32.mrb[0].mxu0
  %807 = vdwg.mxu0
  %v808 = vadd.f32 %v423, %v682
  %v809 = vadd.f32 %v424, %v685
  %v810 = vadd.f32 %v425, %v690
  %v811 = vadd.f32 %v426, %v693
  %v812 = vadd.f32 %v427, %v698
  %v813 = vadd.f32 %v428, %v701
  %v814 = vadd.f32 %v429, %v706
  %v815 = vadd.f32 %v430, %v709
  %v816 = vadd.f32 %v431, %v714
  %v817 = vadd.f32 %v432, %v717
  %v818 = vadd.f32 %v433, %v722
  %v819 = vadd.f32 %v434, %v725
  %v820 = vadd.f32 %v435, %v730
  %v821 = vadd.f32 %v436, %v733
  %v822 = vadd.f32 %v437, %v738
  %v823 = vadd.f32 %v438, %v741
  %v824 = vadd.f32 %v439, %v746
  %v825 = vadd.f32 %v440, %v749
  %v826 = vadd.f32 %v441, %v754
  %v827 = vadd.f32 %v442, %v757
  %v828 = vadd.f32 %v443, %v762
  %v829 = vadd.f32 %v444, %v765
  %v830 = vadd.f32 %v445, %v770
  %v831 = vadd.f32 %v446, %v773
  %v832 = vadd.f32 %v447, %v778
  %v833 = vadd.f32 %v448, %v781
  %v834 = vadd.f32 %v449, %v786
  %v835 = vadd.f32 %v450, %v789
  %v836 = vadd.f32 %v451, %v794
  %v837 = vadd.f32 %v452, %v797
  %v838 = vadd.f32 %v453, %v802
  %v839 = vadd.f32 %v454, %v805
  %840 = vst [vmem:[#allocation2] sm:$0xff] %v808
  %841 = vst [vmem:[#allocation2 + $0x8] sm:$0xff] %v809
  %842 = vst [vmem:[#allocation2 + $0x10] sm:$0xff] %v810
  %843 = vst [vmem:[#allocation2 + $0x18] sm:$0xff] %v811
  %844 = vst [vmem:[#allocation2 + $0x20] sm:$0xff] %v812
  %845 = vst [vmem:[#allocation2 + $0x28] sm:$0xff] %v813
  %846 = vst [vmem:[#allocation2 + $0x30] sm:$0xff] %v814
  %847 = vst [vmem:[#allocation2 + $0x38] sm:$0xff] %v815
  %848 = vst [vmem:[#allocation2 + $0x40] sm:$0xff] %v816
  %849 = vst [vmem:[#allocation2 + $0x48] sm:$0xff] %v817
  %850 = vst [vmem:[#allocation2 + $0x50] sm:$0xff] %v818
  %851 = vst [vmem:[#allocation2 + $0x58] sm:$0xff] %v819
  %852 = vst [vmem:[#allocation2 + $0x60] sm:$0xff] %v820
  %853 = vst [vmem:[#allocation2 + $0x68] sm:$0xff] %v821
  %854 = vst [vmem:[#allocation2 + $0x70] sm:$0xff] %v822
  %855 = vst [vmem:[#allocation2 + $0x78] sm:$0xff] %v823
  %856 = vst [vmem:[#allocation2 + $0x80] sm:$0xff] %v824
  %857 = vst [vmem:[#allocation2 + $0x88] sm:$0xff] %v825
  %858 = vst [vmem:[#allocation2 + $0x90] sm:$0xff] %v826
  %859 = vst [vmem:[#allocation2 + $0x98] sm:$0xff] %v827
  %860 = vst [vmem:[#allocation2 + $0xa0] sm:$0xff] %v828
  %861 = vst [vmem:[#allocation2 + $0xa8] sm:$0xff] %v829
  %862 = vst [vmem:[#allocation2 + $0xb0] sm:$0xff] %v830
  %863 = vst [vmem:[#allocation2 + $0xb8] sm:$0xff] %v831
  %864 = vst [vmem:[#allocation2 + $0xc0] sm:$0xff] %v832
  %865 = vst [vmem:[#allocation2 + $0xc8] sm:$0xff] %v833
  %866 = vst [vmem:[#allocation2 + $0xd0] sm:$0xff] %v834
  %867 = vst [vmem:[#allocation2 + $0xd8] sm:$0xff] %v835
  %868 = vst [vmem:[#allocation2 + $0xe0] sm:$0xff] %v836
  %869 = vst [vmem:[#allocation2 + $0xe8] sm:$0xff] %v837
  %870 = vst [vmem:[#allocation2 + $0xf0] sm:$0xff] %v838
  %871 = vst [vmem:[#allocation2 + $0xf8] sm:$0xff] %v839
  // Predicated region
  $region22: #{dominant_forward.5} parent=0 // pred_check
    %p872 = pneg %p18
  $region23: #{dominant_forward.5} parent=0 // pred_check_branch
    %874 = sbr.rel (%p872) target = $region25
  $region24: #{dominant_forward.5} parent=0 // pred_region
    %v875 = vld [vmem:[#allocation2] sm:$0xff]
    %v876 = vld [vmem:[#allocation2 + $0x8] sm:$0xff]
    %v877 = vld [vmem:[#allocation2 + $0x10] sm:$0xff]
    %v878 = vld [vmem:[#allocation2 + $0x18] sm:$0xff]
    %v879 = vld [vmem:[#allocation2 + $0x20] sm:$0xff]
    %v880 = vld [vmem:[#allocation2 + $0x28] sm:$0xff]
    %v881 = vld [vmem:[#allocation2 + $0x30] sm:$0xff]
    %v882 = vld [vmem:[#allocation2 + $0x38] sm:$0xff]
    %v883 = vld [vmem:[#allocation2 + $0x40] sm:$0xff]
    %v884 = vld [vmem:[#allocation2 + $0x48] sm:$0xff]
    %v885 = vld [vmem:[#allocation2 + $0x50] sm:$0xff]
    %v886 = vld [vmem:[#allocation2 + $0x58] sm:$0xff]
    %v887 = vld [vmem:[#allocation2 + $0x60] sm:$0xff]
    %v888 = vld [vmem:[#allocation2 + $0x68] sm:$0xff]
    %v889 = vld [vmem:[#allocation2 + $0x70] sm:$0xff]
    %v890 = vld [vmem:[#allocation2 + $0x78] sm:$0xff]
    %v891 = vld [vmem:[#allocation2 + $0x80] sm:$0xff]
    %v892 = vld [vmem:[#allocation2 + $0x88] sm:$0xff]
    %v893 = vld [vmem:[#allocation2 + $0x90] sm:$0xff]
    %v894 = vld [vmem:[#allocation2 + $0x98] sm:$0xff]
    %v895 = vld [vmem:[#allocation2 + $0xa0] sm:$0xff]
    %v896 = vld [vmem:[#allocation2 + $0xa8] sm:$0xff]
    %v897 = vld [vmem:[#allocation2 + $0xb0] sm:$0xff]
    %v898 = vld [vmem:[#allocation2 + $0xb8] sm:$0xff]
    %v899 = vld [vmem:[#allocation2 + $0xc0] sm:$0xff]
    %v900 = vld [vmem:[#allocation2 + $0xc8] sm:$0xff]
    %v901 = vld [vmem:[#allocation2 + $0xd0] sm:$0xff]
    %v902 = vld [vmem:[#allocation2 + $0xd8] sm:$0xff]
    %v903 = vld [vmem:[#allocation2 + $0xe0] sm:$0xff]
    %v904 = vld [vmem:[#allocation2 + $0xe8] sm:$0xff]
    %v905 = vld [vmem:[#allocation2 + $0xf0] sm:$0xff]
    %v906 = vld [vmem:[#allocation2 + $0xf8] sm:$0xff]
    %v907 = vld [vmem:[%s3] sm:$0x1]
    %v909 = vlaneseq
    %v910 = vshrl.u32 %v909, 7
    %v911 = vsub.s32 0, %v910
    %v912 = vrot.slane %v907, %v911
    %v914 = vadd.f32 %v875, %v912
    %v915 = vadd.f32 %v876, %v912
    %v916 = vadd.f32 %v877, %v912
    %v917 = vadd.f32 %v878, %v912
    %v918 = vadd.f32 %v879, %v912
    %v919 = vadd.f32 %v880, %v912
    %v920 = vadd.f32 %v881, %v912
    %v921 = vadd.f32 %v882, %v912
    %v922 = vadd.f32 %v883, %v912
    %v923 = vadd.f32 %v884, %v912
    %v924 = vadd.f32 %v885, %v912
    %v925 = vadd.f32 %v886, %v912
    %v926 = vadd.f32 %v887, %v912
    %v927 = vadd.f32 %v888, %v912
    %v928 = vadd.f32 %v889, %v912
    %v929 = vadd.f32 %v890, %v912
    %v930 = vadd.f32 %v891, %v912
    %v931 = vadd.f32 %v892, %v912
    %v932 = vadd.f32 %v893, %v912
    %v933 = vadd.f32 %v894, %v912
    %v934 = vadd.f32 %v895, %v912
    %v935 = vadd.f32 %v896, %v912
    %v936 = vadd.f32 %v897, %v912
    %v937 = vadd.f32 %v898, %v912
    %v938 = vadd.f32 %v899, %v912
    %v939 = vadd.f32 %v900, %v912
    %v940 = vadd.f32 %v901, %v912
    %v941 = vadd.f32 %v902, %v912
    %v942 = vadd.f32 %v903, %v912
    %v943 = vadd.f32 %v904, %v912
    %v944 = vadd.f32 %v905, %v912
    %v945 = vadd.f32 %v906, %v912
    %v946 = vmax.f32 %v914, 0.0
    %v947 = vmax.f32 %v915, 0.0
    %v948 = vmax.f32 %v916, 0.0
    %v949 = vmax.f32 %v917, 0.0
    %v950 = vmax.f32 %v918, 0.0
    %v951 = vmax.f32 %v919, 0.0
    %v952 = vmax.f32 %v920, 0.0
    %v953 = vmax.f32 %v921, 0.0
    %v954 = vmax.f32 %v922, 0.0
    %v955 = vmax.f32 %v923, 0.0
    %v956 = vmax.f32 %v924, 0.0
    %v957 = vmax.f32 %v925, 0.0
    %v958 = vmax.f32 %v926, 0.0
    %v959 = vmax.f32 %v927, 0.0
    %v960 = vmax.f32 %v928, 0.0
    %v961 = vmax.f32 %v929, 0.0
    %v962 = vmax.f32 %v930, 0.0
    %v963 = vmax.f32 %v931, 0.0
    %v964 = vmax.f32 %v932, 0.0
    %v965 = vmax.f32 %v933, 0.0
    %v966 = vmax.f32 %v934, 0.0
    %v967 = vmax.f32 %v935, 0.0
    %v968 = vmax.f32 %v936, 0.0
    %v969 = vmax.f32 %v937, 0.0
    %v970 = vmax.f32 %v938, 0.0
    %v971 = vmax.f32 %v939, 0.0
    %v972 = vmax.f32 %v940, 0.0
    %v973 = vmax.f32 %v941, 0.0
    %v974 = vmax.f32 %v942, 0.0
    %v975 = vmax.f32 %v943, 0.0
    %v976 = vmax.f32 %v944, 0.0
    %v977 = vmax.f32 %v945, 0.0
    %v978 = vpack.c.bf16 %v947, %v946
    %v979 = vpack.c.bf16 %v949, %v948
    %v980 = vpack.c.bf16 %v951, %v950
    %v981 = vpack.c.bf16 %v953, %v952
    %v982 = vpack.c.bf16 %v955, %v954
    %v983 = vpack.c.bf16 %v957, %v956
    %v984 = vpack.c.bf16 %v959, %v958
    %v985 = vpack.c.bf16 %v961, %v960
    %v986 = vpack.c.bf16 %v963, %v962
    %v987 = vpack.c.bf16 %v965, %v964
    %v988 = vpack.c.bf16 %v967, %v966
    %v989 = vpack.c.bf16 %v969, %v968
    %v990 = vpack.c.bf16 %v971, %v970
    %v991 = vpack.c.bf16 %v973, %v972
    %v992 = vpack.c.bf16 %v975, %v974
    %v993 = vpack.c.bf16 %v977, %v976
    %v1010 = vunpack.c.l.b16 %v978
    %v1011 = vunpack.c.h.b16 %v978
    %v1012 = vunpack.c.l.b16 %v979
    %v1013 = vunpack.c.h.b16 %v979
    %v1014 = vunpack.c.l.b16 %v980
    %v1015 = vunpack.c.h.b16 %v980
    %v1016 = vunpack.c.l.b16 %v981
    %v1017 = vunpack.c.h.b16 %v981
    %v1018 = vunpack.c.l.b16 %v982
    %v1019 = vunpack.c.h.b16 %v982
    %v1020 = vunpack.c.l.b16 %v983
    %v1021 = vunpack.c.h.b16 %v983
    %v1022 = vunpack.c.l.b16 %v984
    %v1023 = vunpack.c.h.b16 %v984
    %v1024 = vunpack.c.l.b16 %v985
    %v1025 = vunpack.c.h.b16 %v985
    %v1026 = vunpack.c.l.b16 %v986
    %v1027 = vunpack.c.h.b16 %v986
    %v1028 = vunpack.c.l.b16 %v987
    %v1029 = vunpack.c.h.b16 %v987
    %v1030 = vunpack.c.l.b16 %v988
    %v1031 = vunpack.c.h.b16 %v988
    %v1032 = vunpack.c.l.b16 %v989
    %v1033 = vunpack.c.h.b16 %v989
    %v1034 = vunpack.c.l.b16 %v990
    %v1035 = vunpack.c.h.b16 %v990
    %v1036 = vunpack.c.l.b16 %v991
    %v1037 = vunpack.c.h.b16 %v991
    %v1038 = vunpack.c.l.b16 %v992
    %v1039 = vunpack.c.h.b16 %v992
    %v1040 = vunpack.c.l.b16 %v993
    %v1041 = vunpack.c.h.b16 %v993
    %v1042 = vpack.c.b16 %v1010, %v1010
    %v1043 = vpack.c.b16 %v1011, %v1011
    %v1044 = vpack.c.b16 %v1012, %v1012
    %v1045 = vpack.c.b16 %v1013, %v1013
    %v1046 = vpack.c.b16 %v1014, %v1014
    %v1047 = vpack.c.b16 %v1015, %v1015
    %v1048 = vpack.c.b16 %v1016, %v1016
    %v1049 = vpack.c.b16 %v1017, %v1017
    %v1050 = vpack.c.b16 %v1018, %v1018
    %v1051 = vpack.c.b16 %v1019, %v1019
    %v1052 = vpack.c.b16 %v1020, %v1020
    %v1053 = vpack.c.b16 %v1021, %v1021
    %v1054 = vpack.c.b16 %v1022, %v1022
    %v1055 = vpack.c.b16 %v1023, %v1023
    %v1056 = vpack.c.b16 %v1024, %v1024
    %v1057 = vpack.c.b16 %v1025, %v1025
    %v1058 = vpack.c.b16 %v1026, %v1026
    %v1059 = vpack.c.b16 %v1027, %v1027
    %v1060 = vpack.c.b16 %v1028, %v1028
    %v1061 = vpack.c.b16 %v1029, %v1029
    %v1062 = vpack.c.b16 %v1030, %v1030
    %v1063 = vpack.c.b16 %v1031, %v1031
    %v1064 = vpack.c.b16 %v1032, %v1032
    %v1065 = vpack.c.b16 %v1033, %v1033
    %v1066 = vpack.c.b16 %v1034, %v1034
    %v1067 = vpack.c.b16 %v1035, %v1035
    %v1068 = vpack.c.b16 %v1036, %v1036
    %v1069 = vpack.c.b16 %v1037, %v1037
    %v1070 = vpack.c.b16 %v1038, %v1038
    %v1071 = vpack.c.b16 %v1039, %v1039
    %v1072 = vpack.c.b16 %v1040, %v1040
    %v1073 = vpack.c.b16 %v1041, %v1041
    %1106 = vst [vmem:[%s4] sm:$0xf] %v1042
    %1107 = vst [vmem:[%s4 + $0x4] sm:$0xf] %v1043
    %1108 = vst [vmem:[%s4 + $0x8] sm:$0xf] %v1044
    %1109 = vst [vmem:[%s4 + $0xc] sm:$0xf] %v1045
    %1110 = vst [vmem:[%s4 + $0x10] sm:$0xf] %v1046
    %1111 = vst [vmem:[%s4 + $0x14] sm:$0xf] %v1047
    %1112 = vst [vmem:[%s4 + $0x18] sm:$0xf] %v1048
    %1113 = vst [vmem:[%s4 + $0x1c] sm:$0xf] %v1049
    %1114 = vst [vmem:[%s4 + $0x20] sm:$0xf] %v1050
    %1115 = vst [vmem:[%s4 + $0x24] sm:$0xf] %v1051
    %1116 = vst [vmem:[%s4 + $0x28] sm:$0xf] %v1052
    %1117 = vst [vmem:[%s4 + $0x2c] sm:$0xf] %v1053
    %1118 = vst [vmem:[%s4 + $0x30] sm:$0xf] %v1054
    %1119 = vst [vmem:[%s4 + $0x34] sm:$0xf] %v1055
    %1120 = vst [vmem:[%s4 + $0x38] sm:$0xf] %v1056
    %1121 = vst [vmem:[%s4 + $0x3c] sm:$0xf] %v1057
    %1122 = vst [vmem:[%s4 + $0x40] sm:$0xf] %v1058
    %1123 = vst [vmem:[%s4 + $0x44] sm:$0xf] %v1059
    %1124 = vst [vmem:[%s4 + $0x48] sm:$0xf] %v1060
    %1125 = vst [vmem:[%s4 + $0x4c] sm:$0xf] %v1061
    %1126 = vst [vmem:[%s4 + $0x50] sm:$0xf] %v1062
    %1127 = vst [vmem:[%s4 + $0x54] sm:$0xf] %v1063
    %1128 = vst [vmem:[%s4 + $0x58] sm:$0xf] %v1064
    %1129 = vst [vmem:[%s4 + $0x5c] sm:$0xf] %v1065
    %1130 = vst [vmem:[%s4 + $0x60] sm:$0xf] %v1066
    %1131 = vst [vmem:[%s4 + $0x64] sm:$0xf] %v1067
    %1132 = vst [vmem:[%s4 + $0x68] sm:$0xf] %v1068
    %1133 = vst [vmem:[%s4 + $0x6c] sm:$0xf] %v1069
    %1134 = vst [vmem:[%s4 + $0x70] sm:$0xf] %v1070
    %1135 = vst [vmem:[%s4 + $0x74] sm:$0xf] %v1071
    %1136 = vst [vmem:[%s4 + $0x78] sm:$0xf] %v1072
    %1137 = vst [vmem:[%s4 + $0x7c] sm:$0xf] %v1073
  $region25: #{dominant_forward.5} parent=0 // pred_fallthru
    _
  // Predicated region
  $region26: #{dominant_forward.5} parent=0 // pred_check
    _
  $region27: #{dominant_forward.5} parent=0 // pred_check_branch
    %1139 = sbr.rel (0) target = $region29
  $region28: #{dominant_forward.5} parent=0 // pred_region
    _
  $region29: #{dominant_forward.5} parent=0 // pred_fallthru
    _
  // Predicated region
  $region30: #{dominant_forward.5} parent=0 // pred_check
    _
  $region31: #{dominant_forward.5} parent=0 // pred_check_branch
    %1141 = sbr.rel (0) target = $region33
  $region32: #{dominant_forward.5} parent=0 // pred_region
    _
  $region33: #{dominant_forward.5} parent=0 // pred_fallthru
    _

// kernel: dominant_forward.7
$region0: #{dominant_forward.7}
  #allocation0 [shape = 'u32[]', space=smem, size = 0x4, offset = 0x4, fixed_abs, tag = 'smem constant byte address 0x4 - core index']
  #allocation1 [shape = 'u32[144,128]{1,0:T(1,128)}', space=vmem, size = 0x12000, scoped, tag = 'internal scratch']
  #allocation2 [shape = 'f32[256,128]{1,0:T(8,128)}', space=vmem, size = 0x20000, scoped, tag = 'scratch operand']
  %s0 = inlined_call_operand.vmem [shape: bf16[256,256], index: 0, kind: input, shape index: {}]
  %s1 = inlined_call_operand.vmem [shape: bf16[256,128], index: 1, kind: input, shape index: {}]
  %s2 = inlined_call_operand.vmem [shape: bf16[128,128], index: 2, kind: input, shape index: {}]
  %s3 = inlined_call_operand.vmem [shape: f32[1,128], index: 3, kind: input, shape index: {}]
  %s4 = inlined_call_operand.vmem [shape: bf16[256,128], index: 4, kind: output, shape index: {}]
  %s5 = sld [smem:[#allocation0]]
  $region34: #{dominant_forward.7} parent=0
    _
  %s7 = ssub.s32 1, %s5
  %s8 = scalar_select 0, %s7, %s5
  // Predicated region
  $region2: #{dominant_forward.7} parent=0 // pred_check
    _
  $region3: #{dominant_forward.7} parent=0 // pred_check_branch
    %10 = sbr.rel (0) target = $region5
  $region4: #{dominant_forward.7} parent=0 // pred_region
    _
  $region5: #{dominant_forward.7} parent=0 // pred_fallthru
    _
  // Predicated region
  $region6: #{dominant_forward.7} parent=0 // pred_check
    _
  $region7: #{dominant_forward.7} parent=0 // pred_check_branch
    %12 = sbr.rel (0) target = $region9
  $region8: #{dominant_forward.7} parent=0 // pred_region
    _
  $region9: #{dominant_forward.7} parent=0 // pred_fallthru
    _
  // Predicated region
  $region10: #{dominant_forward.7} parent=0 // pred_check
    _
  $region11: #{dominant_forward.7} parent=0 // pred_check_branch
    %14 = sbr.rel (0) target = $region13
  $region12: #{dominant_forward.7} parent=0 // pred_region
    _
  $region13: #{dominant_forward.7} parent=0 // pred_fallthru
    _
  // Predicated region
  $region14: #{dominant_forward.7} parent=0 // pred_check
    _
  $region15: #{dominant_forward.7} parent=0 // pred_check_branch
    %16 = sbr.rel (0) target = $region17
  $region16: #{dominant_forward.7} parent=0 // pred_region
    _
  $region17: #{dominant_forward.7} parent=0 // pred_fallthru
    _
  %p18 = scmp.eq.s32.totalorder 0, 0
  // Predicated region
  $region18: #{dominant_forward.7} parent=0 // pred_check
    %p19 = pneg %p18
  $region19: #{dominant_forward.7} parent=0 // pred_check_branch
    %21 = sbr.rel (%p19) target = $region21
  $region20: #{dominant_forward.7} parent=0 // pred_region
    %22 = vst [vmem:[#allocation2] sm:$0xff] 0.0
    %23 = vst [vmem:[#allocation2 + $0x8] sm:$0xff] 0.0
    %24 = vst [vmem:[#allocation2 + $0x10] sm:$0xff] 0.0
    %25 = vst [vmem:[#allocation2 + $0x18] sm:$0xff] 0.0
    %26 = vst [vmem:[#allocation2 + $0x20] sm:$0xff] 0.0
    %27 = vst [vmem:[#allocation2 + $0x28] sm:$0xff] 0.0
    %28 = vst [vmem:[#allocation2 + $0x30] sm:$0xff] 0.0
    %29 = vst [vmem:[#allocation2 + $0x38] sm:$0xff] 0.0
    %30 = vst [vmem:[#allocation2 + $0x40] sm:$0xff] 0.0
    %31 = vst [vmem:[#allocation2 + $0x48] sm:$0xff] 0.0
    %32 = vst [vmem:[#allocation2 + $0x50] sm:$0xff] 0.0
    %33 = vst [vmem:[#allocation2 + $0x58] sm:$0xff] 0.0
    %34 = vst [vmem:[#allocation2 + $0x60] sm:$0xff] 0.0
    %35 = vst [vmem:[#allocation2 + $0x68] sm:$0xff] 0.0
    %36 = vst [vmem:[#allocation2 + $0x70] sm:$0xff] 0.0
    %37 = vst [vmem:[#allocation2 + $0x78] sm:$0xff] 0.0
    %38 = vst [vmem:[#allocation2 + $0x80] sm:$0xff] 0.0
    %39 = vst [vmem:[#allocation2 + $0x88] sm:$0xff] 0.0
    %40 = vst [vmem:[#allocation2 + $0x90] sm:$0xff] 0.0
    %41 = vst [vmem:[#allocation2 + $0x98] sm:$0xff] 0.0
    %42 = vst [vmem:[#allocation2 + $0xa0] sm:$0xff] 0.0
    %43 = vst [vmem:[#allocation2 + $0xa8] sm:$0xff] 0.0
    %44 = vst [vmem:[#allocation2 + $0xb0] sm:$0xff] 0.0
    %45 = vst [vmem:[#allocation2 + $0xb8] sm:$0xff] 0.0
    %46 = vst [vmem:[#allocation2 + $0xc0] sm:$0xff] 0.0
    %47 = vst [vmem:[#allocation2 + $0xc8] sm:$0xff] 0.0
    %48 = vst [vmem:[#allocation2 + $0xd0] sm:$0xff] 0.0
    %49 = vst [vmem:[#allocation2 + $0xd8] sm:$0xff] 0.0
    %50 = vst [vmem:[#allocation2 + $0xe0] sm:$0xff] 0.0
    %51 = vst [vmem:[#allocation2 + $0xe8] sm:$0xff] 0.0
    %52 = vst [vmem:[#allocation2 + $0xf0] sm:$0xff] 0.0
    %53 = vst [vmem:[#allocation2 + $0xf8] sm:$0xff] 0.0
  $region21: #{dominant_forward.7} parent=0 // pred_fallthru
    _
  %v54 = vld [vmem:[%s1] sm:$0xf]
  %v55 = vld [vmem:[%s1 + $0x4] sm:$0xf]
  %v56 = vld [vmem:[%s1 + $0x8] sm:$0xf]
  %v57 = vld [vmem:[%s1 + $0xc] sm:$0xf]
  %v58 = vld [vmem:[%s1 + $0x10] sm:$0xf]
  %v59 = vld [vmem:[%s1 + $0x14] sm:$0xf]
  %v60 = vld [vmem:[%s1 + $0x18] sm:$0xf]
  %v61 = vld [vmem:[%s1 + $0x1c] sm:$0xf]
  %v62 = vld [vmem:[%s1 + $0x20] sm:$0xf]
  %v63 = vld [vmem:[%s1 + $0x24] sm:$0xf]
  %v64 = vld [vmem:[%s1 + $0x28] sm:$0xf]
  %v65 = vld [vmem:[%s1 + $0x2c] sm:$0xf]
  %v66 = vld [vmem:[%s1 + $0x30] sm:$0xf]
  %v67 = vld [vmem:[%s1 + $0x34] sm:$0xf]
  %v68 = vld [vmem:[%s1 + $0x38] sm:$0xf]
  %v69 = vld [vmem:[%s1 + $0x3c] sm:$0xf]
  %v70 = vld [vmem:[%s1 + $0x40] sm:$0xf]
  %v71 = vld [vmem:[%s1 + $0x44] sm:$0xf]
  %v72 = vld [vmem:[%s1 + $0x48] sm:$0xf]
  %v73 = vld [vmem:[%s1 + $0x4c] sm:$0xf]
  %v74 = vld [vmem:[%s1 + $0x50] sm:$0xf]
  %v75 = vld [vmem:[%s1 + $0x54] sm:$0xf]
  %v76 = vld [vmem:[%s1 + $0x58] sm:$0xf]
  %v77 = vld [vmem:[%s1 + $0x5c] sm:$0xf]
  %v78 = vld [vmem:[%s1 + $0x60] sm:$0xf]
  %v79 = vld [vmem:[%s1 + $0x64] sm:$0xf]
  %v80 = vld [vmem:[%s1 + $0x68] sm:$0xf]
  %v81 = vld [vmem:[%s1 + $0x6c] sm:$0xf]
  %v82 = vld [vmem:[%s1 + $0x70] sm:$0xf]
  %v83 = vld [vmem:[%s1 + $0x74] sm:$0xf]
  %v84 = vld [vmem:[%s1 + $0x78] sm:$0xf]
  %v85 = vld [vmem:[%s1 + $0x7c] sm:$0xf]
  %v86 = vld [vmem:[%s2] sm:$0xf]
  %v87 = vld [vmem:[%s2 + $0x4] sm:$0xf]
  %v88 = vld [vmem:[%s2 + $0x8] sm:$0xf]
  %v89 = vld [vmem:[%s2 + $0xc] sm:$0xf]
  %v90 = vld [vmem:[%s2 + $0x10] sm:$0xf]
  %v91 = vld [vmem:[%s2 + $0x14] sm:$0xf]
  %v92 = vld [vmem:[%s2 + $0x18] sm:$0xf]
  %v93 = vld [vmem:[%s2 + $0x1c] sm:$0xf]
  %v94 = vld [vmem:[%s2 + $0x20] sm:$0xf]
  %v95 = vld [vmem:[%s2 + $0x24] sm:$0xf]
  %v96 = vld [vmem:[%s2 + $0x28] sm:$0xf]
  %v97 = vld [vmem:[%s2 + $0x2c] sm:$0xf]
  %v98 = vld [vmem:[%s2 + $0x30] sm:$0xf]
  %v99 = vld [vmem:[%s2 + $0x34] sm:$0xf]
  %v100 = vld [vmem:[%s2 + $0x38] sm:$0xf]
  %v101 = vld [vmem:[%s2 + $0x3c] sm:$0xf]
  %v134 = vunpack.c.l.b16 %v54
  %v135 = vunpack.c.l.b16 %v55
  %v136 = vunpack.c.l.b16 %v56
  %v137 = vunpack.c.l.b16 %v57
  %v138 = vunpack.c.l.b16 %v58
  %v139 = vunpack.c.l.b16 %v59
  %v140 = vunpack.c.l.b16 %v60
  %v141 = vunpack.c.l.b16 %v61
  %v142 = vunpack.c.l.b16 %v62
  %v143 = vunpack.c.l.b16 %v63
  %v144 = vunpack.c.l.b16 %v64
  %v145 = vunpack.c.l.b16 %v65
  %v146 = vunpack.c.l.b16 %v66
  %v147 = vunpack.c.l.b16 %v67
  %v148 = vunpack.c.l.b16 %v68
  %v149 = vunpack.c.l.b16 %v69
  %v150 = vunpack.c.l.b16 %v70
  %v151 = vunpack.c.l.b16 %v71
  %v152 = vunpack.c.l.b16 %v72
  %v153 = vunpack.c.l.b16 %v73
  %v154 = vunpack.c.l.b16 %v74
  %v155 = vunpack.c.l.b16 %v75
  %v156 = vunpack.c.l.b16 %v76
  %v157 = vunpack.c.l.b16 %v77
  %v158 = vunpack.c.l.b16 %v78
  %v159 = vunpack.c.l.b16 %v79
  %v160 = vunpack.c.l.b16 %v80
  %v161 = vunpack.c.l.b16 %v81
  %v162 = vunpack.c.l.b16 %v82
  %v163 = vunpack.c.l.b16 %v83
  %v164 = vunpack.c.l.b16 %v84
  %v165 = vunpack.c.l.b16 %v85
  %v166 = vpack.c.b16 %v135, %v134
  %v167 = vpack.c.b16 %v137, %v136
  %v168 = vpack.c.b16 %v139, %v138
  %v169 = vpack.c.b16 %v141, %v140
  %v170 = vpack.c.b16 %v143, %v142
  %v171 = vpack.c.b16 %v145, %v144
  %v172 = vpack.c.b16 %v147, %v146
  %v173 = vpack.c.b16 %v149, %v148
  %v174 = vpack.c.b16 %v151, %v150
  %v175 = vpack.c.b16 %v153, %v152
  %v176 = vpack.c.b16 %v155, %v154
  %v177 = vpack.c.b16 %v157, %v156
  %v178 = vpack.c.b16 %v159, %v158
  %v179 = vpack.c.b16 %v161, %v160
  %v180 = vpack.c.b16 %v163, %v162
  %v181 = vpack.c.b16 %v165, %v164
  %v214 = vunpack.c.l.b16 %v86
  %v215 = vunpack.c.l.b16 %v87
  %v216 = vunpack.c.l.b16 %v88
  %v217 = vunpack.c.l.b16 %v89
  %v218 = vunpack.c.l.b16 %v90
  %v219 = vunpack.c.l.b16 %v91
  %v220 = vunpack.c.l.b16 %v92
  %v221 = vunpack.c.l.b16 %v93
  %v222 = vunpack.c.l.b16 %v94
  %v223 = vunpack.c.l.b16 %v95
  %v224 = vunpack.c.l.b16 %v96
  %v225 = vunpack.c.l.b16 %v97
  %v226 = vunpack.c.l.b16 %v98
  %v227 = vunpack.c.l.b16 %v99
  %v228 = vunpack.c.l.b16 %v100
  %v229 = vunpack.c.l.b16 %v101
  %v230 = vpack.c.b16 %v215, %v214
  %v231 = vpack.c.b16 %v217, %v216
  %v232 = vpack.c.b16 %v219, %v218
  %v233 = vpack.c.b16 %v221, %v220
  %v234 = vpack.c.b16 %v223, %v222
  %v235 = vpack.c.b16 %v225, %v224
  %v236 = vpack.c.b16 %v227, %v226
  %v237 = vpack.c.b16 %v229, %v228
  %246 = vmatprep.subr.bf16.mxu0 0
  %247 = vmatpush1.bf16.msra.mxu0 %v230
  %248 = vmatprep.subr.bf16.mxu0 0
  %249 = vmatpush1.bf16.msra.mxu0 %v231
  %250 = vmatprep.subr.bf16.mxu0 0
  %251 = vmatpush1.bf16.msra.mxu0 %v232
  %252 = vmatprep.subr.bf16.mxu0 0
  %253 = vmatpush1.bf16.msra.mxu0 %v233
  %254 = vmatprep.subr.bf16.mxu0 0
  %255 = vmatpush1.bf16.msra.mxu0 %v234
  %256 = vmatprep.subr.bf16.mxu0 0
  %257 = vmatpush1.bf16.msra.mxu0 %v235
  %258 = vmatprep.subr.bf16.mxu0 0
  %259 = vmatpush1.bf16.msra.mxu0 %v236
  %260 = vmatprep.subr.bf16.mxu0 0
  %261 = vmatpush1.bf16.msra.mxu0 %v237
  %262 = vmatprep.subr.bf16.mxu0 0
  %263 = vmatpush1.bf16.msra.mxu0 0
  %264 = vmatprep.subr.bf16.mxu0 0
  %265 = vmatpush1.bf16.msra.mxu0 0
  %266 = vmatprep.subr.bf16.mxu0 0
  %267 = vmatpush1.bf16.msra.mxu0 0
  %268 = vmatprep.subr.bf16.mxu0 0
  %269 = vmatpush1.bf16.msra.mxu0 0
  %270 = vmatprep.subr.bf16.mxu0 0
  %271 = vmatpush1.bf16.msra.mxu0 0
  %272 = vmatprep.subr.bf16.mxu0 0
  %273 = vmatpush1.bf16.msra.mxu0 0
  %274 = vmatprep.subr.bf16.mxu0 0
  %275 = vmatpush1.bf16.msra.mxu0 0
  %276 = vmatprep.subr.bf16.mxu0 0
  %277 = vmatpush1.bf16.msra.mxu0 0
  %278 = vmatprep.mubr.bf16.mxu0 0
  %279 = vmatmul.mubr.bf16.gmra.mrb[0].mxu0 %v166
  %v280 = vpop.f32.mrb[0].mxu0
  %v281 = vadd.f32 0.0, %v280
  %v282 = vpop.f32.mrb[0].mxu0
  %v283 = vpop.f32.mrb[0].mxu0
  %v284 = vadd.f32 0.0, %v283
  %v285 = vpop.f32.mrb[0].mxu0
  %286 = vmatprep.mubr.bf16.mxu0 0
  %287 = vmatmul.mubr.bf16.gmra.mrb[0].mxu0 %v167
  %v288 = vpop.f32.mrb[0].mxu0
  %v289 = vadd.f32 0.0, %v288
  %v290 = vpop.f32.mrb[0].mxu0
  %v291 = vpop.f32.mrb[0].mxu0
  %v292 = vadd.f32 0.0, %v291
  %v293 = vpop.f32.mrb[0].mxu0
  %294 = vmatprep.mubr.bf16.mxu0 0
  %295 = vmatmul.mubr.bf16.gmra.mrb[0].mxu0 %v168
  %v296 = vpop.f32.mrb[0].mxu0
  %v297 = vadd.f32 0.0, %v296
  %v298 = vpop.f32.mrb[0].mxu0
  %v299 = vpop.f32.mrb[0].mxu0
  %v300 = vadd.f32 0.0, %v299
  %v301 = vpop.f32.mrb[0].mxu0
  %302 = vmatprep.mubr.bf16.mxu0 0
  %303 = vmatmul.mubr.bf16.gmra.mrb[0].mxu0 %v169
  %v304 = vpop.f32.mrb[0].mxu0
  %v305 = vadd.f32 0.0, %v304
  %v306 = vpop.f32.mrb[0].mxu0
  %v307 = vpop.f32.mrb[0].mxu0
  %v308 = vadd.f32 0.0, %v307
  %v309 = vpop.f32.mrb[0].mxu0
  %310 = vmatprep.mubr.bf16.mxu0 0
  %311 = vmatmul.mubr.bf16.gmra.mrb[0].mxu0 %v170
  %v312 = vpop.f32.mrb[0].mxu0
  %v313 = vadd.f32 0.0, %v312
  %v314 = vpop.f32.mrb[0].mxu0
  %v315 = vpop.f32.mrb[0].mxu0
  %v316 = vadd.f32 0.0, %v315
  %v317 = vpop.f32.mrb[0].mxu0
  %318 = vmatprep.mubr.bf16.mxu0 0
  %319 = vmatmul.mubr.bf16.gmra.mrb[0].mxu0 %v171
  %v320 = vpop.f32.mrb[0].mxu0
  %v321 = vadd.f32 0.0, %v320
  %v322 = vpop.f32.mrb[0].mxu0
  %v323 = vpop.f32.mrb[0].mxu0
  %v324 = vadd.f32 0.0, %v323
  %v325 = vpop.f32.mrb[0].mxu0
  %326 = vmatprep.mubr.bf16.mxu0 0
  %327 = vmatmul.mubr.bf16.gmra.mrb[0].mxu0 %v172
  %v328 = vpop.f32.mrb[0].mxu0
  %v329 = vadd.f32 0.0, %v328
  %v330 = vpop.f32.mrb[0].mxu0
  %v331 = vpop.f32.mrb[0].mxu0
  %v332 = vadd.f32 0.0, %v331
  %v333 = vpop.f32.mrb[0].mxu0
  %334 = vmatprep.mubr.bf16.mxu0 0
  %335 = vmatmul.mubr.bf16.gmra.mrb[0].mxu0 %v173
  %v336 = vpop.f32.mrb[0].mxu0
  %v337 = vadd.f32 0.0, %v336
  %v338 = vpop.f32.mrb[0].mxu0
  %v339 = vpop.f32.mrb[0].mxu0
  %v340 = vadd.f32 0.0, %v339
  %v341 = vpop.f32.mrb[0].mxu0
  %342 = vmatprep.mubr.bf16.mxu0 0
  %343 = vmatmul.mubr.bf16.gmra.mrb[0].mxu0 %v174
  %v344 = vpop.f32.mrb[0].mxu0
  %v345 = vadd.f32 0.0, %v344
  %v346 = vpop.f32.mrb[0].mxu0
  %v347 = vpop.f32.mrb[0].mxu0
  %v348 = vadd.f32 0.0, %v347
  %v349 = vpop.f32.mrb[0].mxu0
  %350 = vmatprep.mubr.bf16.mxu0 0
  %351 = vmatmul.mubr.bf16.gmra.mrb[0].mxu0 %v175
  %v352 = vpop.f32.mrb[0].mxu0
  %v353 = vadd.f32 0.0, %v352
  %v354 = vpop.f32.mrb[0].mxu0
  %v355 = vpop.f32.mrb[0].mxu0
  %v356 = vadd.f32 0.0, %v355
  %v357 = vpop.f32.mrb[0].mxu0
  %358 = vmatprep.mubr.bf16.mxu0 0
  %359 = vmatmul.mubr.bf16.gmra.mrb[0].mxu0 %v176
  %v360 = vpop.f32.mrb[0].mxu0
  %v361 = vadd.f32 0.0, %v360
  %v362 = vpop.f32.mrb[0].mxu0
  %v363 = vpop.f32.mrb[0].mxu0
  %v364 = vadd.f32 0.0, %v363
  %v365 = vpop.f32.mrb[0].mxu0
  %366 = vmatprep.mubr.bf16.mxu0 0
  %367 = vmatmul.mubr.bf16.gmra.mrb[0].mxu0 %v177
  %v368 = vpop.f32.mrb[0].mxu0
  %v369 = vadd.f32 0.0, %v368
  %v370 = vpop.f32.mrb[0].mxu0
  %v371 = vpop.f32.mrb[0].mxu0
  %v372 = vadd.f32 0.0, %v371
  %v373 = vpop.f32.mrb[0].mxu0
  %374 = vmatprep.mubr.bf16.mxu0 0
  %375 = vmatmul.mubr.bf16.gmra.mrb[0].mxu0 %v178
  %v376 = vpop.f32.mrb[0].mxu0
  %v377 = vadd.f32 0.0, %v376
  %v378 = vpop.f32.mrb[0].mxu0
  %v379 = vpop.f32.mrb[0].mxu0
  %v380 = vadd.f32 0.0, %v379
  %v381 = vpop.f32.mrb[0].mxu0
  %382 = vmatprep.mubr.bf16.mxu0 0
  %383 = vmatmul.mubr.bf16.gmra.mrb[0].mxu0 %v179
  %v384 = vpop.f32.mrb[0].mxu0
  %v385 = vadd.f32 0.0, %v384
  %v386 = vpop.f32.mrb[0].mxu0
  %v387 = vpop.f32.mrb[0].mxu0
  %v388 = vadd.f32 0.0, %v387
  %v389 = vpop.f32.mrb[0].mxu0
  %390 = vmatprep.mubr.bf16.mxu0 0
  %391 = vmatmul.mubr.bf16.gmra.mrb[0].mxu0 %v180
  %v392 = vpop.f32.mrb[0].mxu0
  %v393 = vadd.f32 0.0, %v392
  %v394 = vpop.f32.mrb[0].mxu0
  %v395 = vpop.f32.mrb[0].mxu0
  %v396 = vadd.f32 0.0, %v395
  %v397 = vpop.f32.mrb[0].mxu0
  %398 = vmatprep.mubr.bf16.mxu0 0
  %399 = vmatmul.mubr.bf16.gmra.mrb[0].mxu0 %v181
  %v400 = vpop.f32.mrb[0].mxu0
  %v401 = vadd.f32 0.0, %v400
  %v402 = vpop.f32.mrb[0].mxu0
  %v403 = vpop.f32.mrb[0].mxu0
  %v404 = vadd.f32 0.0, %v403
  %v405 = vpop.f32.mrb[0].mxu0
  %406 = vdwg.mxu0
  %v407 = vpack.c.bf16 %v284, %v281
  %v408 = vpack.c.bf16 %v292, %v289
  %v409 = vpack.c.bf16 %v300, %v297
  %v410 = vpack.c.bf16 %v308, %v305
  %v411 = vpack.c.bf16 %v316, %v313
  %v412 = vpack.c.bf16 %v324, %v321
  %v413 = vpack.c.bf16 %v332, %v329
  %v414 = vpack.c.bf16 %v340, %v337
  %v415 = vpack.c.bf16 %v348, %v345
  %v416 = vpack.c.bf16 %v356, %v353
  %v417 = vpack.c.bf16 %v364, %v361
  %v418 = vpack.c.bf16 %v372, %v369
  %v419 = vpack.c.bf16 %v380, %v377
  %v420 = vpack.c.bf16 %v388, %v385
  %v421 = vpack.c.bf16 %v396, %v393
  %v422 = vpack.c.bf16 %v404, %v401
  %v423 = vld [vmem:[#allocation2] sm:$0xff]
  %v424 = vld [vmem:[#allocation2 + $0x8] sm:$0xff]
  %v425 = vld [vmem:[#allocation2 + $0x10] sm:$0xff]
  %v426 = vld [vmem:[#allocation2 + $0x18] sm:$0xff]
  %v427 = vld [vmem:[#allocation2 + $0x20] sm:$0xff]
  %v428 = vld [vmem:[#allocation2 + $0x28] sm:$0xff]
  %v429 = vld [vmem:[#allocation2 + $0x30] sm:$0xff]
  %v430 = vld [vmem:[#allocation2 + $0x38] sm:$0xff]
  %v431 = vld [vmem:[#allocation2 + $0x40] sm:$0xff]
  %v432 = vld [vmem:[#allocation2 + $0x48] sm:$0xff]
  %v433 = vld [vmem:[#allocation2 + $0x50] sm:$0xff]
  %v434 = vld [vmem:[#allocation2 + $0x58] sm:$0xff]
  %v435 = vld [vmem:[#allocation2 + $0x60] sm:$0xff]
  %v436 = vld [vmem:[#allocation2 + $0x68] sm:$0xff]
  %v437 = vld [vmem:[#allocation2 + $0x70] sm:$0xff]
  %v438 = vld [vmem:[#allocation2 + $0x78] sm:$0xff]
  %v439 = vld [vmem:[#allocation2 + $0x80] sm:$0xff]
  %v440 = vld [vmem:[#allocation2 + $0x88] sm:$0xff]
  %v441 = vld [vmem:[#allocation2 + $0x90] sm:$0xff]
  %v442 = vld [vmem:[#allocation2 + $0x98] sm:$0xff]
  %v443 = vld [vmem:[#allocation2 + $0xa0] sm:$0xff]
  %v444 = vld [vmem:[#allocation2 + $0xa8] sm:$0xff]
  %v445 = vld [vmem:[#allocation2 + $0xb0] sm:$0xff]
  %v446 = vld [vmem:[#allocation2 + $0xb8] sm:$0xff]
  %v447 = vld [vmem:[#allocation2 + $0xc0] sm:$0xff]
  %v448 = vld [vmem:[#allocation2 + $0xc8] sm:$0xff]
  %v449 = vld [vmem:[#allocation2 + $0xd0] sm:$0xff]
  %v450 = vld [vmem:[#allocation2 + $0xd8] sm:$0xff]
  %v451 = vld [vmem:[#allocation2 + $0xe0] sm:$0xff]
  %v452 = vld [vmem:[#allocation2 + $0xe8] sm:$0xff]
  %v453 = vld [vmem:[#allocation2 + $0xf0] sm:$0xff]
  %v454 = vld [vmem:[#allocation2 + $0xf8] sm:$0xff]
  %v455 = vld [vmem:[%s0] sm:$0xff]
  %v456 = vld [vmem:[%s0 + $0x8] sm:$0xff]
  %v457 = vld [vmem:[%s0 + $0x10] sm:$0xff]
  %v458 = vld [vmem:[%s0 + $0x18] sm:$0xff]
  %v459 = vld [vmem:[%s0 + $0x20] sm:$0xff]
  %v460 = vld [vmem:[%s0 + $0x28] sm:$0xff]
  %v461 = vld [vmem:[%s0 + $0x30] sm:$0xff]
  %v462 = vld [vmem:[%s0 + $0x38] sm:$0xff]
  %v463 = vld [vmem:[%s0 + $0x40] sm:$0xff]
  %v464 = vld [vmem:[%s0 + $0x48] sm:$0xff]
  %v465 = vld [vmem:[%s0 + $0x50] sm:$0xff]
  %v466 = vld [vmem:[%s0 + $0x58] sm:$0xff]
  %v467 = vld [vmem:[%s0 + $0x60] sm:$0xff]
  %v468 = vld [vmem:[%s0 + $0x68] sm:$0xff]
  %v469 = vld [vmem:[%s0 + $0x70] sm:$0xff]
  %v470 = vld [vmem:[%s0 + $0x78] sm:$0xff]
  %v471 = vld [vmem:[%s0 + $0x80] sm:$0xff]
  %v472 = vld [vmem:[%s0 + $0x88] sm:$0xff]
  %v473 = vld [vmem:[%s0 + $0x90] sm:$0xff]
  %v474 = vld [vmem:[%s0 + $0x98] sm:$0xff]
  %v475 = vld [vmem:[%s0 + $0xa0] sm:$0xff]
  %v476 = vld [vmem:[%s0 + $0xa8] sm:$0xff]
  %v477 = vld [vmem:[%s0 + $0xb0] sm:$0xff]
  %v478 = vld [vmem:[%s0 + $0xb8] sm:$0xff]
  %v479 = vld [vmem:[%s0 + $0xc0] sm:$0xff]
  %v480 = vld [vmem:[%s0 + $0xc8] sm:$0xff]
  %v481 = vld [vmem:[%s0 + $0xd0] sm:$0xff]
  %v482 = vld [vmem:[%s0 + $0xd8] sm:$0xff]
  %v483 = vld [vmem:[%s0 + $0xe0] sm:$0xff]
  %v484 = vld [vmem:[%s0 + $0xe8] sm:$0xff]
  %v485 = vld [vmem:[%s0 + $0xf0] sm:$0xff]
  %v486 = vld [vmem:[%s0 + $0xf8] sm:$0xff]
  %v519 = vunpack.c.l.b16 %v455
  %v520 = vunpack.c.h.b16 %v455
  %v521 = vunpack.c.l.b16 %v456
  %v522 = vunpack.c.h.b16 %v456
  %v523 = vunpack.c.l.b16 %v457
  %v524 = vunpack.c.h.b16 %v457
  %v525 = vunpack.c.l.b16 %v458
  %v526 = vunpack.c.h.b16 %v458
  %v527 = vunpack.c.l.b16 %v459
  %v528 = vunpack.c.h.b16 %v459
  %v529 = vunpack.c.l.b16 %v460
  %v530 = vunpack.c.h.b16 %v460
  %v531 = vunpack.c.l.b16 %v461
  %v532 = vunpack.c.h.b16 %v461
  %v533 = vunpack.c.l.b16 %v462
  %v534 = vunpack.c.h.b16 %v462
  %v535 = vunpack.c.l.b16 %v463
  %v536 = vunpack.c.h.b16 %v463
  %v537 = vunpack.c.l.b16 %v464
  %v538 = vunpack.c.h.b16 %v464
  %v539 = vunpack.c.l.b16 %v465
  %v540 = vunpack.c.h.b16 %v465
  %v541 = vunpack.c.l.b16 %v466
  %v542 = vunpack.c.h.b16 %v466
  %v543 = vunpack.c.l.b16 %v467
  %v544 = vunpack.c.h.b16 %v467
  %v545 = vunpack.c.l.b16 %v468
  %v546 = vunpack.c.h.b16 %v468
  %v547 = vunpack.c.l.b16 %v469
  %v548 = vunpack.c.h.b16 %v469
  %v549 = vunpack.c.l.b16 %v470
  %v550 = vunpack.c.h.b16 %v470
  %v551 = vunpack.c.l.b16 %v471
  %v552 = vunpack.c.h.b16 %v471
  %v553 = vunpack.c.l.b16 %v472
  %v554 = vunpack.c.h.b16 %v472
  %v555 = vunpack.c.l.b16 %v473
  %v556 = vunpack.c.h.b16 %v473
  %v557 = vunpack.c.l.b16 %v474
  %v558 = vunpack.c.h.b16 %v474
  %v559 = vunpack.c.l.b16 %v475
  %v560 = vunpack.c.h.b16 %v475
  %v561 = vunpack.c.l.b16 %v476
  %v562 = vunpack.c.h.b16 %v476
  %v563 = vunpack.c.l.b16 %v477
  %v564 = vunpack.c.h.b16 %v477
  %v565 = vunpack.c.l.b16 %v478
  %v566 = vunpack.c.h.b16 %v478
  %v567 = vunpack.c.l.b16 %v479
  %v568 = vunpack.c.h.b16 %v479
  %v569 = vunpack.c.l.b16 %v480
  %v570 = vunpack.c.h.b16 %v480
  %v571 = vunpack.c.l.b16 %v481
  %v572 = vunpack.c.h.b16 %v481
  %v573 = vunpack.c.l.b16 %v482
  %v574 = vunpack.c.h.b16 %v482
  %v575 = vunpack.c.l.b16 %v483
  %v576 = vunpack.c.h.b16 %v483
  %v577 = vunpack.c.l.b16 %v484
  %v578 = vunpack.c.h.b16 %v484
  %v579 = vunpack.c.l.b16 %v485
  %v580 = vunpack.c.h.b16 %v485
  %v581 = vunpack.c.l.b16 %v486
  %v582 = vunpack.c.h.b16 %v486
  %v583 = vpack.c.b16 %v521, %v519
  %v584 = vpack.c.b16 %v522, %v520
  %v585 = vpack.c.b16 %v525, %v523
  %v586 = vpack.c.b16 %v526, %v524
  %v587 = vpack.c.b16 %v529, %v527
  %v588 = vpack.c.b16 %v530, %v528
  %v589 = vpack.c.b16 %v533, %v531
  %v590 = vpack.c.b16 %v534, %v532
  %v591 = vpack.c.b16 %v537, %v535
  %v592 = vpack.c.b16 %v538, %v536
  %v593 = vpack.c.b16 %v541, %v539
  %v594 = vpack.c.b16 %v542, %v540
  %v595 = vpack.c.b16 %v545, %v543
  %v596 = vpack.c.b16 %v546, %v544
  %v597 = vpack.c.b16 %v549, %v547
  %v598 = vpack.c.b16 %v550, %v548
  %v599 = vpack.c.b16 %v553, %v551
  %v600 = vpack.c.b16 %v554, %v552
  %v601 = vpack.c.b16 %v557, %v555
  %v602 = vpack.c.b16 %v558, %v556
  %v603 = vpack.c.b16 %v561, %v559
  %v604 = vpack.c.b16 %v562, %v560
  %v605 = vpack.c.b16 %v565, %v563
  %v606 = vpack.c.b16 %v566, %v564
  %v607 = vpack.c.b16 %v569, %v567
  %v608 = vpack.c.b16 %v570, %v568
  %v609 = vpack.c.b16 %v573, %v571
  %v610 = vpack.c.b16 %v574, %v572
  %v611 = vpack.c.b16 %v577, %v575
  %v612 = vpack.c.b16 %v578, %v576
  %v613 = vpack.c.b16 %v581, %v579
  %v614 = vpack.c.b16 %v582, %v580
  %647 = vmatprep.subr.bf16.mxu0 0
  %648 = vmatpush1.bf16.msra.mxu0 %v407
  %649 = vmatprep.subr.bf16.mxu0 0
  %650 = vmatpush1.bf16.msra.mxu0 %v408
  %651 = vmatprep.subr.bf16.mxu0 0
  %652 = vmatpush1.bf16.msra.mxu0 %v409
  %653 = vmatprep.subr.bf16.mxu0 0
  %654 = vmatpush1.bf16.msra.mxu0 %v410
  %655 = vmatprep.subr.bf16.mxu0 0
  %656 = vmatpush1.bf16.msra.mxu0 %v411
  %657 = vmatprep.subr.bf16.mxu0 0
  %658 = vmatpush1.bf16.msra.mxu0 %v412
  %659 = vmatprep.subr.bf16.mxu0 0
  %660 = vmatpush1.bf16.msra.mxu0 %v413
  %661 = vmatprep.subr.bf16.mxu0 0
  %662 = vmatpush1.bf16.msra.mxu0 %v414
  %663 = vmatprep.subr.bf16.mxu0 0
  %664 = vmatpush1.bf16.msra.mxu0 %v415
  %665 = vmatprep.subr.bf16.mxu0 0
  %666 = vmatpush1.bf16.msra.mxu0 %v416
  %667 = vmatprep.subr.bf16.mxu0 0
  %668 = vmatpush1.bf16.msra.mxu0 %v417
  %669 = vmatprep.subr.bf16.mxu0 0
  %670 = vmatpush1.bf16.msra.mxu0 %v418
  %671 = vmatprep.subr.bf16.mxu0 0
  %672 = vmatpush1.bf16.msra.mxu0 %v419
  %673 = vmatprep.subr.bf16.mxu0 0
  %674 = vmatpush1.bf16.msra.mxu0 %v420
  %675 = vmatprep.subr.bf16.mxu0 0
  %676 = vmatpush1.bf16.msra.mxu0 %v421
  %677 = vmatprep.subr.bf16.mxu0 0
  %678 = vmatpush1.bf16.msra.mxu0 %v422
  %679 = vmatprep.mubr.bf16.mxu0 %v584
  %680 = vmatmul.mubr.bf16.gmra.mrb[0].mxu0 %v583
  %v681 = vpop.f32.mrb[0].mxu0
  %v682 = vadd.f32 0.0, %v681
  %v683 = vpop.f32.mrb[0].mxu0
  %v684 = vpop.f32.mrb[0].mxu0
  %v685 = vadd.f32 0.0, %v684
  %v686 = vpop.f32.mrb[0].mxu0
  %687 = vmatprep.mubr.bf16.mxu0 %v586
  %688 = vmatmul.mubr.bf16.gmra.mrb[0].mxu0 %v585
  %v689 = vpop.f32.mrb[0].mxu0
  %v690 = vadd.f32 0.0, %v689
  %v691 = vpop.f32.mrb[0].mxu0
  %v692 = vpop.f32.mrb[0].mxu0
  %v693 = vadd.f32 0.0, %v692
  %v694 = vpop.f32.mrb[0].mxu0
  %695 = vmatprep.mubr.bf16.mxu0 %v588
  %696 = vmatmul.mubr.bf16.gmra.mrb[0].mxu0 %v587
  %v697 = vpop.f32.mrb[0].mxu0
  %v698 = vadd.f32 0.0, %v697
  %v699 = vpop.f32.mrb[0].mxu0
  %v700 = vpop.f32.mrb[0].mxu0
  %v701 = vadd.f32 0.0, %v700
  %v702 = vpop.f32.mrb[0].mxu0
  %703 = vmatprep.mubr.bf16.mxu0 %v590
  %704 = vmatmul.mubr.bf16.gmra.mrb[0].mxu0 %v589
  %v705 = vpop.f32.mrb[0].mxu0
  %v706 = vadd.f32 0.0, %v705
  %v707 = vpop.f32.mrb[0].mxu0
  %v708 = vpop.f32.mrb[0].mxu0
  %v709 = vadd.f32 0.0, %v708
  %v710 = vpop.f32.mrb[0].mxu0
  %711 = vmatprep.mubr.bf16.mxu0 %v592
  %712 = vmatmul.mubr.bf16.gmra.mrb[0].mxu0 %v591
  %v713 = vpop.f32.mrb[0].mxu0
  %v714 = vadd.f32 0.0, %v713
  %v715 = vpop.f32.mrb[0].mxu0
  %v716 = vpop.f32.mrb[0].mxu0
  %v717 = vadd.f32 0.0, %v716
  %v718 = vpop.f32.mrb[0].mxu0
  %719 = vmatprep.mubr.bf16.mxu0 %v594
  %720 = vmatmul.mubr.bf16.gmra.mrb[0].mxu0 %v593
  %v721 = vpop.f32.mrb[0].mxu0
  %v722 = vadd.f32 0.0, %v721
  %v723 = vpop.f32.mrb[0].mxu0
  %v724 = vpop.f32.mrb[0].mxu0
  %v725 = vadd.f32 0.0, %v724
  %v726 = vpop.f32.mrb[0].mxu0
  %727 = vmatprep.mubr.bf16.mxu0 %v596
  %728 = vmatmul.mubr.bf16.gmra.mrb[0].mxu0 %v595
  %v729 = vpop.f32.mrb[0].mxu0
  %v730 = vadd.f32 0.0, %v729
  %v731 = vpop.f32.mrb[0].mxu0
  %v732 = vpop.f32.mrb[0].mxu0
  %v733 = vadd.f32 0.0, %v732
  %v734 = vpop.f32.mrb[0].mxu0
  %735 = vmatprep.mubr.bf16.mxu0 %v598
  %736 = vmatmul.mubr.bf16.gmra.mrb[0].mxu0 %v597
  %v737 = vpop.f32.mrb[0].mxu0
  %v738 = vadd.f32 0.0, %v737
  %v739 = vpop.f32.mrb[0].mxu0
  %v740 = vpop.f32.mrb[0].mxu0
  %v741 = vadd.f32 0.0, %v740
  %v742 = vpop.f32.mrb[0].mxu0
  %743 = vmatprep.mubr.bf16.mxu0 %v600
  %744 = vmatmul.mubr.bf16.gmra.mrb[0].mxu0 %v599
  %v745 = vpop.f32.mrb[0].mxu0
  %v746 = vadd.f32 0.0, %v745
  %v747 = vpop.f32.mrb[0].mxu0
  %v748 = vpop.f32.mrb[0].mxu0
  %v749 = vadd.f32 0.0, %v748
  %v750 = vpop.f32.mrb[0].mxu0
  %751 = vmatprep.mubr.bf16.mxu0 %v602
  %752 = vmatmul.mubr.bf16.gmra.mrb[0].mxu0 %v601
  %v753 = vpop.f32.mrb[0].mxu0
  %v754 = vadd.f32 0.0, %v753
  %v755 = vpop.f32.mrb[0].mxu0
  %v756 = vpop.f32.mrb[0].mxu0
  %v757 = vadd.f32 0.0, %v756
  %v758 = vpop.f32.mrb[0].mxu0
  %759 = vmatprep.mubr.bf16.mxu0 %v604
  %760 = vmatmul.mubr.bf16.gmra.mrb[0].mxu0 %v603
  %v761 = vpop.f32.mrb[0].mxu0
  %v762 = vadd.f32 0.0, %v761
  %v763 = vpop.f32.mrb[0].mxu0
  %v764 = vpop.f32.mrb[0].mxu0
  %v765 = vadd.f32 0.0, %v764
  %v766 = vpop.f32.mrb[0].mxu0
  %767 = vmatprep.mubr.bf16.mxu0 %v606
  %768 = vmatmul.mubr.bf16.gmra.mrb[0].mxu0 %v605
  %v769 = vpop.f32.mrb[0].mxu0
  %v770 = vadd.f32 0.0, %v769
  %v771 = vpop.f32.mrb[0].mxu0
  %v772 = vpop.f32.mrb[0].mxu0
  %v773 = vadd.f32 0.0, %v772
  %v774 = vpop.f32.mrb[0].mxu0
  %775 = vmatprep.mubr.bf16.mxu0 %v608
  %776 = vmatmul.mubr.bf16.gmra.mrb[0].mxu0 %v607
  %v777 = vpop.f32.mrb[0].mxu0
  %v778 = vadd.f32 0.0, %v777
  %v779 = vpop.f32.mrb[0].mxu0
  %v780 = vpop.f32.mrb[0].mxu0
  %v781 = vadd.f32 0.0, %v780
  %v782 = vpop.f32.mrb[0].mxu0
  %783 = vmatprep.mubr.bf16.mxu0 %v610
  %784 = vmatmul.mubr.bf16.gmra.mrb[0].mxu0 %v609
  %v785 = vpop.f32.mrb[0].mxu0
  %v786 = vadd.f32 0.0, %v785
  %v787 = vpop.f32.mrb[0].mxu0
  %v788 = vpop.f32.mrb[0].mxu0
  %v789 = vadd.f32 0.0, %v788
  %v790 = vpop.f32.mrb[0].mxu0
  %791 = vmatprep.mubr.bf16.mxu0 %v612
  %792 = vmatmul.mubr.bf16.gmra.mrb[0].mxu0 %v611
  %v793 = vpop.f32.mrb[0].mxu0
  %v794 = vadd.f32 0.0, %v793
  %v795 = vpop.f32.mrb[0].mxu0
  %v796 = vpop.f32.mrb[0].mxu0
  %v797 = vadd.f32 0.0, %v796
  %v798 = vpop.f32.mrb[0].mxu0
  %799 = vmatprep.mubr.bf16.mxu0 %v614
  %800 = vmatmul.mubr.bf16.gmra.mrb[0].mxu0 %v613
  %v801 = vpop.f32.mrb[0].mxu0
  %v802 = vadd.f32 0.0, %v801
  %v803 = vpop.f32.mrb[0].mxu0
  %v804 = vpop.f32.mrb[0].mxu0
  %v805 = vadd.f32 0.0, %v804
  %v806 = vpop.f32.mrb[0].mxu0
  %807 = vdwg.mxu0
  %v808 = vadd.f32 %v423, %v682
  %v809 = vadd.f32 %v424, %v685
  %v810 = vadd.f32 %v425, %v690
  %v811 = vadd.f32 %v426, %v693
  %v812 = vadd.f32 %v427, %v698
  %v813 = vadd.f32 %v428, %v701
  %v814 = vadd.f32 %v429, %v706
  %v815 = vadd.f32 %v430, %v709
  %v816 = vadd.f32 %v431, %v714
  %v817 = vadd.f32 %v432, %v717
  %v818 = vadd.f32 %v433, %v722
  %v819 = vadd.f32 %v434, %v725
  %v820 = vadd.f32 %v435, %v730
  %v821 = vadd.f32 %v436, %v733
  %v822 = vadd.f32 %v437, %v738
  %v823 = vadd.f32 %v438, %v741
  %v824 = vadd.f32 %v439, %v746
  %v825 = vadd.f32 %v440, %v749
  %v826 = vadd.f32 %v441, %v754
  %v827 = vadd.f32 %v442, %v757
  %v828 = vadd.f32 %v443, %v762
  %v829 = vadd.f32 %v444, %v765
  %v830 = vadd.f32 %v445, %v770
  %v831 = vadd.f32 %v446, %v773
  %v832 = vadd.f32 %v447, %v778
  %v833 = vadd.f32 %v448, %v781
  %v834 = vadd.f32 %v449, %v786
  %v835 = vadd.f32 %v450, %v789
  %v836 = vadd.f32 %v451, %v794
  %v837 = vadd.f32 %v452, %v797
  %v838 = vadd.f32 %v453, %v802
  %v839 = vadd.f32 %v454, %v805
  %840 = vst [vmem:[#allocation2] sm:$0xff] %v808
  %841 = vst [vmem:[#allocation2 + $0x8] sm:$0xff] %v809
  %842 = vst [vmem:[#allocation2 + $0x10] sm:$0xff] %v810
  %843 = vst [vmem:[#allocation2 + $0x18] sm:$0xff] %v811
  %844 = vst [vmem:[#allocation2 + $0x20] sm:$0xff] %v812
  %845 = vst [vmem:[#allocation2 + $0x28] sm:$0xff] %v813
  %846 = vst [vmem:[#allocation2 + $0x30] sm:$0xff] %v814
  %847 = vst [vmem:[#allocation2 + $0x38] sm:$0xff] %v815
  %848 = vst [vmem:[#allocation2 + $0x40] sm:$0xff] %v816
  %849 = vst [vmem:[#allocation2 + $0x48] sm:$0xff] %v817
  %850 = vst [vmem:[#allocation2 + $0x50] sm:$0xff] %v818
  %851 = vst [vmem:[#allocation2 + $0x58] sm:$0xff] %v819
  %852 = vst [vmem:[#allocation2 + $0x60] sm:$0xff] %v820
  %853 = vst [vmem:[#allocation2 + $0x68] sm:$0xff] %v821
  %854 = vst [vmem:[#allocation2 + $0x70] sm:$0xff] %v822
  %855 = vst [vmem:[#allocation2 + $0x78] sm:$0xff] %v823
  %856 = vst [vmem:[#allocation2 + $0x80] sm:$0xff] %v824
  %857 = vst [vmem:[#allocation2 + $0x88] sm:$0xff] %v825
  %858 = vst [vmem:[#allocation2 + $0x90] sm:$0xff] %v826
  %859 = vst [vmem:[#allocation2 + $0x98] sm:$0xff] %v827
  %860 = vst [vmem:[#allocation2 + $0xa0] sm:$0xff] %v828
  %861 = vst [vmem:[#allocation2 + $0xa8] sm:$0xff] %v829
  %862 = vst [vmem:[#allocation2 + $0xb0] sm:$0xff] %v830
  %863 = vst [vmem:[#allocation2 + $0xb8] sm:$0xff] %v831
  %864 = vst [vmem:[#allocation2 + $0xc0] sm:$0xff] %v832
  %865 = vst [vmem:[#allocation2 + $0xc8] sm:$0xff] %v833
  %866 = vst [vmem:[#allocation2 + $0xd0] sm:$0xff] %v834
  %867 = vst [vmem:[#allocation2 + $0xd8] sm:$0xff] %v835
  %868 = vst [vmem:[#allocation2 + $0xe0] sm:$0xff] %v836
  %869 = vst [vmem:[#allocation2 + $0xe8] sm:$0xff] %v837
  %870 = vst [vmem:[#allocation2 + $0xf0] sm:$0xff] %v838
  %871 = vst [vmem:[#allocation2 + $0xf8] sm:$0xff] %v839
  // Predicated region
  $region22: #{dominant_forward.7} parent=0 // pred_check
    %p872 = pneg %p18
  $region23: #{dominant_forward.7} parent=0 // pred_check_branch
    %874 = sbr.rel (%p872) target = $region25
  $region24: #{dominant_forward.7} parent=0 // pred_region
    %v875 = vld [vmem:[#allocation2] sm:$0xff]
    %v876 = vld [vmem:[#allocation2 + $0x8] sm:$0xff]
    %v877 = vld [vmem:[#allocation2 + $0x10] sm:$0xff]
    %v878 = vld [vmem:[#allocation2 + $0x18] sm:$0xff]
    %v879 = vld [vmem:[#allocation2 + $0x20] sm:$0xff]
    %v880 = vld [vmem:[#allocation2 + $0x28] sm:$0xff]
    %v881 = vld [vmem:[#allocation2 + $0x30] sm:$0xff]
    %v882 = vld [vmem:[#allocation2 + $0x38] sm:$0xff]
    %v883 = vld [vmem:[#allocation2 + $0x40] sm:$0xff]
    %v884 = vld [vmem:[#allocation2 + $0x48] sm:$0xff]
    %v885 = vld [vmem:[#allocation2 + $0x50] sm:$0xff]
    %v886 = vld [vmem:[#allocation2 + $0x58] sm:$0xff]
    %v887 = vld [vmem:[#allocation2 + $0x60] sm:$0xff]
    %v888 = vld [vmem:[#allocation2 + $0x68] sm:$0xff]
    %v889 = vld [vmem:[#allocation2 + $0x70] sm:$0xff]
    %v890 = vld [vmem:[#allocation2 + $0x78] sm:$0xff]
    %v891 = vld [vmem:[#allocation2 + $0x80] sm:$0xff]
    %v892 = vld [vmem:[#allocation2 + $0x88] sm:$0xff]
    %v893 = vld [vmem:[#allocation2 + $0x90] sm:$0xff]
    %v894 = vld [vmem:[#allocation2 + $0x98] sm:$0xff]
    %v895 = vld [vmem:[#allocation2 + $0xa0] sm:$0xff]
    %v896 = vld [vmem:[#allocation2 + $0xa8] sm:$0xff]
    %v897 = vld [vmem:[#allocation2 + $0xb0] sm:$0xff]
    %v898 = vld [vmem:[#allocation2 + $0xb8] sm:$0xff]
    %v899 = vld [vmem:[#allocation2 + $0xc0] sm:$0xff]
    %v900 = vld [vmem:[#allocation2 + $0xc8] sm:$0xff]
    %v901 = vld [vmem:[#allocation2 + $0xd0] sm:$0xff]
    %v902 = vld [vmem:[#allocation2 + $0xd8] sm:$0xff]
    %v903 = vld [vmem:[#allocation2 + $0xe0] sm:$0xff]
    %v904 = vld [vmem:[#allocation2 + $0xe8] sm:$0xff]
    %v905 = vld [vmem:[#allocation2 + $0xf0] sm:$0xff]
    %v906 = vld [vmem:[#allocation2 + $0xf8] sm:$0xff]
    %v907 = vld [vmem:[%s3] sm:$0x1]
    %v909 = vlaneseq
    %v910 = vshrl.u32 %v909, 7
    %v911 = vsub.s32 0, %v910
    %v912 = vrot.slane %v907, %v911
    %v914 = vadd.f32 %v875, %v912
    %v915 = vadd.f32 %v876, %v912
    %v916 = vadd.f32 %v877, %v912
    %v917 = vadd.f32 %v878, %v912
    %v918 = vadd.f32 %v879, %v912
    %v919 = vadd.f32 %v880, %v912
    %v920 = vadd.f32 %v881, %v912
    %v921 = vadd.f32 %v882, %v912
    %v922 = vadd.f32 %v883, %v912
    %v923 = vadd.f32 %v884, %v912
    %v924 = vadd.f32 %v885, %v912
    %v925 = vadd.f32 %v886, %v912
    %v926 = vadd.f32 %v887, %v912
    %v927 = vadd.f32 %v888, %v912
    %v928 = vadd.f32 %v889, %v912
    %v929 = vadd.f32 %v890, %v912
    %v930 = vadd.f32 %v891, %v912
    %v931 = vadd.f32 %v892, %v912
    %v932 = vadd.f32 %v893, %v912
    %v933 = vadd.f32 %v894, %v912
    %v934 = vadd.f32 %v895, %v912
    %v935 = vadd.f32 %v896, %v912
    %v936 = vadd.f32 %v897, %v912
    %v937 = vadd.f32 %v898, %v912
    %v938 = vadd.f32 %v899, %v912
    %v939 = vadd.f32 %v900, %v912
    %v940 = vadd.f32 %v901, %v912
    %v941 = vadd.f32 %v902, %v912
    %v942 = vadd.f32 %v903, %v912
    %v943 = vadd.f32 %v904, %v912
    %v944 = vadd.f32 %v905, %v912
    %v945 = vadd.f32 %v906, %v912
    %v946 = vlaneseq
    %v947 = vand.u32 %v946, 127
    %vm948 = vcmp.lt.s32.totalorder %v947, 32
    %v949 = vmax.f32 %v914, 0.0
    %v950 = vmax.f32 %v915, 0.0
    %v951 = vmax.f32 %v916, 0.0
    %v952 = vmax.f32 %v917, 0.0
    %v953 = vmax.f32 %v918, 0.0
    %v954 = vmax.f32 %v919, 0.0
    %v955 = vmax.f32 %v920, 0.0
    %v956 = vmax.f32 %v921, 0.0
    %v957 = vmax.f32 %v922, 0.0
    %v958 = vmax.f32 %v923, 0.0
    %v959 = vmax.f32 %v924, 0.0
    %v960 = vmax.f32 %v925, 0.0
    %v961 = vmax.f32 %v926, 0.0
    %v962 = vmax.f32 %v927, 0.0
    %v963 = vmax.f32 %v928, 0.0
    %v964 = vmax.f32 %v929, 0.0
    %v965 = vmax.f32 %v930, 0.0
    %v966 = vmax.f32 %v931, 0.0
    %v967 = vmax.f32 %v932, 0.0
    %v968 = vmax.f32 %v933, 0.0
    %v969 = vmax.f32 %v934, 0.0
    %v970 = vmax.f32 %v935, 0.0
    %v971 = vmax.f32 %v936, 0.0
    %v972 = vmax.f32 %v937, 0.0
    %v973 = vmax.f32 %v938, 0.0
    %v974 = vmax.f32 %v939, 0.0
    %v975 = vmax.f32 %v940, 0.0
    %v976 = vmax.f32 %v941, 0.0
    %v977 = vmax.f32 %v942, 0.0
    %v978 = vmax.f32 %v943, 0.0
    %v979 = vmax.f32 %v944, 0.0
    %v980 = vmax.f32 %v945, 0.0
    %v981 = vsel %vm948, %v949, %v914
    %v982 = vsel %vm948, %v950, %v915
    %v983 = vsel %vm948, %v951, %v916
    %v984 = vsel %vm948, %v952, %v917
    %v985 = vsel %vm948, %v953, %v918
    %v986 = vsel %vm948, %v954, %v919
    %v987 = vsel %vm948, %v955, %v920
    %v988 = vsel %vm948, %v956, %v921
    %v989 = vsel %vm948, %v957, %v922
    %v990 = vsel %vm948, %v958, %v923
    %v991 = vsel %vm948, %v959, %v924
    %v992 = vsel %vm948, %v960, %v925
    %v993 = vsel %vm948, %v961, %v926
    %v994 = vsel %vm948, %v962, %v927
    %v995 = vsel %vm948, %v963, %v928
    %v996 = vsel %vm948, %v964, %v929
    %v997 = vsel %vm948, %v965, %v930
    %v998 = vsel %vm948, %v966, %v931
    %v999 = vsel %vm948, %v967, %v932
    %v1000 = vsel %vm948, %v968, %v933
    %v1001 = vsel %vm948, %v969, %v934
    %v1002 = vsel %vm948, %v970, %v935
    %v1003 = vsel %vm948, %v971, %v936
    %v1004 = vsel %vm948, %v972, %v937
    %v1005 = vsel %vm948, %v973, %v938
    %v1006 = vsel %vm948, %v974, %v939
    %v1007 = vsel %vm948, %v975, %v940
    %v1008 = vsel %vm948, %v976, %v941
    %v1009 = vsel %vm948, %v977, %v942
    %v1010 = vsel %vm948, %v978, %v943
    %v1011 = vsel %vm948, %v979, %v944
    %v1012 = vsel %vm948, %v980, %v945
    %v1013 = vpack.c.bf16 %v982, %v981
    %v1014 = vpack.c.bf16 %v984, %v983
    %v1015 = vpack.c.bf16 %v986, %v985
    %v1016 = vpack.c.bf16 %v988, %v987
    %v1017 = vpack.c.bf16 %v990, %v989
    %v1018 = vpack.c.bf16 %v992, %v991
    %v1019 = vpack.c.bf16 %v994, %v993
    %v1020 = vpack.c.bf16 %v996, %v995
    %v1021 = vpack.c.bf16 %v998, %v997
    %v1022 = vpack.c.bf16 %v1000, %v999
    %v1023 = vpack.c.bf16 %v1002, %v1001
    %v1024 = vpack.c.bf16 %v1004, %v1003
    %v1025 = vpack.c.bf16 %v1006, %v1005
    %v1026 = vpack.c.bf16 %v1008, %v1007
    %v1027 = vpack.c.bf16 %v1010, %v1009
    %v1028 = vpack.c.bf16 %v1012, %v1011
    %v1045 = vunpack.c.l.b16 %v1013
    %v1046 = vunpack.c.h.b16 %v1013
    %v1047 = vunpack.c.l.b16 %v1014
    %v1048 = vunpack.c.h.b16 %v1014
    %v1049 = vunpack.c.l.b16 %v1015
    %v1050 = vunpack.c.h.b16 %v1015
    %v1051 = vunpack.c.l.b16 %v1016
    %v1052 = vunpack.c.h.b16 %v1016
    %v1053 = vunpack.c.l.b16 %v1017
    %v1054 = vunpack.c.h.b16 %v1017
    %v1055 = vunpack.c.l.b16 %v1018
    %v1056 = vunpack.c.h.b16 %v1018
    %v1057 = vunpack.c.l.b16 %v1019
    %v1058 = vunpack.c.h.b16 %v1019
    %v1059 = vunpack.c.l.b16 %v1020
    %v1060 = vunpack.c.h.b16 %v1020
    %v1061 = vunpack.c.l.b16 %v1021
    %v1062 = vunpack.c.h.b16 %v1021
    %v1063 = vunpack.c.l.b16 %v1022
    %v1064 = vunpack.c.h.b16 %v1022
    %v1065 = vunpack.c.l.b16 %v1023
    %v1066 = vunpack.c.h.b16 %v1023
    %v1067 = vunpack.c.l.b16 %v1024
    %v1068 = vunpack.c.h.b16 %v1024
    %v1069 = vunpack.c.l.b16 %v1025
    %v1070 = vunpack.c.h.b16 %v1025
    %v1071 = vunpack.c.l.b16 %v1026
    %v1072 = vunpack.c.h.b16 %v1026
    %v1073 = vunpack.c.l.b16 %v1027
    %v1074 = vunpack.c.h.b16 %v1027
    %v1075 = vunpack.c.l.b16 %v1028
    %v1076 = vunpack.c.h.b16 %v1028
    %v1077 = vpack.c.b16 %v1045, %v1045
    %v1078 = vpack.c.b16 %v1046, %v1046
    %v1079 = vpack.c.b16 %v1047, %v1047
    %v1080 = vpack.c.b16 %v1048, %v1048
    %v1081 = vpack.c.b16 %v1049, %v1049
    %v1082 = vpack.c.b16 %v1050, %v1050
    %v1083 = vpack.c.b16 %v1051, %v1051
    %v1084 = vpack.c.b16 %v1052, %v1052
    %v1085 = vpack.c.b16 %v1053, %v1053
    %v1086 = vpack.c.b16 %v1054, %v1054
    %v1087 = vpack.c.b16 %v1055, %v1055
    %v1088 = vpack.c.b16 %v1056, %v1056
    %v1089 = vpack.c.b16 %v1057, %v1057
    %v1090 = vpack.c.b16 %v1058, %v1058
    %v1091 = vpack.c.b16 %v1059, %v1059
    %v1092 = vpack.c.b16 %v1060, %v1060
    %v1093 = vpack.c.b16 %v1061, %v1061
    %v1094 = vpack.c.b16 %v1062, %v1062
    %v1095 = vpack.c.b16 %v1063, %v1063
    %v1096 = vpack.c.b16 %v1064, %v1064
    %v1097 = vpack.c.b16 %v1065, %v1065
    %v1098 = vpack.c.b16 %v1066, %v1066
    %v1099 = vpack.c.b16 %v1067, %v1067
    %v1100 = vpack.c.b16 %v1068, %v1068
    %v1101 = vpack.c.b16 %v1069, %v1069
    %v1102 = vpack.c.b16 %v1070, %v1070
    %v1103 = vpack.c.b16 %v1071, %v1071
    %v1104 = vpack.c.b16 %v1072, %v1072
    %v1105 = vpack.c.b16 %v1073, %v1073
    %v1106 = vpack.c.b16 %v1074, %v1074
    %v1107 = vpack.c.b16 %v1075, %v1075
    %v1108 = vpack.c.b16 %v1076, %v1076
    %1141 = vst [vmem:[%s4] sm:$0xf] %v1077
    %1142 = vst [vmem:[%s4 + $0x4] sm:$0xf] %v1078
    %1143 = vst [vmem:[%s4 + $0x8] sm:$0xf] %v1079
    %1144 = vst [vmem:[%s4 + $0xc] sm:$0xf] %v1080
    %1145 = vst [vmem:[%s4 + $0x10] sm:$0xf] %v1081
    %1146 = vst [vmem:[%s4 + $0x14] sm:$0xf] %v1082
    %1147 = vst [vmem:[%s4 + $0x18] sm:$0xf] %v1083
    %1148 = vst [vmem:[%s4 + $0x1c] sm:$0xf] %v1084
    %1149 = vst [vmem:[%s4 + $0x20] sm:$0xf] %v1085
    %1150 = vst [vmem:[%s4 + $0x24] sm:$0xf] %v1086
    %1151 = vst [vmem:[%s4 + $0x28] sm:$0xf] %v1087
    %1152 = vst [vmem:[%s4 + $0x2c] sm:$0xf] %v1088
    %1153 = vst [vmem:[%s4 + $0x30] sm:$0xf] %v1089
    %1154 = vst [vmem:[%s4 + $0x34] sm:$0xf] %v1090
    %1155 = vst [vmem:[%s4 + $0x38] sm:$0xf] %v1091
    %1156 = vst [vmem:[%s4 + $0x3c] sm:$0xf] %v1092
    %1157 = vst [vmem:[%s4 + $0x40] sm:$0xf] %v1093
    %1158 = vst [vmem:[%s4 + $0x44] sm:$0xf] %v1094
    %1159 = vst [vmem:[%s4 + $0x48] sm:$0xf] %v1095
    %1160 = vst [vmem:[%s4 + $0x4c] sm:$0xf] %v1096
    %1161 = vst [vmem:[%s4 + $0x50] sm:$0xf] %v1097
    %1162 = vst [vmem:[%s4 + $0x54] sm:$0xf] %v1098
    %1163 = vst [vmem:[%s4 + $0x58] sm:$0xf] %v1099
    %1164 = vst [vmem:[%s4 + $0x5c] sm:$0xf] %v1100
    %1165 = vst [vmem:[%s4 + $0x60] sm:$0xf] %v1101
    %1166 = vst [vmem:[%s4 + $0x64] sm:$0xf] %v1102
    %1167 = vst [vmem:[%s4 + $0x68] sm:$0xf] %v1103
    %1168 = vst [vmem:[%s4 + $0x6c] sm:$0xf] %v1104
    %1169 = vst [vmem:[%s4 + $0x70] sm:$0xf] %v1105
    %1170 = vst [vmem:[%s4 + $0x74] sm:$0xf] %v1106
    %1171 = vst [vmem:[%s4 + $0x78] sm:$0xf] %v1107
    %1172 = vst [vmem:[%s4 + $0x7c] sm:$0xf] %v1108
  $region25: #{dominant_forward.7} parent=0 // pred_fallthru
    _
  // Predicated region
  $region26: #{dominant_forward.7} parent=0 // pred_check
    _
  $region27: #{dominant_forward.7} parent=0 // pred_check_branch
    %1174 = sbr.rel (0) target = $region29
  $region28: #{dominant_forward.7} parent=0 // pred_region
    _
  $region29: #{dominant_forward.7} parent=0 // pred_fallthru
    _
  // Predicated region
  $region30: #{dominant_forward.7} parent=0 // pred_check
    _
  $region31: #{dominant_forward.7} parent=0 // pred_check_branch
    %1176 = sbr.rel (0) target = $region33
  $region32: #{dominant_forward.7} parent=0 // pred_region
    _
  $region33: #{dominant_forward.7} parent=0 // pred_fallthru
    _

// kernel: dominant_forward.9
$region0: #{dominant_forward.9}
  #allocation0 [shape = 'u32[]', space=smem, size = 0x4, offset = 0x4, fixed_abs, tag = 'smem constant byte address 0x4 - core index']
  #allocation1 [shape = 'u32[144,128]{1,0:T(1,128)}', space=vmem, size = 0x12000, scoped, tag = 'internal scratch']
  %s0 = inlined_call_operand.vmem [shape: bf16[256,64], index: 0, kind: input, shape index: {}, may-alias: {0,1}]
  %s1 = inlined_call_operand.vmem [shape: bf16[256,64], index: 1, kind: input, shape index: {}, may-alias: {0,1}]
  %s2 = inlined_call_operand.vmem [shape: f32[256,256], index: 2, kind: output, shape index: {}]
  %s3 = sld [smem:[#allocation0]]
  $region18: #{dominant_forward.9} parent=0
    _
  %s5 = ssub.s32 1, %s3
  %s6 = scalar_select 0, %s5, %s3
  // Predicated region
  $region2: #{dominant_forward.9} parent=0 // pred_check
    _
  $region3: #{dominant_forward.9} parent=0 // pred_check_branch
    %8 = sbr.rel (0) target = $region5
  $region4: #{dominant_forward.9} parent=0 // pred_region
    _
  $region5: #{dominant_forward.9} parent=0 // pred_fallthru
    _
  // Predicated region
  $region6: #{dominant_forward.9} parent=0 // pred_check
    _
  $region7: #{dominant_forward.9} parent=0 // pred_check_branch
    %10 = sbr.rel (0) target = $region9
  $region8: #{dominant_forward.9} parent=0 // pred_region
    _
  $region9: #{dominant_forward.9} parent=0 // pred_fallthru
    _
  %v12 = vld [vmem:[%s0] sm:$0xf]
  %v13 = vld [vmem:[%s0 + $0x4] sm:$0xf]
  %v14 = vld [vmem:[%s0 + $0x8] sm:$0xf]
  %v15 = vld [vmem:[%s0 + $0xc] sm:$0xf]
  %v16 = vld [vmem:[%s0 + $0x10] sm:$0xf]
  %v17 = vld [vmem:[%s0 + $0x14] sm:$0xf]
  %v18 = vld [vmem:[%s0 + $0x18] sm:$0xf]
  %v19 = vld [vmem:[%s0 + $0x1c] sm:$0xf]
  %v20 = vld [vmem:[%s0 + $0x20] sm:$0xf]
  %v21 = vld [vmem:[%s0 + $0x24] sm:$0xf]
  %v22 = vld [vmem:[%s0 + $0x28] sm:$0xf]
  %v23 = vld [vmem:[%s0 + $0x2c] sm:$0xf]
  %v24 = vld [vmem:[%s0 + $0x30] sm:$0xf]
  %v25 = vld [vmem:[%s0 + $0x34] sm:$0xf]
  %v26 = vld [vmem:[%s0 + $0x38] sm:$0xf]
  %v27 = vld [vmem:[%s0 + $0x3c] sm:$0xf]
  %v28 = vld [vmem:[%s0 + $0x40] sm:$0xf]
  %v29 = vld [vmem:[%s0 + $0x44] sm:$0xf]
  %v30 = vld [vmem:[%s0 + $0x48] sm:$0xf]
  %v31 = vld [vmem:[%s0 + $0x4c] sm:$0xf]
  %v32 = vld [vmem:[%s0 + $0x50] sm:$0xf]
  %v33 = vld [vmem:[%s0 + $0x54] sm:$0xf]
  %v34 = vld [vmem:[%s0 + $0x58] sm:$0xf]
  %v35 = vld [vmem:[%s0 + $0x5c] sm:$0xf]
  %v36 = vld [vmem:[%s0 + $0x60] sm:$0xf]
  %v37 = vld [vmem:[%s0 + $0x64] sm:$0xf]
  %v38 = vld [vmem:[%s0 + $0x68] sm:$0xf]
  %v39 = vld [vmem:[%s0 + $0x6c] sm:$0xf]
  %v40 = vld [vmem:[%s0 + $0x70] sm:$0xf]
  %v41 = vld [vmem:[%s0 + $0x74] sm:$0xf]
  %v42 = vld [vmem:[%s0 + $0x78] sm:$0xf]
  %v43 = vld [vmem:[%s0 + $0x7c] sm:$0xf]
  %v44 = vld [vmem:[%s1] sm:$0xf]
  %v45 = vld [vmem:[%s1 + $0x4] sm:$0xf]
  %v46 = vld [vmem:[%s1 + $0x8] sm:$0xf]
  %v47 = vld [vmem:[%s1 + $0xc] sm:$0xf]
  %v48 = vld [vmem:[%s1 + $0x10] sm:$0xf]
  %v49 = vld [vmem:[%s1 + $0x14] sm:$0xf]
  %v50 = vld [vmem:[%s1 + $0x18] sm:$0xf]
  %v51 = vld [vmem:[%s1 + $0x1c] sm:$0xf]
  %v52 = vld [vmem:[%s1 + $0x20] sm:$0xf]
  %v53 = vld [vmem:[%s1 + $0x24] sm:$0xf]
  %v54 = vld [vmem:[%s1 + $0x28] sm:$0xf]
  %v55 = vld [vmem:[%s1 + $0x2c] sm:$0xf]
  %v56 = vld [vmem:[%s1 + $0x30] sm:$0xf]
  %v57 = vld [vmem:[%s1 + $0x34] sm:$0xf]
  %v58 = vld [vmem:[%s1 + $0x38] sm:$0xf]
  %v59 = vld [vmem:[%s1 + $0x3c] sm:$0xf]
  %v60 = vld [vmem:[%s1 + $0x40] sm:$0xf]
  %v61 = vld [vmem:[%s1 + $0x44] sm:$0xf]
  %v62 = vld [vmem:[%s1 + $0x48] sm:$0xf]
  %v63 = vld [vmem:[%s1 + $0x4c] sm:$0xf]
  %v64 = vld [vmem:[%s1 + $0x50] sm:$0xf]
  %v65 = vld [vmem:[%s1 + $0x54] sm:$0xf]
  %v66 = vld [vmem:[%s1 + $0x58] sm:$0xf]
  %v67 = vld [vmem:[%s1 + $0x5c] sm:$0xf]
  %v68 = vld [vmem:[%s1 + $0x60] sm:$0xf]
  %v69 = vld [vmem:[%s1 + $0x64] sm:$0xf]
  %v70 = vld [vmem:[%s1 + $0x68] sm:$0xf]
  %v71 = vld [vmem:[%s1 + $0x6c] sm:$0xf]
  %v72 = vld [vmem:[%s1 + $0x70] sm:$0xf]
  %v73 = vld [vmem:[%s1 + $0x74] sm:$0xf]
  %v74 = vld [vmem:[%s1 + $0x78] sm:$0xf]
  %v75 = vld [vmem:[%s1 + $0x7c] sm:$0xf]
  %v108 = vunpack.c.l.b16 %v12
  %v109 = vunpack.c.l.b16 %v13
  %v110 = vunpack.c.l.b16 %v14
  %v111 = vunpack.c.l.b16 %v15
  %v112 = vunpack.c.l.b16 %v16
  %v113 = vunpack.c.l.b16 %v17
  %v114 = vunpack.c.l.b16 %v18
  %v115 = vunpack.c.l.b16 %v19
  %v116 = vunpack.c.l.b16 %v20
  %v117 = vunpack.c.l.b16 %v21
  %v118 = vunpack.c.l.b16 %v22
  %v119 = vunpack.c.l.b16 %v23
  %v120 = vunpack.c.l.b16 %v24
  %v121 = vunpack.c.l.b16 %v25
  %v122 = vunpack.c.l.b16 %v26
  %v123 = vunpack.c.l.b16 %v27
  %v124 = vunpack.c.l.b16 %v28
  %v125 = vunpack.c.l.b16 %v29
  %v126 = vunpack.c.l.b16 %v30
  %v127 = vunpack.c.l.b16 %v31
  %v128 = vunpack.c.l.b16 %v32
  %v129 = vunpack.c.l.b16 %v33
  %v130 = vunpack.c.l.b16 %v34
  %v131 = vunpack.c.l.b16 %v35
  %v132 = vunpack.c.l.b16 %v36
  %v133 = vunpack.c.l.b16 %v37
  %v134 = vunpack.c.l.b16 %v38
  %v135 = vunpack.c.l.b16 %v39
  %v136 = vunpack.c.l.b16 %v40
  %v137 = vunpack.c.l.b16 %v41
  %v138 = vunpack.c.l.b16 %v42
  %v139 = vunpack.c.l.b16 %v43
  %v140 = vpack.c.b16 %v109, %v108
  %v141 = vpack.c.b16 %v111, %v110
  %v142 = vpack.c.b16 %v113, %v112
  %v143 = vpack.c.b16 %v115, %v114
  %v144 = vpack.c.b16 %v117, %v116
  %v145 = vpack.c.b16 %v119, %v118
  %v146 = vpack.c.b16 %v121, %v120
  %v147 = vpack.c.b16 %v123, %v122
  %v148 = vpack.c.b16 %v125, %v124
  %v149 = vpack.c.b16 %v127, %v126
  %v150 = vpack.c.b16 %v129, %v128
  %v151 = vpack.c.b16 %v131, %v130
  %v152 = vpack.c.b16 %v133, %v132
  %v153 = vpack.c.b16 %v135, %v134
  %v154 = vpack.c.b16 %v137, %v136
  %v155 = vpack.c.b16 %v139, %v138
  %v188 = vunpack.c.l.b16 %v44
  %v189 = vunpack.c.l.b16 %v45
  %v190 = vunpack.c.l.b16 %v46
  %v191 = vunpack.c.l.b16 %v47
  %v192 = vunpack.c.l.b16 %v48
  %v193 = vunpack.c.l.b16 %v49
  %v194 = vunpack.c.l.b16 %v50
  %v195 = vunpack.c.l.b16 %v51
  %v196 = vunpack.c.l.b16 %v52
  %v197 = vunpack.c.l.b16 %v53
  %v198 = vunpack.c.l.b16 %v54
  %v199 = vunpack.c.l.b16 %v55
  %v200 = vunpack.c.l.b16 %v56
  %v201 = vunpack.c.l.b16 %v57
  %v202 = vunpack.c.l.b16 %v58
  %v203 = vunpack.c.l.b16 %v59
  %v204 = vunpack.c.l.b16 %v60
  %v205 = vunpack.c.l.b16 %v61
  %v206 = vunpack.c.l.b16 %v62
  %v207 = vunpack.c.l.b16 %v63
  %v208 = vunpack.c.l.b16 %v64
  %v209 = vunpack.c.l.b16 %v65
  %v210 = vunpack.c.l.b16 %v66
  %v211 = vunpack.c.l.b16 %v67
  %v212 = vunpack.c.l.b16 %v68
  %v213 = vunpack.c.l.b16 %v69
  %v214 = vunpack.c.l.b16 %v70
  %v215 = vunpack.c.l.b16 %v71
  %v216 = vunpack.c.l.b16 %v72
  %v217 = vunpack.c.l.b16 %v73
  %v218 = vunpack.c.l.b16 %v74
  %v219 = vunpack.c.l.b16 %v75
  %v220 = vpack.c.b16 %v189, %v188
  %v221 = vpack.c.b16 %v191, %v190
  %v222 = vpack.c.b16 %v193, %v192
  %v223 = vpack.c.b16 %v195, %v194
  %v224 = vpack.c.b16 %v197, %v196
  %v225 = vpack.c.b16 %v199, %v198
  %v226 = vpack.c.b16 %v201, %v200
  %v227 = vpack.c.b16 %v203, %v202
  %v228 = vpack.c.b16 %v205, %v204
  %v229 = vpack.c.b16 %v207, %v206
  %v230 = vpack.c.b16 %v209, %v208
  %v231 = vpack.c.b16 %v211, %v210
  %v232 = vpack.c.b16 %v213, %v212
  %v233 = vpack.c.b16 %v215, %v214
  %v234 = vpack.c.b16 %v217, %v216
  %v235 = vpack.c.b16 %v219, %v218
  %vm236 = vcmask 523264
  %v238 = vsel %vm236, %v140, 0
  %v241 = vsel %vm236, %v141, 0
  %v244 = vsel %vm236, %v142, 0
  %v247 = vsel %vm236, %v143, 0
  %v250 = vsel %vm236, %v144, 0
  %v253 = vsel %vm236, %v145, 0
  %v256 = vsel %vm236, %v146, 0
  %v259 = vsel %vm236, %v147, 0
  %v262 = vsel %vm236, %v148, 0
  %v265 = vsel %vm236, %v149, 0
  %v268 = vsel %vm236, %v150, 0
  %v271 = vsel %vm236, %v151, 0
  %v274 = vsel %vm236, %v152, 0
  %v277 = vsel %vm236, %v153, 0
  %v280 = vsel %vm236, %v154, 0
  %v283 = vsel %vm236, %v155, 0
  %v286 = vsel %vm236, %v220, 0
  %v289 = vsel %vm236, %v221, 0
  %v292 = vsel %vm236, %v222, 0
  %v295 = vsel %vm236, %v223, 0
  %v298 = vsel %vm236, %v224, 0
  %v301 = vsel %vm236, %v225, 0
  %v304 = vsel %vm236, %v226, 0
  %v307 = vsel %vm236, %v227, 0
  %v310 = vsel %vm236, %v228, 0
  %v313 = vsel %vm236, %v229, 0
  %v316 = vsel %vm236, %v230, 0
  %v319 = vsel %vm236, %v231, 0
  %v322 = vsel %vm236, %v232, 0
  %v325 = vsel %vm236, %v233, 0
  %v328 = vsel %vm236, %v234, 0
  %v331 = vsel %vm236, %v235, 0
  %333 = vmatprep.subr.bf16.mxu0 0
  %334 = vmatpush1.bf16.xpose.msra.mxu0 %v286
  %335 = vmatprep.subr.bf16.mxu0 0
  %336 = vmatpush1.bf16.xpose.msra.mxu0 %v289
  %337 = vmatprep.subr.bf16.mxu0 0
  %338 = vmatpush1.bf16.xpose.msra.mxu0 %v292
  %339 = vmatprep.subr.bf16.mxu0 0
  %340 = vmatpush1.bf16.xpose.msra.mxu0 %v295
  %341 = vmatprep.subr.bf16.mxu0 0
  %342 = vmatpush1.bf16.xpose.msra.mxu0 %v298
  %343 = vmatprep.subr.bf16.mxu0 0
  %344 = vmatpush1.bf16.xpose.msra.mxu0 %v301
  %345 = vmatprep.subr.bf16.mxu0 0
  %346 = vmatpush1.bf16.xpose.msra.mxu0 %v304
  %347 = vmatprep.subr.bf16.mxu0 0
  %348 = vmatpush1.bf16.xpose.msra.mxu0 %v307
  %349 = vmatprep.subr.bf16.mxu0 0
  %350 = vmatpush1.bf16.xpose.msra.mxu0 %v310
  %351 = vmatprep.subr.bf16.mxu0 0
  %352 = vmatpush1.bf16.xpose.msra.mxu0 %v313
  %353 = vmatprep.subr.bf16.mxu0 0
  %354 = vmatpush1.bf16.xpose.msra.mxu0 %v316
  %355 = vmatprep.subr.bf16.mxu0 0
  %356 = vmatpush1.bf16.xpose.msra.mxu0 %v319
  %357 = vmatprep.subr.bf16.mxu0 0
  %358 = vmatpush1.bf16.xpose.msra.mxu0 %v322
  %359 = vmatprep.subr.bf16.mxu0 0
  %360 = vmatpush1.bf16.xpose.msra.mxu0 %v325
  %361 = vmatprep.subr.bf16.mxu0 0
  %362 = vmatpush1.bf16.xpose.msra.mxu0 %v328
  %363 = vmatprep.subr.bf16.mxu0 0
  %364 = vmatpush1.bf16.xpose.msra.mxu0 %v331
  %365 = vmatprep.mubr.bf16.mxu0 0
  %366 = vmatmul.mubr.bf16.gmra.mrb[0].mxu0 %v238
  %v367 = vpop.f32.mrb[0].mxu0
  %v368 = vadd.f32 0.0, %v367
  %v369 = vpop.f32.mrb[0].mxu0
  %v370 = vadd.f32 0.0, %v369
  %v371 = vpop.f32.mrb[0].mxu0
  %v372 = vadd.f32 0.0, %v371
  %v373 = vpop.f32.mrb[0].mxu0
  %v374 = vadd.f32 0.0, %v373
  %375 = vmatprep.mubr.bf16.mxu0 0
  %376 = vmatmul.mubr.bf16.gmra.mrb[0].mxu0 %v241
  %v377 = vpop.f32.mrb[0].mxu0
  %v378 = vadd.f32 0.0, %v377
  %v379 = vpop.f32.mrb[0].mxu0
  %v380 = vadd.f32 0.0, %v379
  %v381 = vpop.f32.mrb[0].mxu0
  %v382 = vadd.f32 0.0, %v381
  %v383 = vpop.f32.mrb[0].mxu0
  %v384 = vadd.f32 0.0, %v383
  %385 = vmatprep.mubr.bf16.mxu0 0
  %386 = vmatmul.mubr.bf16.gmra.mrb[0].mxu0 %v244
  %v387 = vpop.f32.mrb[0].mxu0
  %v388 = vadd.f32 0.0, %v387
  %v389 = vpop.f32.mrb[0].mxu0
  %v390 = vadd.f32 0.0, %v389
  %v391 = vpop.f32.mrb[0].mxu0
  %v392 = vadd.f32 0.0, %v391
  %v393 = vpop.f32.mrb[0].mxu0
  %v394 = vadd.f32 0.0, %v393
  %395 = vmatprep.mubr.bf16.mxu0 0
  %396 = vmatmul.mubr.bf16.gmra.mrb[0].mxu0 %v247
  %v397 = vpop.f32.mrb[0].mxu0
  %v398 = vadd.f32 0.0, %v397
  %v399 = vpop.f32.mrb[0].mxu0
  %v400 = vadd.f32 0.0, %v399
  %v401 = vpop.f32.mrb[0].mxu0
  %v402 = vadd.f32 0.0, %v401
  %v403 = vpop.f32.mrb[0].mxu0
  %v404 = vadd.f32 0.0, %v403
  %405 = vmatprep.mubr.bf16.mxu0 0
  %406 = vmatmul.mubr.bf16.gmra.mrb[0].mxu0 %v250
  %v407 = vpop.f32.mrb[0].mxu0
  %v408 = vadd.f32 0.0, %v407
  %v409 = vpop.f32.mrb[0].mxu0
  %v410 = vadd.f32 0.0, %v409
  %v411 = vpop.f32.mrb[0].mxu0
  %v412 = vadd.f32 0.0, %v411
  %v413 = vpop.f32.mrb[0].mxu0
  %v414 = vadd.f32 0.0, %v413
  %415 = vmatprep.mubr.bf16.mxu0 0
  %416 = vmatmul.mubr.bf16.gmra.mrb[0].mxu0 %v253
  %v417 = vpop.f32.mrb[0].mxu0
  %v418 = vadd.f32 0.0, %v417
  %v419 = vpop.f32.mrb[0].mxu0
  %v420 = vadd.f32 0.0, %v419
  %v421 = vpop.f32.mrb[0].mxu0
  %v422 = vadd.f32 0.0, %v421
  %v423 = vpop.f32.mrb[0].mxu0
  %v424 = vadd.f32 0.0, %v423
  %425 = vmatprep.mubr.bf16.mxu0 0
  %426 = vmatmul.mubr.bf16.gmra.mrb[0].mxu0 %v256
  %v427 = vpop.f32.mrb[0].mxu0
  %v428 = vadd.f32 0.0, %v427
  %v429 = vpop.f32.mrb[0].mxu0
  %v430 = vadd.f32 0.0, %v429
  %v431 = vpop.f32.mrb[0].mxu0
  %v432 = vadd.f32 0.0, %v431
  %v433 = vpop.f32.mrb[0].mxu0
  %v434 = vadd.f32 0.0, %v433
  %435 = vmatprep.mubr.bf16.mxu0 0
  %436 = vmatmul.mubr.bf16.gmra.mrb[0].mxu0 %v259
  %v437 = vpop.f32.mrb[0].mxu0
  %v438 = vadd.f32 0.0, %v437
  %v439 = vpop.f32.mrb[0].mxu0
  %v440 = vadd.f32 0.0, %v439
  %v441 = vpop.f32.mrb[0].mxu0
  %v442 = vadd.f32 0.0, %v441
  %v443 = vpop.f32.mrb[0].mxu0
  %v444 = vadd.f32 0.0, %v443
  %445 = vmatprep.mubr.bf16.mxu0 0
  %446 = vmatmul.mubr.bf16.gmra.mrb[0].mxu0 %v262
  %v447 = vpop.f32.mrb[0].mxu0
  %v448 = vadd.f32 0.0, %v447
  %v449 = vpop.f32.mrb[0].mxu0
  %v450 = vadd.f32 0.0, %v449
  %v451 = vpop.f32.mrb[0].mxu0
  %v452 = vadd.f32 0.0, %v451
  %v453 = vpop.f32.mrb[0].mxu0
  %v454 = vadd.f32 0.0, %v453
  %455 = vmatprep.mubr.bf16.mxu0 0
  %456 = vmatmul.mubr.bf16.gmra.mrb[0].mxu0 %v265
  %v457 = vpop.f32.mrb[0].mxu0
  %v458 = vadd.f32 0.0, %v457
  %v459 = vpop.f32.mrb[0].mxu0
  %v460 = vadd.f32 0.0, %v459
  %v461 = vpop.f32.mrb[0].mxu0
  %v462 = vadd.f32 0.0, %v461
  %v463 = vpop.f32.mrb[0].mxu0
  %v464 = vadd.f32 0.0, %v463
  %465 = vmatprep.mubr.bf16.mxu0 0
  %466 = vmatmul.mubr.bf16.gmra.mrb[0].mxu0 %v268
  %v467 = vpop.f32.mrb[0].mxu0
  %v468 = vadd.f32 0.0, %v467
  %v469 = vpop.f32.mrb[0].mxu0
  %v470 = vadd.f32 0.0, %v469
  %v471 = vpop.f32.mrb[0].mxu0
  %v472 = vadd.f32 0.0, %v471
  %v473 = vpop.f32.mrb[0].mxu0
  %v474 = vadd.f32 0.0, %v473
  %475 = vmatprep.mubr.bf16.mxu0 0
  %476 = vmatmul.mubr.bf16.gmra.mrb[0].mxu0 %v271
  %v477 = vpop.f32.mrb[0].mxu0
  %v478 = vadd.f32 0.0, %v477
  %v479 = vpop.f32.mrb[0].mxu0
  %v480 = vadd.f32 0.0, %v479
  %v481 = vpop.f32.mrb[0].mxu0
  %v482 = vadd.f32 0.0, %v481
  %v483 = vpop.f32.mrb[0].mxu0
  %v484 = vadd.f32 0.0, %v483
  %485 = vmatprep.mubr.bf16.mxu0 0
  %486 = vmatmul.mubr.bf16.gmra.mrb[0].mxu0 %v274
  %v487 = vpop.f32.mrb[0].mxu0
  %v488 = vadd.f32 0.0, %v487
  %v489 = vpop.f32.mrb[0].mxu0
  %v490 = vadd.f32 0.0, %v489
  %v491 = vpop.f32.mrb[0].mxu0
  %v492 = vadd.f32 0.0, %v491
  %v493 = vpop.f32.mrb[0].mxu0
  %v494 = vadd.f32 0.0, %v493
  %495 = vmatprep.mubr.bf16.mxu0 0
  %496 = vmatmul.mubr.bf16.gmra.mrb[0].mxu0 %v277
  %v497 = vpop.f32.mrb[0].mxu0
  %v498 = vadd.f32 0.0, %v497
  %v499 = vpop.f32.mrb[0].mxu0
  %v500 = vadd.f32 0.0, %v499
  %v501 = vpop.f32.mrb[0].mxu0
  %v502 = vadd.f32 0.0, %v501
  %v503 = vpop.f32.mrb[0].mxu0
  %v504 = vadd.f32 0.0, %v503
  %505 = vmatprep.mubr.bf16.mxu0 0
  %506 = vmatmul.mubr.bf16.gmra.mrb[0].mxu0 %v280
  %v507 = vpop.f32.mrb[0].mxu0
  %v508 = vadd.f32 0.0, %v507
  %v509 = vpop.f32.mrb[0].mxu0
  %v510 = vadd.f32 0.0, %v509
  %v511 = vpop.f32.mrb[0].mxu0
  %v512 = vadd.f32 0.0, %v511
  %v513 = vpop.f32.mrb[0].mxu0
  %v514 = vadd.f32 0.0, %v513
  %515 = vmatprep.mubr.bf16.mxu0 0
  %516 = vmatmul.mubr.bf16.gmra.mrb[0].mxu0 %v283
  %v517 = vpop.f32.mrb[0].mxu0
  %v518 = vadd.f32 0.0, %v517
  %v519 = vpop.f32.mrb[0].mxu0
  %v520 = vadd.f32 0.0, %v519
  %v521 = vpop.f32.mrb[0].mxu0
  %v522 = vadd.f32 0.0, %v521
  %v523 = vpop.f32.mrb[0].mxu0
  %v524 = vadd.f32 0.0, %v523
  %525 = vdwg.mxu0
  %526 = vst [vmem:[%s2] sm:$0xff] %v368
  %527 = vst [vmem:[%s2 + $0x8] sm:$0xff] %v370
  %528 = vst [vmem:[%s2 + $0x10] sm:$0xff] %v372
  %529 = vst [vmem:[%s2 + $0x18] sm:$0xff] %v374
  %530 = vst [vmem:[%s2 + $0x20] sm:$0xff] %v378
  %531 = vst [vmem:[%s2 + $0x28] sm:$0xff] %v380
  %532 = vst [vmem:[%s2 + $0x30] sm:$0xff] %v382
  %533 = vst [vmem:[%s2 + $0x38] sm:$0xff] %v384
  %534 = vst [vmem:[%s2 + $0x40] sm:$0xff] %v388
  %535 = vst [vmem:[%s2 + $0x48] sm:$0xff] %v390
  %536 = vst [vmem:[%s2 + $0x50] sm:$0xff] %v392
  %537 = vst [vmem:[%s2 + $0x58] sm:$0xff] %v394
  %538 = vst [vmem:[%s2 + $0x60] sm:$0xff] %v398
  %539 = vst [vmem:[%s2 + $0x68] sm:$0xff] %v400
  %540 = vst [vmem:[%s2 + $0x70] sm:$0xff] %v402
  %541 = vst [vmem:[%s2 + $0x78] sm:$0xff] %v404
  %542 = vst [vmem:[%s2 + $0x80] sm:$0xff] %v408
  %543 = vst [vmem:[%s2 + $0x88] sm:$0xff] %v410
  %544 = vst [vmem:[%s2 + $0x90] sm:$0xff] %v412
  %545 = vst [vmem:[%s2 + $0x98] sm:$0xff] %v414
  %546 = vst [vmem:[%s2 + $0xa0] sm:$0xff] %v418
  %547 = vst [vmem:[%s2 + $0xa8] sm:$0xff] %v420
  %548 = vst [vmem:[%s2 + $0xb0] sm:$0xff] %v422
  %549 = vst [vmem:[%s2 + $0xb8] sm:$0xff] %v424
  %550 = vst [vmem:[%s2 + $0xc0] sm:$0xff] %v428
  %551 = vst [vmem:[%s2 + $0xc8] sm:$0xff] %v430
  %552 = vst [vmem:[%s2 + $0xd0] sm:$0xff] %v432
  %553 = vst [vmem:[%s2 + $0xd8] sm:$0xff] %v434
  %554 = vst [vmem:[%s2 + $0xe0] sm:$0xff] %v438
  %555 = vst [vmem:[%s2 + $0xe8] sm:$0xff] %v440
  %556 = vst [vmem:[%s2 + $0xf0] sm:$0xff] %v442
  %557 = vst [vmem:[%s2 + $0xf8] sm:$0xff] %v444
  %558 = vst [vmem:[%s2 + $0x100] sm:$0xff] %v448
  %559 = vst [vmem:[%s2 + $0x108] sm:$0xff] %v450
  %560 = vst [vmem:[%s2 + $0x110] sm:$0xff] %v452
  %561 = vst [vmem:[%s2 + $0x118] sm:$0xff] %v454
  %562 = vst [vmem:[%s2 + $0x120] sm:$0xff] %v458
  %563 = vst [vmem:[%s2 + $0x128] sm:$0xff] %v460
  %564 = vst [vmem:[%s2 + $0x130] sm:$0xff] %v462
  %565 = vst [vmem:[%s2 + $0x138] sm:$0xff] %v464
  %566 = vst [vmem:[%s2 + $0x140] sm:$0xff] %v468
  %567 = vst [vmem:[%s2 + $0x148] sm:$0xff] %v470
  %568 = vst [vmem:[%s2 + $0x150] sm:$0xff] %v472
  %569 = vst [vmem:[%s2 + $0x158] sm:$0xff] %v474
  %570 = vst [vmem:[%s2 + $0x160] sm:$0xff] %v478
  %571 = vst [vmem:[%s2 + $0x168] sm:$0xff] %v480
  %572 = vst [vmem:[%s2 + $0x170] sm:$0xff] %v482
  %573 = vst [vmem:[%s2 + $0x178] sm:$0xff] %v484
  %574 = vst [vmem:[%s2 + $0x180] sm:$0xff] %v488
  %575 = vst [vmem:[%s2 + $0x188] sm:$0xff] %v490
  %576 = vst [vmem:[%s2 + $0x190] sm:$0xff] %v492
  %577 = vst [vmem:[%s2 + $0x198] sm:$0xff] %v494
  %578 = vst [vmem:[%s2 + $0x1a0] sm:$0xff] %v498
  %579 = vst [vmem:[%s2 + $0x1a8] sm:$0xff] %v500
  %580 = vst [vmem:[%s2 + $0x1b0] sm:$0xff] %v502
  %581 = vst [vmem:[%s2 + $0x1b8] sm:$0xff] %v504
  %582 = vst [vmem:[%s2 + $0x1c0] sm:$0xff] %v508
  %583 = vst [vmem:[%s2 + $0x1c8] sm:$0xff] %v510
  %584 = vst [vmem:[%s2 + $0x1d0] sm:$0xff] %v512
  %585 = vst [vmem:[%s2 + $0x1d8] sm:$0xff] %v514
  %586 = vst [vmem:[%s2 + $0x1e0] sm:$0xff] %v518
  %587 = vst [vmem:[%s2 + $0x1e8] sm:$0xff] %v520
  %588 = vst [vmem:[%s2 + $0x1f0] sm:$0xff] %v522
  %589 = vst [vmem:[%s2 + $0x1f8] sm:$0xff] %v524
  // Predicated region
  $region10: #{dominant_forward.9} parent=0 // pred_check
    _
  $region11: #{dominant_forward.9} parent=0 // pred_check_branch
    %591 = sbr.rel (0) target = $region13
  $region12: #{dominant_forward.9} parent=0 // pred_region
    _
  $region13: #{dominant_forward.9} parent=0 // pred_fallthru
    _
  // Predicated region
  $region14: #{dominant_forward.9} parent=0 // pred_check
    _
  $region15: #{dominant_forward.9} parent=0 // pred_check_branch
    %593 = sbr.rel (0) target = $region17
  $region16: #{dominant_forward.9} parent=0 // pred_region
    _
  $region17: #{dominant_forward.9} parent=0 // pred_fallthru
    _

</llo_original>
